<compile_context>
chip_gen: v7x
topology: tpu7x:2x2x1
jax: 0.10.0
libtpu: 0.0.40
codegen_flags: <defaults>
</compile_context>

<pallas_src>
import numpy as np
import jax
import jax.numpy as jnp
from jax.experimental import pallas as pl
from jax.experimental.pallas import tpu as pltpu


# ----------------------------------------------------------------------------
# Fused kernel: conv1+BN1+ReLU  ->  conv2+BN2+ReLU  ->  flatten  ->  fc head
# One grid step == one image (2560 pixel rows); everything stays in VMEM.
# ----------------------------------------------------------------------------
def simple_cnn_kernel(x_ref, w1_ref, shift1_ref, w2_ref, sh2_ref,
                      wf1_ref, bf1_ref, wf2_ref, bf2_ref, o_ref):
    # conv1 (1x1, 32->64) with bias + BN1 folded into w1/shift1, then ReLU. MXU.
    h = jnp.dot(x_ref[...], w1_ref[...], preferred_element_type=jnp.float32)
    h = jnp.maximum(h + shift1_ref[...], 0.0)                    # (2560, 64)

    # conv2 (1x1, 64->1) + BN2 (folded) + ReLU.
    # VPU multiply + lane reduction instead of a 1-wide MXU matmul.
    f = jnp.sum(h * w2_ref[...], axis=-1, keepdims=True)         # (2560, 1)
    f = jnp.maximum(f + sh2_ref[0, 0], 0.0)

    # flatten (channel count is 1 -> pixel order already matches x.view(N,-1))
    # fc1: contract the pixel axis against wf1 via a sublane reduction; avoids
    # materializing a transposed (1, 2560) row or a relayout copy.
    g = jnp.sum(f * wf1_ref[...], axis=0, keepdims=True)         # (1, 128)
    g = jnp.maximum(g + bf1_ref[...], 0.0)                       # ReLU; Dropout=id (eval)

    # fc2: (1,128) @ (128,3) + bias
    out = jnp.dot(g, wf2_ref[...], preferred_element_type=jnp.float32) + bf2_ref[...]
    o_ref[0] = out                                               # block (1, 1, 3)


# ----------------------------------------------------------------------------
# Parameter construction (matches nn.Module __init__ shapes; BN/bias folded)
# ----------------------------------------------------------------------------
def init_params(key):
    ks = jax.random.split(key, 6)
    eps = 1e-5

    # conv1: 1x1 conv 32 -> 64  (PyTorch weight (64, 32, 1, 1) -> (64, 32))
    w1 = jax.random.normal(ks[0], (64, 32), jnp.float32) * 0.1
    b1 = jax.random.normal(ks[1], (64,), jnp.float32) * 0.1
    # BatchNorm2d(64) eval defaults: gamma=1, beta=0, mean=0, var=1
    g1 = jnp.ones((64,), jnp.float32)
    be1 = jnp.zeros((64,), jnp.float32)
    m1 = jnp.zeros((64,), jnp.float32)
    v1 = jnp.ones((64,), jnp.float32)
    scale1 = g1 / jnp.sqrt(v1 + eps)                      # (64,)
    w1_eff = (w1 * scale1[:, None]).T                     # (32, 64)  BN folded
    shift1 = (be1 + (b1 - m1) * scale1).reshape(1, 64)    # conv bias + BN folded

    # conv2: 1x1 conv 64 -> 1, bias = -log((1-0.2)/0.2); BatchNorm2d(1) eval
    w2 = jax.random.normal(ks[2], (1, 64), jnp.float32) * 0.1
    b2 = jnp.full((1,), -np.log((1.0 - 0.2) / 0.2), jnp.float32)
    scale2 = 1.0 / jnp.sqrt(1.0 + eps)
    w2_eff = (w2 * scale2).reshape(1, 64)                 # row form for mul+reduce
    sh2 = (b2 * scale2).reshape(1, 1)                     # BN2 beta=0, mean=0

    # fc: Linear(2560, 128) -> ReLU -> Dropout -> Linear(128, 3)
    wf1 = jax.random.normal(ks[3], (128, 2560), jnp.float32) * 0.02
    bf1 = jax.random.normal(ks[4], (128,), jnp.float32) * 0.02
    wf2 = jax.random.normal(ks[5], (3, 128), jnp.float32) * 0.05
    bf2 = jnp.zeros((3,), jnp.float32)

    return dict(
        w1e=w1_eff,                    # (32, 64)
        shift1=shift1,                 # (1, 64)
        w2e=w2_eff,                    # (1, 64)
        sh2=sh2,                       # (1, 1)  -> SMEM scalar
        wf1t=wf1.T,                    # (2560, 128)
        bf1=bf1.reshape(1, 128),
        wf2t=wf2.T,                    # (128, 3)
        bf2=bf2.reshape(1, 3),
    )


# ----------------------------------------------------------------------------
# Wrapper
# ----------------------------------------------------------------------------
def simple_cnn_forward(x_nchw, p):
    N, C, H, W = x_nchw.shape
    assert C == 32 and H * W == 2560, "Simple_CNN expects 32 channels and H*W == 2560"
    P = H * W
    # NCHW -> per-pixel rows (N*H*W, 32): the 1x1 convs become row-wise matmuls
    # and x.view(N, -1) (channel count 1 at that point) matches (h, w) order.
    x_rows = jnp.transpose(x_nchw, (0, 2, 3, 1)).reshape(N * P, C)

    const2 = lambda r, c: pl.BlockSpec((r, c), lambda i: (0, 0))

    out = pl.pallas_call(
        simple_cnn_kernel,
        out_shape=jax.ShapeDtypeStruct((N, 1, 3), jnp.float32),
        grid=(N,),
        in_specs=[
            pl.BlockSpec((P, 32), lambda i: (i, 0)),            # image i pixel rows
            const2(32, 64),                                     # conv1 weight (BN folded)
            const2(1, 64),                                      # conv1 shift
            const2(1, 64),                                      # conv2 row (BN2 scaled)
            pl.BlockSpec(memory_space=pltpu.MemorySpace.SMEM),  # conv2 shift scalar
            const2(P, 128),                                     # fc1 weight (2560, 128)
            const2(1, 128),                                     # fc1 bias
            const2(128, 3),                                     # fc2 weight
            const2(1, 3),                                       # fc2 bias
        ],
        out_specs=pl.BlockSpec((1, 1, 3), lambda i: (i, 0, 0)),
        compiler_params=pltpu.CompilerParams(
            dimension_semantics=("parallel",)),   # batch axis -> both TCs on v7x
    )(x_rows, p["w1e"], p["shift1"], p["w2e"], p["sh2"],
      p["wf1t"], p["bf1"], p["wf2t"], p["bf2"])
    return out.reshape(N, 3)


# Pure-JAX reference for a sanity check
def reference_forward(x_nchw, p):
    N, C, H, W = x_nchw.shape
    x_rows = jnp.transpose(x_nchw, (0, 2, 3, 1)).reshape(N * H * W, C)
    h = jnp.maximum(x_rows @ p["w1e"] + p["shift1"], 0.0)
    f = jnp.maximum(h @ p["w2e"].T + p["sh2"], 0.0)
    f = f.reshape(N, H * W)
    g = jnp.maximum(f @ p["wf1t"] + p["bf1"], 0.0)
    return g @ p["wf2t"] + p["bf2"]


if __name__ == "__main__":
    key = jax.random.PRNGKey(0)
    k_x, k_p = jax.random.split(key)
    # Linear(2560) forces H*W == 2560 with a single channel after conv2.
    N, C, H, W = 2, 32, 16, 160
    x = jax.random.normal(k_x, (N, C, H, W), jnp.float32)
    params = init_params(k_p)

    out = jax.block_until_ready(simple_cnn_forward(x, params))
    assert out.shape == (N, 3) and out.dtype == jnp.float32

    ref = reference_forward(x, params)
    np.testing.assert_allclose(np.asarray(out), np.asarray(ref), rtol=2e-2, atol=2e-2)

    print("KERNEL_OK")
</pallas_src>

<mosaic_0001>
module attributes {stable_mosaic.version = 11 : i64} {
  func.func @simple_cnn_kernel(%arg0: i32, %arg1: memref<2560x32xf32, #tpu.memory_space<vmem>>, %arg2: memref<32x64xf32, #tpu.memory_space<vmem>>, %arg3: memref<1x64xf32, #tpu.memory_space<vmem>>, %arg4: memref<1x64xf32, #tpu.memory_space<vmem>>, %arg5: memref<1x1xf32, #tpu.memory_space<smem>>, %arg6: memref<2560x128xf32, #tpu.memory_space<vmem>>, %arg7: memref<1x128xf32, #tpu.memory_space<vmem>>, %arg8: memref<128x3xf32, #tpu.memory_space<vmem>>, %arg9: memref<1x3xf32, #tpu.memory_space<vmem>>, %arg10: memref<1x1x3xf32, #tpu.memory_space<vmem>>) attributes {dimension_semantics = [#tpu.dimension_semantics<parallel>], iteration_bounds = array<i64: 2>, scalar_prefetch = 0 : i64, scratch_operands = 0 : i64, tpu.core_type = #tpu.core_type<tc>, window_params = [{transform_indices = @transform_0, window_bounds = array<i64: 2560, 32>}, {pipeline_mode = #tpu.pipeline_mode<synchronous>, transform_indices = @transform_1, window_bounds = array<i64: 32, 64>}, {pipeline_mode = #tpu.pipeline_mode<synchronous>, transform_indices = @transform_2, window_bounds = array<i64: 1, 64>}, {pipeline_mode = #tpu.pipeline_mode<synchronous>, transform_indices = @transform_3, window_bounds = array<i64: 1, 64>}, {transform_indices = @transform_4, window_bounds = array<i64: 1, 1>}, {pipeline_mode = #tpu.pipeline_mode<synchronous>, transform_indices = @transform_5, window_bounds = array<i64: 2560, 128>}, {pipeline_mode = #tpu.pipeline_mode<synchronous>, transform_indices = @transform_6, window_bounds = array<i64: 1, 128>}, {pipeline_mode = #tpu.pipeline_mode<synchronous>, transform_indices = @transform_7, window_bounds = array<i64: 128, 3>}, {pipeline_mode = #tpu.pipeline_mode<synchronous>, transform_indices = @transform_8, window_bounds = array<i64: 1, 3>}, {transform_indices = @transform_9, window_bounds = array<i64: 1, 1, 3>}]} {
    %c0 = arith.constant 0 : index
    %c0_0 = arith.constant 0 : index
    %0 = vector.load %arg1[%c0, %c0_0] : memref<2560x32xf32, #tpu.memory_space<vmem>>, vector<2560x32xf32>
    %c0_1 = arith.constant 0 : index
    %c0_2 = arith.constant 0 : index
    %1 = vector.load %arg2[%c0_1, %c0_2] : memref<32x64xf32, #tpu.memory_space<vmem>>, vector<32x64xf32>
    %cst = arith.constant dense<0.000000e+00> : vector<2560x64xf32>
    %2 = tpu.matmul %0, %1, %cst {dimension_numbers = #tpu.dot_dimension_numbers<[1], [0], [0], [1], [0, 0, 1, 1], [], []>} : vector<2560x32xf32>, vector<32x64xf32>, vector<2560x64xf32> -> vector<2560x64xf32>
    %c0_3 = arith.constant 0 : index
    %c0_4 = arith.constant 0 : index
    %3 = vector.load %arg3[%c0_3, %c0_4] : memref<1x64xf32, #tpu.memory_space<vmem>>, vector<1x64xf32>
    %4 = vector.broadcast %3 : vector<1x64xf32> to vector<2560x64xf32>
    %5 = arith.addf %2, %4 : vector<2560x64xf32>
    %cst_5 = arith.constant 0.000000e+00 : f32
    %6 = vector.broadcast %cst_5 : f32 to vector<2560x64xf32>
    %7 = arith.maximumf %5, %6 : vector<2560x64xf32>
    %c0_6 = arith.constant 0 : index
    %c0_7 = arith.constant 0 : index
    %8 = vector.load %arg4[%c0_6, %c0_7] : memref<1x64xf32, #tpu.memory_space<vmem>>, vector<1x64xf32>
    %9 = vector.broadcast %8 : vector<1x64xf32> to vector<2560x64xf32>
    %10 = arith.mulf %7, %9 : vector<2560x64xf32>
    %cst_8 = arith.constant dense<0.000000e+00> : vector<2560xf32>
    %11 = vector.multi_reduction <add>, %10, %cst_8 [1] : vector<2560x64xf32> to vector<2560xf32>
    %12 = vector.shape_cast %11 : vector<2560xf32> to vector<2560x1xf32>
    %c0_9 = arith.constant 0 : index
    %c0_10 = arith.constant 0 : index
    %13 = memref.load %arg5[%c0_9, %c0_10] : memref<1x1xf32, #tpu.memory_space<smem>>
    %14 = vector.broadcast %13 : f32 to vector<2560x1xf32>
    %15 = arith.addf %12, %14 : vector<2560x1xf32>
    %cst_11 = arith.constant 0.000000e+00 : f32
    %16 = vector.broadcast %cst_11 : f32 to vector<2560x1xf32>
    %17 = arith.maximumf %15, %16 : vector<2560x1xf32>
    %c0_12 = arith.constant 0 : index
    %c0_13 = arith.constant 0 : index
    %18 = vector.load %arg6[%c0_12, %c0_13] : memref<2560x128xf32, #tpu.memory_space<vmem>>, vector<2560x128xf32>
    %19 = vector.broadcast %17 : vector<2560x1xf32> to vector<2560x128xf32>
    %20 = arith.mulf %19, %18 : vector<2560x128xf32>
    %cst_14 = arith.constant dense<0.000000e+00> : vector<128xf32>
    %21 = vector.multi_reduction <add>, %20, %cst_14 [0] : vector<2560x128xf32> to vector<128xf32>
    %22 = vector.shape_cast %21 : vector<128xf32> to vector<1x128xf32>
    %c0_15 = arith.constant 0 : index
    %c0_16 = arith.constant 0 : index
    %23 = vector.load %arg7[%c0_15, %c0_16] : memref<1x128xf32, #tpu.memory_space<vmem>>, vector<1x128xf32>
    %24 = arith.addf %22, %23 : vector<1x128xf32>
    %cst_17 = arith.constant 0.000000e+00 : f32
    %25 = vector.broadcast %cst_17 : f32 to vector<1x128xf32>
    %26 = arith.maximumf %24, %25 : vector<1x128xf32>
    %c0_18 = arith.constant 0 : index
    %c0_19 = arith.constant 0 : index
    %27 = vector.load %arg8[%c0_18, %c0_19] : memref<128x3xf32, #tpu.memory_space<vmem>>, vector<128x3xf32>
    %cst_20 = arith.constant dense<0.000000e+00> : vector<1x3xf32>
    %28 = tpu.matmul %26, %27, %cst_20 {dimension_numbers = #tpu.dot_dimension_numbers<[1], [0], [0], [1], [0, 0, 1, 1], [], []>} : vector<1x128xf32>, vector<128x3xf32>, vector<1x3xf32> -> vector<1x3xf32>
    %c0_21 = arith.constant 0 : index
    %c0_22 = arith.constant 0 : index
    %29 = vector.load %arg9[%c0_21, %c0_22] : memref<1x3xf32, #tpu.memory_space<vmem>>, vector<1x3xf32>
    %30 = arith.addf %28, %29 : vector<1x3xf32>
    %c0_23 = arith.constant 0 : index
    %c0_24 = arith.constant 0 : index
    %c0_25 = arith.constant 0 : index
    %31 = vector.load %arg10[%c0_23, %c0_24, %c0_25] : memref<1x1x3xf32, #tpu.memory_space<vmem>>, vector<1x1x3xf32>
    %32 = vector.shape_cast %31 : vector<1x1x3xf32> to vector<1x3xf32>
    %33 = vector.shape_cast %30 : vector<1x3xf32> to vector<1x1x3xf32>
    tpu.vector_store %arg10[%c0_23, %c0_24, %c0_25], %33 {strides = array<i32>} : memref<1x1x3xf32, #tpu.memory_space<vmem>>, vector<1x1x3xf32>,
    return
  }
  func.func @transform_0(%arg0: i32) -> (i32, i32) {
    %c0_i32 = arith.constant 0 : i32
    %c0_i32_0 = arith.constant 0 : i32
    return %arg0, %c0_i32 : i32, i32
  }
  func.func @transform_1(%arg0: i32) -> (i32, i32) {
    %c0_i32 = arith.constant 0 : i32
    %c0_i32_0 = arith.constant 0 : i32
    %c0_i32_1 = arith.constant 0 : i32
    return %c0_i32, %c0_i32_0 : i32, i32
  }
  func.func @transform_2(%arg0: i32) -> (i32, i32) {
    %c0_i32 = arith.constant 0 : i32
    %c0_i32_0 = arith.constant 0 : i32
    %c0_i32_1 = arith.constant 0 : i32
    return %c0_i32, %c0_i32_0 : i32, i32
  }
  func.func @transform_3(%arg0: i32) -> (i32, i32) {
    %c0_i32 = arith.constant 0 : i32
    %c0_i32_0 = arith.constant 0 : i32
    %c0_i32_1 = arith.constant 0 : i32
    return %c0_i32, %c0_i32_0 : i32, i32
  }
  func.func @transform_4(%arg0: i32) -> (i32, i32) {
    %c0_i32 = arith.constant 0 : i32
    %c0_i32_0 = arith.constant 0 : i32
    %c0_i32_1 = arith.constant 0 : i32
    return %c0_i32, %c0_i32_0 : i32, i32
  }
  func.func @transform_5(%arg0: i32) -> (i32, i32) {
    %c0_i32 = arith.constant 0 : i32
    %c0_i32_0 = arith.constant 0 : i32
    %c0_i32_1 = arith.constant 0 : i32
    return %c0_i32, %c0_i32_0 : i32, i32
  }
  func.func @transform_6(%arg0: i32) -> (i32, i32) {
    %c0_i32 = arith.constant 0 : i32
    %c0_i32_0 = arith.constant 0 : i32
    %c0_i32_1 = arith.constant 0 : i32
    return %c0_i32, %c0_i32_0 : i32, i32
  }
  func.func @transform_7(%arg0: i32) -> (i32, i32) {
    %c0_i32 = arith.constant 0 : i32
    %c0_i32_0 = arith.constant 0 : i32
    %c0_i32_1 = arith.constant 0 : i32
    return %c0_i32, %c0_i32_0 : i32, i32
  }
  func.func @transform_8(%arg0: i32) -> (i32, i32) {
    %c0_i32 = arith.constant 0 : i32
    %c0_i32_0 = arith.constant 0 : i32
    %c0_i32_1 = arith.constant 0 : i32
    return %c0_i32, %c0_i32_0 : i32, i32
  }
  func.func @transform_9(%arg0: i32) -> (i32, i32, i32) {
    %c0_i32 = arith.constant 0 : i32
    %c0_i32_0 = arith.constant 0 : i32
    %c0_i32_1 = arith.constant 0 : i32
    return %arg0, %c0_i32, %c0_i32_0 : i32, i32, i32
  }
}

</mosaic_0001>

<llo_original>
// kernel: tpu_custom_call.1
$region0: #{tpu_custom_call.1}
  #allocation0 [shape = 'u32[]', space=smem, size = 0x4, offset = 0x4, fixed_abs, tag = 'smem constant byte address 0x4 - core index']
  #allocation1 [shape = 'u32[144,128]{1,0:T(1,128)}', space=vmem, size = 0x12000, scoped, tag = 'internal scratch']
  #allocation2 [shape = 'f32[1,1]{1,0:T(1,128)S(6)}', space=smem, size = 0x200, scoped, tag = 'scoped memory for tpu_custom_call.1']
  %s0 = inlined_call_operand.vmem [shape: f32[5120,32], index: 0, kind: input, shape index: {}]
  %s1 = inlined_call_operand.vmem [shape: f32[32,64], index: 1, kind: input, shape index: {}]
  %s2 = inlined_call_operand.vmem [shape: f32[1,64], index: 2, kind: input, shape index: {}]
  %s3 = inlined_call_operand.vmem [shape: f32[1,64], index: 3, kind: input, shape index: {}]
  %s4 = inlined_call_operand.<no memory space> [shape: f32[1,1], index: 4, kind: input, shape index: {}]
  %s5 = inlined_call_operand.vmem [shape: f32[2560,128], index: 5, kind: input, shape index: {}]
  %s6 = inlined_call_operand.vmem [shape: f32[1,128], index: 6, kind: input, shape index: {}]
  %s7 = inlined_call_operand.vmem [shape: f32[128,3], index: 7, kind: input, shape index: {}]
  %s8 = inlined_call_operand.vmem [shape: f32[1,3], index: 8, kind: input, shape index: {}]
  %s9 = inlined_call_operand.hbm [shape: f32[2,1,3], index: 9, kind: output, shape index: {}]
  %s10 = sld [smem:[#allocation0]]
  $region69: #{tpu_custom_call.1} parent=0
    _
  %s12 = ssub.s32 1, %s10
  %s13 = scalar_select 0, %s12, %s10
  %14 = sst [smem:[#allocation2]] %s4
  $region1: #{tpu_custom_call.1} parent=0
    #allocation3 [shape = 'u8[1024]{0}', space=vmem, size = 0x400, scoped, tag = 'output window, operand 0']
    #allocation4 [shape = 's32[2]{0}', space=sflag, size = 0x8, scoped, tag = 'scoped memory for tpu_custom_call.1']
    %15 = vsyncpa [#allocation4], 0
    %s16 = scalar_lea.sflag [#allocation4], 1
    %17 = vsyncpa %s16, 0
    loop: start=0, step=1, limit=4
    $region2: #{tpu_custom_call.1} parent=1 // loop_pre_header
      _
    $region3: #{tpu_custom_call.1} parent=1 // loop_header
      %s19 = sphi 0, %s23
      %p20 = scmp.ge.s32.totalorder %s19, 4
      %s29 = sphi 0, %s31
      %s32 = sphi 0, %s29
      %s33 = sphi 0, %s32
      %s49 = sphi 0, %s33
      %s53 = sphi 0, %s53
      %s55 = sphi 0, %s53
      %s56 = sphi 0, %s55
      %s70 = sphi 0, %s56
      %s74 = sphi 0, %s74
      %s76 = sphi 0, %s74
      %s77 = sphi 0, %s76
      %s91 = sphi 0, %s77
      %s95 = sphi 0, %s95
      %s97 = sphi 0, %s95
      %s98 = sphi 0, %s97
      %s112 = sphi 0, %s98
      %s116 = sphi 0, %s116
      %s118 = sphi 0, %s116
      %s119 = sphi 0, %s118
      %s133 = sphi 0, %s119
      %s137 = sphi 0, %s137
      %s139 = sphi 0, %s137
      %s140 = sphi 0, %s139
      %s154 = sphi 0, %s140
      %s158 = sphi 0, %s158
      %s160 = sphi 0, %s158
      %s161 = sphi 0, %s160
      %s175 = sphi 0, %s161
      %s179 = sphi 0, %s179
      %s181 = sphi 0, %s179
      %s182 = sphi 0, %s181
      %s196 = sphi 0, %s182
      %s200 = sphi 0, %s200
      %s202 = sphi 0, %s200
      %s203 = sphi 0, %s202
      %s217 = sphi 0, %s203
      %s223 = sphi 0, %s225
      %s226 = sphi 0, %s223
      %s227 = sphi 0, %s226
      %s243 = sphi 0, %s227
    $region4: #{tpu_custom_call.1} parent=1 // loop_header_branch
      %22 = sbr.rel (%p20) target = $region8
    $region5: #{tpu_custom_call.1} parent=1 // loop_body
      %s24 = ssub.s32 %s19, 1
      %s25 = ssub.s32 %s19, 2
      %s26 = sadd.s32 %s19, 1
      %s27 = ssub.s32 %s19, %s26
      %p28 = scmp.eq.s32.totalorder %s27, 0
      %s30 = sadd.s32 %s29, 1
      %s31 = scalar_select %p28, %s29, %s30
      %p34 = pneg %p28
      %p35 = scmp.eq.s32.totalorder %s19, 1
      %p36 = por %p34, %p35
      %p37 = scmp.ne.s32.totalorder %s29, %s32
      %p38 = scmp.eq.s32.totalorder %s19, 0
      %p39 = por %p37, %p38
      %p40 = scmp.ne.s32.totalorder %s29, %s32
      %p41 = scmp.eq.s32.totalorder %s24, 1
      %p42 = por %p40, %p41
      %p43 = scmp.ne.s32.totalorder %s32, %s33
      %p44 = scmp.eq.s32.totalorder %s24, 0
      %p45 = por %p43, %p44
      %p46 = scmp.ne.s32.totalorder %s32, %s33
      %p47 = scmp.eq.s32.totalorder %s25, 1
      %p48 = por %p46, %p47
      %p50 = scmp.ne.s32.totalorder %s33, %s49
      %p51 = scmp.eq.s32.totalorder %s25, 0
      %p52 = por %p50, %p51
      %s54 = sadd.s32 %s53, 1
      %p57 = scmp.eq.s32.totalorder %s19, 1
      %p58 = scmp.ne.s32.totalorder %s53, %s55
      %p59 = scmp.eq.s32.totalorder %s19, 0
      %p60 = por %p58, %p59
      %p61 = scmp.ne.s32.totalorder %s53, %s55
      %p62 = scmp.eq.s32.totalorder %s24, 1
      %p63 = por %p61, %p62
      %p64 = scmp.ne.s32.totalorder %s55, %s56
      %p65 = scmp.eq.s32.totalorder %s24, 0
      %p66 = por %p64, %p65
      %p67 = scmp.ne.s32.totalorder %s55, %s56
      %p68 = scmp.eq.s32.totalorder %s25, 1
      %p69 = por %p67, %p68
      %p71 = scmp.ne.s32.totalorder %s56, %s70
      %p72 = scmp.eq.s32.totalorder %s25, 0
      %p73 = por %p71, %p72
      %s75 = sadd.s32 %s74, 1
      %p78 = scmp.eq.s32.totalorder %s19, 1
      %p79 = scmp.ne.s32.totalorder %s74, %s76
      %p80 = scmp.eq.s32.totalorder %s19, 0
      %p81 = por %p79, %p80
      %p82 = scmp.ne.s32.totalorder %s74, %s76
      %p83 = scmp.eq.s32.totalorder %s24, 1
      %p84 = por %p82, %p83
      %p85 = scmp.ne.s32.totalorder %s76, %s77
      %p86 = scmp.eq.s32.totalorder %s24, 0
      %p87 = por %p85, %p86
      %p88 = scmp.ne.s32.totalorder %s76, %s77
      %p89 = scmp.eq.s32.totalorder %s25, 1
      %p90 = por %p88, %p89
      %p92 = scmp.ne.s32.totalorder %s77, %s91
      %p93 = scmp.eq.s32.totalorder %s25, 0
      %p94 = por %p92, %p93
      %s96 = sadd.s32 %s95, 1
      %p99 = scmp.eq.s32.totalorder %s19, 1
      %p100 = scmp.ne.s32.totalorder %s95, %s97
      %p101 = scmp.eq.s32.totalorder %s19, 0
      %p102 = por %p100, %p101
      %p103 = scmp.ne.s32.totalorder %s95, %s97
      %p104 = scmp.eq.s32.totalorder %s24, 1
      %p105 = por %p103, %p104
      %p106 = scmp.ne.s32.totalorder %s97, %s98
      %p107 = scmp.eq.s32.totalorder %s24, 0
      %p108 = por %p106, %p107
      %p109 = scmp.ne.s32.totalorder %s97, %s98
      %p110 = scmp.eq.s32.totalorder %s25, 1
      %p111 = por %p109, %p110
      %p113 = scmp.ne.s32.totalorder %s98, %s112
      %p114 = scmp.eq.s32.totalorder %s25, 0
      %p115 = por %p113, %p114
      %s117 = sadd.s32 %s116, 1
      %p120 = scmp.eq.s32.totalorder %s19, 1
      %p121 = scmp.ne.s32.totalorder %s116, %s118
      %p122 = scmp.eq.s32.totalorder %s19, 0
      %p123 = por %p121, %p122
      %p124 = scmp.ne.s32.totalorder %s116, %s118
      %p125 = scmp.eq.s32.totalorder %s24, 1
      %p126 = por %p124, %p125
      %p127 = scmp.ne.s32.totalorder %s118, %s119
      %p128 = scmp.eq.s32.totalorder %s24, 0
      %p129 = por %p127, %p128
      %p130 = scmp.ne.s32.totalorder %s118, %s119
      %p131 = scmp.eq.s32.totalorder %s25, 1
      %p132 = por %p130, %p131
      %p134 = scmp.ne.s32.totalorder %s119, %s133
      %p135 = scmp.eq.s32.totalorder %s25, 0
      %p136 = por %p134, %p135
      %s138 = sadd.s32 %s137, 1
      %p141 = scmp.eq.s32.totalorder %s19, 1
      %p142 = scmp.ne.s32.totalorder %s137, %s139
      %p143 = scmp.eq.s32.totalorder %s19, 0
      %p144 = por %p142, %p143
      %p145 = scmp.ne.s32.totalorder %s137, %s139
      %p146 = scmp.eq.s32.totalorder %s24, 1
      %p147 = por %p145, %p146
      %p148 = scmp.ne.s32.totalorder %s139, %s140
      %p149 = scmp.eq.s32.totalorder %s24, 0
      %p150 = por %p148, %p149
      %p151 = scmp.ne.s32.totalorder %s139, %s140
      %p152 = scmp.eq.s32.totalorder %s25, 1
      %p153 = por %p151, %p152
      %p155 = scmp.ne.s32.totalorder %s140, %s154
      %p156 = scmp.eq.s32.totalorder %s25, 0
      %p157 = por %p155, %p156
      %s159 = sadd.s32 %s158, 1
      %p162 = scmp.eq.s32.totalorder %s19, 1
      %p163 = scmp.ne.s32.totalorder %s158, %s160
      %p164 = scmp.eq.s32.totalorder %s19, 0
      %p165 = por %p163, %p164
      %p166 = scmp.ne.s32.totalorder %s158, %s160
      %p167 = scmp.eq.s32.totalorder %s24, 1
      %p168 = por %p166, %p167
      %p169 = scmp.ne.s32.totalorder %s160, %s161
      %p170 = scmp.eq.s32.totalorder %s24, 0
      %p171 = por %p169, %p170
      %p172 = scmp.ne.s32.totalorder %s160, %s161
      %p173 = scmp.eq.s32.totalorder %s25, 1
      %p174 = por %p172, %p173
      %p176 = scmp.ne.s32.totalorder %s161, %s175
      %p177 = scmp.eq.s32.totalorder %s25, 0
      %p178 = por %p176, %p177
      %s180 = sadd.s32 %s179, 1
      %p183 = scmp.eq.s32.totalorder %s19, 1
      %p184 = scmp.ne.s32.totalorder %s179, %s181
      %p185 = scmp.eq.s32.totalorder %s19, 0
      %p186 = por %p184, %p185
      %p187 = scmp.ne.s32.totalorder %s179, %s181
      %p188 = scmp.eq.s32.totalorder %s24, 1
      %p189 = por %p187, %p188
      %p190 = scmp.ne.s32.totalorder %s181, %s182
      %p191 = scmp.eq.s32.totalorder %s24, 0
      %p192 = por %p190, %p191
      %p193 = scmp.ne.s32.totalorder %s181, %s182
      %p194 = scmp.eq.s32.totalorder %s25, 1
      %p195 = por %p193, %p194
      %p197 = scmp.ne.s32.totalorder %s182, %s196
      %p198 = scmp.eq.s32.totalorder %s25, 0
      %p199 = por %p197, %p198
      %s201 = sadd.s32 %s200, 1
      %p204 = scmp.eq.s32.totalorder %s19, 1
      %p205 = scmp.ne.s32.totalorder %s200, %s202
      %p206 = scmp.eq.s32.totalorder %s19, 0
      %p207 = por %p205, %p206
      %p208 = scmp.ne.s32.totalorder %s200, %s202
      %p209 = scmp.eq.s32.totalorder %s24, 1
      %p210 = por %p208, %p209
      %p211 = scmp.ne.s32.totalorder %s202, %s203
      %p212 = scmp.eq.s32.totalorder %s24, 0
      %p213 = por %p211, %p212
      %p214 = scmp.ne.s32.totalorder %s202, %s203
      %p215 = scmp.eq.s32.totalorder %s25, 1
      %p216 = por %p214, %p215
      %p218 = scmp.ne.s32.totalorder %s203, %s217
      %p219 = scmp.eq.s32.totalorder %s25, 0
      %p220 = por %p218, %p219
      %s221 = ssub.s32 %s19, %s26
      %p222 = scmp.eq.s32.totalorder %s221, 0
      %s224 = sadd.s32 %s223, 1
      %s225 = scalar_select %p222, %s223, %s224
      %p228 = pneg %p222
      %p229 = scmp.eq.s32.totalorder %s19, 1
      %p230 = por %p228, %p229
      %p231 = scmp.ne.s32.totalorder %s223, %s226
      %p232 = scmp.eq.s32.totalorder %s19, 0
      %p233 = por %p231, %p232
      %p234 = scmp.ne.s32.totalorder %s223, %s226
      %p235 = scmp.eq.s32.totalorder %s24, 1
      %p236 = por %p234, %p235
      %p237 = scmp.ne.s32.totalorder %s226, %s227
      %p238 = scmp.eq.s32.totalorder %s24, 0
      %p239 = por %p237, %p238
      %p240 = scmp.ne.s32.totalorder %s226, %s227
      %p241 = scmp.eq.s32.totalorder %s25, 1
      %p242 = por %p240, %p241
      %p244 = scmp.ne.s32.totalorder %s227, %s243
      %p245 = scmp.eq.s32.totalorder %s25, 0
      %p246 = por %p244, %p245
      %p247 = scmp.le.s32.totalorder 1, %s19
      %p248 = scmp.lt.s32.totalorder %s19, 3
      %p249 = pnand %p247, %p248
      %p250 = pneg %p249
      // Predicated region
      $region9: #{tpu_custom_call.1} parent=5 // pred_check
        _
      $region10: #{tpu_custom_call.1} parent=5 // pred_check_branch
        %252 = sbr.rel (%p249) target = $region12
      $region11: #{tpu_custom_call.1} parent=5 // pred_region
        %s253 = ssub.s32 %s19, 1
        // Predicated region
        $region13: #{tpu_custom_call.1} parent=11 // pred_check
          %p254 = pneg %p66
        $region14: #{tpu_custom_call.1} parent=11 // pred_check_branch
          %256 = sbr.rel (%p254) target = $region16
        $region15: #{tpu_custom_call.1} parent=11 // pred_region
          _
        $region16: #{tpu_custom_call.1} parent=11 // pred_fallthru
          _
        // Predicated region
        $region17: #{tpu_custom_call.1} parent=11 // pred_check
          %p257 = pneg %p87
        $region18: #{tpu_custom_call.1} parent=11 // pred_check_branch
          %259 = sbr.rel (%p257) target = $region20
        $region19: #{tpu_custom_call.1} parent=11 // pred_region
          _
        $region20: #{tpu_custom_call.1} parent=11 // pred_fallthru
          _
        // Predicated region
        $region21: #{tpu_custom_call.1} parent=11 // pred_check
          %p260 = pneg %p108
        $region22: #{tpu_custom_call.1} parent=11 // pred_check_branch
          %262 = sbr.rel (%p260) target = $region24
        $region23: #{tpu_custom_call.1} parent=11 // pred_region
          _
        $region24: #{tpu_custom_call.1} parent=11 // pred_fallthru
          _
        // Predicated region
        $region25: #{tpu_custom_call.1} parent=11 // pred_check
          %p263 = pneg %p129
        $region26: #{tpu_custom_call.1} parent=11 // pred_check_branch
          %265 = sbr.rel (%p263) target = $region28
        $region27: #{tpu_custom_call.1} parent=11 // pred_region
          _
        $region28: #{tpu_custom_call.1} parent=11 // pred_fallthru
          _
        // Predicated region
        $region29: #{tpu_custom_call.1} parent=11 // pred_check
          %p266 = pneg %p150
        $region30: #{tpu_custom_call.1} parent=11 // pred_check_branch
          %268 = sbr.rel (%p266) target = $region32
        $region31: #{tpu_custom_call.1} parent=11 // pred_region
          _
        $region32: #{tpu_custom_call.1} parent=11 // pred_fallthru
          _
        // Predicated region
        $region33: #{tpu_custom_call.1} parent=11 // pred_check
          %p269 = pneg %p171
        $region34: #{tpu_custom_call.1} parent=11 // pred_check_branch
          %271 = sbr.rel (%p269) target = $region36
        $region35: #{tpu_custom_call.1} parent=11 // pred_region
          _
        $region36: #{tpu_custom_call.1} parent=11 // pred_fallthru
          _
        // Predicated region
        $region37: #{tpu_custom_call.1} parent=11 // pred_check
          %p272 = pneg %p192
        $region38: #{tpu_custom_call.1} parent=11 // pred_check_branch
          %274 = sbr.rel (%p272) target = $region40
        $region39: #{tpu_custom_call.1} parent=11 // pred_region
          _
        $region40: #{tpu_custom_call.1} parent=11 // pred_fallthru
          _
        // Predicated region
        $region41: #{tpu_custom_call.1} parent=11 // pred_check
          %p275 = pneg %p213
        $region42: #{tpu_custom_call.1} parent=11 // pred_check_branch
          %277 = sbr.rel (%p275) target = $region44
        $region43: #{tpu_custom_call.1} parent=11 // pred_region
          _
        $region44: #{tpu_custom_call.1} parent=11 // pred_fallthru
          _
      $region12: #{tpu_custom_call.1} parent=5 // pred_fallthru
        _
      %p278 = scmp.lt.s32.totalorder %s19, 2
      // Predicated region
      $region45: #{tpu_custom_call.1} parent=5 // pred_check
        %p279 = pneg %p278
      $region46: #{tpu_custom_call.1} parent=5 // pred_check_branch
        %281 = sbr.rel (%p279) target = $region48
      $region47: #{tpu_custom_call.1} parent=5 // pred_region
        // Predicated region
        $region49: #{tpu_custom_call.1} parent=47 // pred_check
          %p282 = pneg %p39
        $region50: #{tpu_custom_call.1} parent=47 // pred_check_branch
          %284 = sbr.rel (%p282) target = $region52
        $region51: #{tpu_custom_call.1} parent=47 // pred_region
          %s285 = smul.u32 320, %s19
          %p286 = scmp.lt.s32.totalorder %s285, 639
          %s287 = scalar_select %p286, %s285, 639
          %s288 = smul.addr %s287, 8
          %s289 = scalar_lea.vmem %s0, %s288
          %s290 = smul.u32 320, %s19
        $region52: #{tpu_custom_call.1} parent=47 // pred_fallthru
          _
      $region48: #{tpu_custom_call.1} parent=5 // pred_fallthru
        _
      %p291 = scmp.le.s32.totalorder 1, %s19
      %p292 = scmp.lt.s32.totalorder %s19, 3
      %p293 = pnand %p291, %p292
      %p294 = pneg %p293
      // Predicated region
      $region53: #{tpu_custom_call.1} parent=5 // pred_check
        _
      $region54: #{tpu_custom_call.1} parent=5 // pred_check_branch
        %296 = sbr.rel (%p293) target = $region56
      $region55: #{tpu_custom_call.1} parent=5 // pred_region
        %s297 = ssub.s32 %s19, 1
        %s298 = smul.u32 320, %s24
        %p299 = scmp.lt.s32.totalorder %s298, 639
        %s300 = scalar_select %p299, %s298, 639
        %s301 = smul.addr %s300, 8
        %s302 = scalar_lea.vmem %s0, %s301
        %p303 = pneg %p45
        %p304 = pneg %p42
        %p305 = pneg %p66
        %p306 = pneg %p63
        %p307 = pneg %p87
        %p308 = pneg %p84
        %p309 = pneg %p108
        %p310 = pneg %p105
        %p311 = pneg %p129
        %p312 = pneg %p126
        %p313 = pneg %p150
        %p314 = pneg %p147
        %p315 = pneg %p171
        %p316 = pneg %p168
        %p317 = pneg %p192
        %p318 = pneg %p189
        %p319 = pneg %p213
        %p320 = pneg %p210
        %p321 = pneg %p239
        %p322 = pneg %p236
        %s323 = sand.u32 %s226, 1
        %s324 = scalar_lea.sflag [#allocation4], %s323
        %s325 = sand.u32 %s226, 1
        %s326 = scalar_lea.vmem [#allocation3], %s325
        %s327 = smul.u32 320, %s24
        %p328 = scmp.lt.s32.totalorder %s327, 639
        %s329 = scalar_select %p328, %s327, 639
        %s330 = smul.addr %s329, 8
        %s331 = scalar_lea.vmem %s0, %s330
        %s332 = smul.u32 320, %s24
        %v333 = vld [vmem:[%s331] sm:$0xff]
        %v334 = vld [vmem:[%s331 + $0x8] sm:$0xff]
        %v335 = vld [vmem:[%s331 + $0x10] sm:$0xff]
        %v336 = vld [vmem:[%s331 + $0x18] sm:$0xff]
        %v337 = vld [vmem:[%s331 + $0x20] sm:$0xff]
        %v338 = vld [vmem:[%s331 + $0x28] sm:$0xff]
        %v339 = vld [vmem:[%s331 + $0x30] sm:$0xff]
        %v340 = vld [vmem:[%s331 + $0x38] sm:$0xff]
        %v341 = vld [vmem:[%s331 + $0x40] sm:$0xff]
        %v342 = vld [vmem:[%s331 + $0x48] sm:$0xff]
        %v343 = vld [vmem:[%s331 + $0x50] sm:$0xff]
        %v344 = vld [vmem:[%s331 + $0x58] sm:$0xff]
        %v345 = vld [vmem:[%s331 + $0x60] sm:$0xff]
        %v346 = vld [vmem:[%s331 + $0x68] sm:$0xff]
        %v347 = vld [vmem:[%s331 + $0x70] sm:$0xff]
        %v348 = vld [vmem:[%s331 + $0x78] sm:$0xff]
        %v349 = vld [vmem:[%s331 + $0x80] sm:$0xff]
        %v350 = vld [vmem:[%s331 + $0x88] sm:$0xff]
        %v351 = vld [vmem:[%s331 + $0x90] sm:$0xff]
        %v352 = vld [vmem:[%s331 + $0x98] sm:$0xff]
        %v353 = vld [vmem:[%s331 + $0xa0] sm:$0xff]
        %v354 = vld [vmem:[%s331 + $0xa8] sm:$0xff]
        %v355 = vld [vmem:[%s331 + $0xb0] sm:$0xff]
        %v356 = vld [vmem:[%s331 + $0xb8] sm:$0xff]
        %v357 = vld [vmem:[%s331 + $0xc0] sm:$0xff]
        %v358 = vld [vmem:[%s331 + $0xc8] sm:$0xff]
        %v359 = vld [vmem:[%s331 + $0xd0] sm:$0xff]
        %v360 = vld [vmem:[%s331 + $0xd8] sm:$0xff]
        %v361 = vld [vmem:[%s331 + $0xe0] sm:$0xff]
        %v362 = vld [vmem:[%s331 + $0xe8] sm:$0xff]
        %v363 = vld [vmem:[%s331 + $0xf0] sm:$0xff]
        %v364 = vld [vmem:[%s331 + $0xf8] sm:$0xff]
        %v365 = vld [vmem:[%s331 + $0x100] sm:$0xff]
        %v366 = vld [vmem:[%s331 + $0x108] sm:$0xff]
        %v367 = vld [vmem:[%s331 + $0x110] sm:$0xff]
        %v368 = vld [vmem:[%s331 + $0x118] sm:$0xff]
        %v369 = vld [vmem:[%s331 + $0x120] sm:$0xff]
        %v370 = vld [vmem:[%s331 + $0x128] sm:$0xff]
        %v371 = vld [vmem:[%s331 + $0x130] sm:$0xff]
        %v372 = vld [vmem:[%s331 + $0x138] sm:$0xff]
        %v373 = vld [vmem:[%s331 + $0x140] sm:$0xff]
        %v374 = vld [vmem:[%s331 + $0x148] sm:$0xff]
        %v375 = vld [vmem:[%s331 + $0x150] sm:$0xff]
        %v376 = vld [vmem:[%s331 + $0x158] sm:$0xff]
        %v377 = vld [vmem:[%s331 + $0x160] sm:$0xff]
        %v378 = vld [vmem:[%s331 + $0x168] sm:$0xff]
        %v379 = vld [vmem:[%s331 + $0x170] sm:$0xff]
        %v380 = vld [vmem:[%s331 + $0x178] sm:$0xff]
        %v381 = vld [vmem:[%s331 + $0x180] sm:$0xff]
        %v382 = vld [vmem:[%s331 + $0x188] sm:$0xff]
        %v383 = vld [vmem:[%s331 + $0x190] sm:$0xff]
        %v384 = vld [vmem:[%s331 + $0x198] sm:$0xff]
        %v385 = vld [vmem:[%s331 + $0x1a0] sm:$0xff]
        %v386 = vld [vmem:[%s331 + $0x1a8] sm:$0xff]
        %v387 = vld [vmem:[%s331 + $0x1b0] sm:$0xff]
        %v388 = vld [vmem:[%s331 + $0x1b8] sm:$0xff]
        %v389 = vld [vmem:[%s331 + $0x1c0] sm:$0xff]
        %v390 = vld [vmem:[%s331 + $0x1c8] sm:$0xff]
        %v391 = vld [vmem:[%s331 + $0x1d0] sm:$0xff]
        %v392 = vld [vmem:[%s331 + $0x1d8] sm:$0xff]
        %v393 = vld [vmem:[%s331 + $0x1e0] sm:$0xff]
        %v394 = vld [vmem:[%s331 + $0x1e8] sm:$0xff]
        %v395 = vld [vmem:[%s331 + $0x1f0] sm:$0xff]
        %v396 = vld [vmem:[%s331 + $0x1f8] sm:$0xff]
        %v397 = vld [vmem:[%s331 + $0x200] sm:$0xff]
        %v398 = vld [vmem:[%s331 + $0x208] sm:$0xff]
        %v399 = vld [vmem:[%s331 + $0x210] sm:$0xff]
        %v400 = vld [vmem:[%s331 + $0x218] sm:$0xff]
        %v401 = vld [vmem:[%s331 + $0x220] sm:$0xff]
        %v402 = vld [vmem:[%s331 + $0x228] sm:$0xff]
        %v403 = vld [vmem:[%s331 + $0x230] sm:$0xff]
        %v404 = vld [vmem:[%s331 + $0x238] sm:$0xff]
        %v405 = vld [vmem:[%s331 + $0x240] sm:$0xff]
        %v406 = vld [vmem:[%s331 + $0x248] sm:$0xff]
        %v407 = vld [vmem:[%s331 + $0x250] sm:$0xff]
        %v408 = vld [vmem:[%s331 + $0x258] sm:$0xff]
        %v409 = vld [vmem:[%s331 + $0x260] sm:$0xff]
        %v410 = vld [vmem:[%s331 + $0x268] sm:$0xff]
        %v411 = vld [vmem:[%s331 + $0x270] sm:$0xff]
        %v412 = vld [vmem:[%s331 + $0x278] sm:$0xff]
        %v413 = vld [vmem:[%s331 + $0x280] sm:$0xff]
        %v414 = vld [vmem:[%s331 + $0x288] sm:$0xff]
        %v415 = vld [vmem:[%s331 + $0x290] sm:$0xff]
        %v416 = vld [vmem:[%s331 + $0x298] sm:$0xff]
        %v417 = vld [vmem:[%s331 + $0x2a0] sm:$0xff]
        %v418 = vld [vmem:[%s331 + $0x2a8] sm:$0xff]
        %v419 = vld [vmem:[%s331 + $0x2b0] sm:$0xff]
        %v420 = vld [vmem:[%s331 + $0x2b8] sm:$0xff]
        %v421 = vld [vmem:[%s331 + $0x2c0] sm:$0xff]
        %v422 = vld [vmem:[%s331 + $0x2c8] sm:$0xff]
        %v423 = vld [vmem:[%s331 + $0x2d0] sm:$0xff]
        %v424 = vld [vmem:[%s331 + $0x2d8] sm:$0xff]
        %v425 = vld [vmem:[%s331 + $0x2e0] sm:$0xff]
        %v426 = vld [vmem:[%s331 + $0x2e8] sm:$0xff]
        %v427 = vld [vmem:[%s331 + $0x2f0] sm:$0xff]
        %v428 = vld [vmem:[%s331 + $0x2f8] sm:$0xff]
        %v429 = vld [vmem:[%s331 + $0x300] sm:$0xff]
        %v430 = vld [vmem:[%s331 + $0x308] sm:$0xff]
        %v431 = vld [vmem:[%s331 + $0x310] sm:$0xff]
        %v432 = vld [vmem:[%s331 + $0x318] sm:$0xff]
        %v433 = vld [vmem:[%s331 + $0x320] sm:$0xff]
        %v434 = vld [vmem:[%s331 + $0x328] sm:$0xff]
        %v435 = vld [vmem:[%s331 + $0x330] sm:$0xff]
        %v436 = vld [vmem:[%s331 + $0x338] sm:$0xff]
        %v437 = vld [vmem:[%s331 + $0x340] sm:$0xff]
        %v438 = vld [vmem:[%s331 + $0x348] sm:$0xff]
        %v439 = vld [vmem:[%s331 + $0x350] sm:$0xff]
        %v440 = vld [vmem:[%s331 + $0x358] sm:$0xff]
        %v441 = vld [vmem:[%s331 + $0x360] sm:$0xff]
        %v442 = vld [vmem:[%s331 + $0x368] sm:$0xff]
        %v443 = vld [vmem:[%s331 + $0x370] sm:$0xff]
        %v444 = vld [vmem:[%s331 + $0x378] sm:$0xff]
        %v445 = vld [vmem:[%s331 + $0x380] sm:$0xff]
        %v446 = vld [vmem:[%s331 + $0x388] sm:$0xff]
        %v447 = vld [vmem:[%s331 + $0x390] sm:$0xff]
        %v448 = vld [vmem:[%s331 + $0x398] sm:$0xff]
        %v449 = vld [vmem:[%s331 + $0x3a0] sm:$0xff]
        %v450 = vld [vmem:[%s331 + $0x3a8] sm:$0xff]
        %v451 = vld [vmem:[%s331 + $0x3b0] sm:$0xff]
        %v452 = vld [vmem:[%s331 + $0x3b8] sm:$0xff]
        %v453 = vld [vmem:[%s331 + $0x3c0] sm:$0xff]
        %v454 = vld [vmem:[%s331 + $0x3c8] sm:$0xff]
        %v455 = vld [vmem:[%s331 + $0x3d0] sm:$0xff]
        %v456 = vld [vmem:[%s331 + $0x3d8] sm:$0xff]
        %v457 = vld [vmem:[%s331 + $0x3e0] sm:$0xff]
        %v458 = vld [vmem:[%s331 + $0x3e8] sm:$0xff]
        %v459 = vld [vmem:[%s331 + $0x3f0] sm:$0xff]
        %v460 = vld [vmem:[%s331 + $0x3f8] sm:$0xff]
        %v461 = vld [vmem:[%s331 + $0x400] sm:$0xff]
        %v462 = vld [vmem:[%s331 + $0x408] sm:$0xff]
        %v463 = vld [vmem:[%s331 + $0x410] sm:$0xff]
        %v464 = vld [vmem:[%s331 + $0x418] sm:$0xff]
        %v465 = vld [vmem:[%s331 + $0x420] sm:$0xff]
        %v466 = vld [vmem:[%s331 + $0x428] sm:$0xff]
        %v467 = vld [vmem:[%s331 + $0x430] sm:$0xff]
        %v468 = vld [vmem:[%s331 + $0x438] sm:$0xff]
        %v469 = vld [vmem:[%s331 + $0x440] sm:$0xff]
        %v470 = vld [vmem:[%s331 + $0x448] sm:$0xff]
        %v471 = vld [vmem:[%s331 + $0x450] sm:$0xff]
        %v472 = vld [vmem:[%s331 + $0x458] sm:$0xff]
        %v473 = vld [vmem:[%s331 + $0x460] sm:$0xff]
        %v474 = vld [vmem:[%s331 + $0x468] sm:$0xff]
        %v475 = vld [vmem:[%s331 + $0x470] sm:$0xff]
        %v476 = vld [vmem:[%s331 + $0x478] sm:$0xff]
        %v477 = vld [vmem:[%s331 + $0x480] sm:$0xff]
        %v478 = vld [vmem:[%s331 + $0x488] sm:$0xff]
        %v479 = vld [vmem:[%s331 + $0x490] sm:$0xff]
        %v480 = vld [vmem:[%s331 + $0x498] sm:$0xff]
        %v481 = vld [vmem:[%s331 + $0x4a0] sm:$0xff]
        %v482 = vld [vmem:[%s331 + $0x4a8] sm:$0xff]
        %v483 = vld [vmem:[%s331 + $0x4b0] sm:$0xff]
        %v484 = vld [vmem:[%s331 + $0x4b8] sm:$0xff]
        %v485 = vld [vmem:[%s331 + $0x4c0] sm:$0xff]
        %v486 = vld [vmem:[%s331 + $0x4c8] sm:$0xff]
        %v487 = vld [vmem:[%s331 + $0x4d0] sm:$0xff]
        %v488 = vld [vmem:[%s331 + $0x4d8] sm:$0xff]
        %v489 = vld [vmem:[%s331 + $0x4e0] sm:$0xff]
        %v490 = vld [vmem:[%s331 + $0x4e8] sm:$0xff]
        %v491 = vld [vmem:[%s331 + $0x4f0] sm:$0xff]
        %v492 = vld [vmem:[%s331 + $0x4f8] sm:$0xff]
        %v493 = vld [vmem:[%s331 + $0x500] sm:$0xff]
        %v494 = vld [vmem:[%s331 + $0x508] sm:$0xff]
        %v495 = vld [vmem:[%s331 + $0x510] sm:$0xff]
        %v496 = vld [vmem:[%s331 + $0x518] sm:$0xff]
        %v497 = vld [vmem:[%s331 + $0x520] sm:$0xff]
        %v498 = vld [vmem:[%s331 + $0x528] sm:$0xff]
        %v499 = vld [vmem:[%s331 + $0x530] sm:$0xff]
        %v500 = vld [vmem:[%s331 + $0x538] sm:$0xff]
        %v501 = vld [vmem:[%s331 + $0x540] sm:$0xff]
        %v502 = vld [vmem:[%s331 + $0x548] sm:$0xff]
        %v503 = vld [vmem:[%s331 + $0x550] sm:$0xff]
        %v504 = vld [vmem:[%s331 + $0x558] sm:$0xff]
        %v505 = vld [vmem:[%s331 + $0x560] sm:$0xff]
        %v506 = vld [vmem:[%s331 + $0x568] sm:$0xff]
        %v507 = vld [vmem:[%s331 + $0x570] sm:$0xff]
        %v508 = vld [vmem:[%s331 + $0x578] sm:$0xff]
        %v509 = vld [vmem:[%s331 + $0x580] sm:$0xff]
        %v510 = vld [vmem:[%s331 + $0x588] sm:$0xff]
        %v511 = vld [vmem:[%s331 + $0x590] sm:$0xff]
        %v512 = vld [vmem:[%s331 + $0x598] sm:$0xff]
        %v513 = vld [vmem:[%s331 + $0x5a0] sm:$0xff]
        %v514 = vld [vmem:[%s331 + $0x5a8] sm:$0xff]
        %v515 = vld [vmem:[%s331 + $0x5b0] sm:$0xff]
        %v516 = vld [vmem:[%s331 + $0x5b8] sm:$0xff]
        %v517 = vld [vmem:[%s331 + $0x5c0] sm:$0xff]
        %v518 = vld [vmem:[%s331 + $0x5c8] sm:$0xff]
        %v519 = vld [vmem:[%s331 + $0x5d0] sm:$0xff]
        %v520 = vld [vmem:[%s331 + $0x5d8] sm:$0xff]
        %v521 = vld [vmem:[%s331 + $0x5e0] sm:$0xff]
        %v522 = vld [vmem:[%s331 + $0x5e8] sm:$0xff]
        %v523 = vld [vmem:[%s331 + $0x5f0] sm:$0xff]
        %v524 = vld [vmem:[%s331 + $0x5f8] sm:$0xff]
        %v525 = vld [vmem:[%s331 + $0x600] sm:$0xff]
        %v526 = vld [vmem:[%s331 + $0x608] sm:$0xff]
        %v527 = vld [vmem:[%s331 + $0x610] sm:$0xff]
        %v528 = vld [vmem:[%s331 + $0x618] sm:$0xff]
        %v529 = vld [vmem:[%s331 + $0x620] sm:$0xff]
        %v530 = vld [vmem:[%s331 + $0x628] sm:$0xff]
        %v531 = vld [vmem:[%s331 + $0x630] sm:$0xff]
        %v532 = vld [vmem:[%s331 + $0x638] sm:$0xff]
        %v533 = vld [vmem:[%s331 + $0x640] sm:$0xff]
        %v534 = vld [vmem:[%s331 + $0x648] sm:$0xff]
        %v535 = vld [vmem:[%s331 + $0x650] sm:$0xff]
        %v536 = vld [vmem:[%s331 + $0x658] sm:$0xff]
        %v537 = vld [vmem:[%s331 + $0x660] sm:$0xff]
        %v538 = vld [vmem:[%s331 + $0x668] sm:$0xff]
        %v539 = vld [vmem:[%s331 + $0x670] sm:$0xff]
        %v540 = vld [vmem:[%s331 + $0x678] sm:$0xff]
        %v541 = vld [vmem:[%s331 + $0x680] sm:$0xff]
        %v542 = vld [vmem:[%s331 + $0x688] sm:$0xff]
        %v543 = vld [vmem:[%s331 + $0x690] sm:$0xff]
        %v544 = vld [vmem:[%s331 + $0x698] sm:$0xff]
        %v545 = vld [vmem:[%s331 + $0x6a0] sm:$0xff]
        %v546 = vld [vmem:[%s331 + $0x6a8] sm:$0xff]
        %v547 = vld [vmem:[%s331 + $0x6b0] sm:$0xff]
        %v548 = vld [vmem:[%s331 + $0x6b8] sm:$0xff]
        %v549 = vld [vmem:[%s331 + $0x6c0] sm:$0xff]
        %v550 = vld [vmem:[%s331 + $0x6c8] sm:$0xff]
        %v551 = vld [vmem:[%s331 + $0x6d0] sm:$0xff]
        %v552 = vld [vmem:[%s331 + $0x6d8] sm:$0xff]
        %v553 = vld [vmem:[%s331 + $0x6e0] sm:$0xff]
        %v554 = vld [vmem:[%s331 + $0x6e8] sm:$0xff]
        %v555 = vld [vmem:[%s331 + $0x6f0] sm:$0xff]
        %v556 = vld [vmem:[%s331 + $0x6f8] sm:$0xff]
        %v557 = vld [vmem:[%s331 + $0x700] sm:$0xff]
        %v558 = vld [vmem:[%s331 + $0x708] sm:$0xff]
        %v559 = vld [vmem:[%s331 + $0x710] sm:$0xff]
        %v560 = vld [vmem:[%s331 + $0x718] sm:$0xff]
        %v561 = vld [vmem:[%s331 + $0x720] sm:$0xff]
        %v562 = vld [vmem:[%s331 + $0x728] sm:$0xff]
        %v563 = vld [vmem:[%s331 + $0x730] sm:$0xff]
        %v564 = vld [vmem:[%s331 + $0x738] sm:$0xff]
        %v565 = vld [vmem:[%s331 + $0x740] sm:$0xff]
        %v566 = vld [vmem:[%s331 + $0x748] sm:$0xff]
        %v567 = vld [vmem:[%s331 + $0x750] sm:$0xff]
        %v568 = vld [vmem:[%s331 + $0x758] sm:$0xff]
        %v569 = vld [vmem:[%s331 + $0x760] sm:$0xff]
        %v570 = vld [vmem:[%s331 + $0x768] sm:$0xff]
        %v571 = vld [vmem:[%s331 + $0x770] sm:$0xff]
        %v572 = vld [vmem:[%s331 + $0x778] sm:$0xff]
        %v573 = vld [vmem:[%s331 + $0x780] sm:$0xff]
        %v574 = vld [vmem:[%s331 + $0x788] sm:$0xff]
        %v575 = vld [vmem:[%s331 + $0x790] sm:$0xff]
        %v576 = vld [vmem:[%s331 + $0x798] sm:$0xff]
        %v577 = vld [vmem:[%s331 + $0x7a0] sm:$0xff]
        %v578 = vld [vmem:[%s331 + $0x7a8] sm:$0xff]
        %v579 = vld [vmem:[%s331 + $0x7b0] sm:$0xff]
        %v580 = vld [vmem:[%s331 + $0x7b8] sm:$0xff]
        %v581 = vld [vmem:[%s331 + $0x7c0] sm:$0xff]
        %v582 = vld [vmem:[%s331 + $0x7c8] sm:$0xff]
        %v583 = vld [vmem:[%s331 + $0x7d0] sm:$0xff]
        %v584 = vld [vmem:[%s331 + $0x7d8] sm:$0xff]
        %v585 = vld [vmem:[%s331 + $0x7e0] sm:$0xff]
        %v586 = vld [vmem:[%s331 + $0x7e8] sm:$0xff]
        %v587 = vld [vmem:[%s331 + $0x7f0] sm:$0xff]
        %v588 = vld [vmem:[%s331 + $0x7f8] sm:$0xff]
        %v589 = vld [vmem:[%s331 + $0x800] sm:$0xff]
        %v590 = vld [vmem:[%s331 + $0x808] sm:$0xff]
        %v591 = vld [vmem:[%s331 + $0x810] sm:$0xff]
        %v592 = vld [vmem:[%s331 + $0x818] sm:$0xff]
        %v593 = vld [vmem:[%s331 + $0x820] sm:$0xff]
        %v594 = vld [vmem:[%s331 + $0x828] sm:$0xff]
        %v595 = vld [vmem:[%s331 + $0x830] sm:$0xff]
        %v596 = vld [vmem:[%s331 + $0x838] sm:$0xff]
        %v597 = vld [vmem:[%s331 + $0x840] sm:$0xff]
        %v598 = vld [vmem:[%s331 + $0x848] sm:$0xff]
        %v599 = vld [vmem:[%s331 + $0x850] sm:$0xff]
        %v600 = vld [vmem:[%s331 + $0x858] sm:$0xff]
        %v601 = vld [vmem:[%s331 + $0x860] sm:$0xff]
        %v602 = vld [vmem:[%s331 + $0x868] sm:$0xff]
        %v603 = vld [vmem:[%s331 + $0x870] sm:$0xff]
        %v604 = vld [vmem:[%s331 + $0x878] sm:$0xff]
        %v605 = vld [vmem:[%s331 + $0x880] sm:$0xff]
        %v606 = vld [vmem:[%s331 + $0x888] sm:$0xff]
        %v607 = vld [vmem:[%s331 + $0x890] sm:$0xff]
        %v608 = vld [vmem:[%s331 + $0x898] sm:$0xff]
        %v609 = vld [vmem:[%s331 + $0x8a0] sm:$0xff]
        %v610 = vld [vmem:[%s331 + $0x8a8] sm:$0xff]
        %v611 = vld [vmem:[%s331 + $0x8b0] sm:$0xff]
        %v612 = vld [vmem:[%s331 + $0x8b8] sm:$0xff]
        %v613 = vld [vmem:[%s331 + $0x8c0] sm:$0xff]
        %v614 = vld [vmem:[%s331 + $0x8c8] sm:$0xff]
        %v615 = vld [vmem:[%s331 + $0x8d0] sm:$0xff]
        %v616 = vld [vmem:[%s331 + $0x8d8] sm:$0xff]
        %v617 = vld [vmem:[%s331 + $0x8e0] sm:$0xff]
        %v618 = vld [vmem:[%s331 + $0x8e8] sm:$0xff]
        %v619 = vld [vmem:[%s331 + $0x8f0] sm:$0xff]
        %v620 = vld [vmem:[%s331 + $0x8f8] sm:$0xff]
        %v621 = vld [vmem:[%s331 + $0x900] sm:$0xff]
        %v622 = vld [vmem:[%s331 + $0x908] sm:$0xff]
        %v623 = vld [vmem:[%s331 + $0x910] sm:$0xff]
        %v624 = vld [vmem:[%s331 + $0x918] sm:$0xff]
        %v625 = vld [vmem:[%s331 + $0x920] sm:$0xff]
        %v626 = vld [vmem:[%s331 + $0x928] sm:$0xff]
        %v627 = vld [vmem:[%s331 + $0x930] sm:$0xff]
        %v628 = vld [vmem:[%s331 + $0x938] sm:$0xff]
        %v629 = vld [vmem:[%s331 + $0x940] sm:$0xff]
        %v630 = vld [vmem:[%s331 + $0x948] sm:$0xff]
        %v631 = vld [vmem:[%s331 + $0x950] sm:$0xff]
        %v632 = vld [vmem:[%s331 + $0x958] sm:$0xff]
        %v633 = vld [vmem:[%s331 + $0x960] sm:$0xff]
        %v634 = vld [vmem:[%s331 + $0x968] sm:$0xff]
        %v635 = vld [vmem:[%s331 + $0x970] sm:$0xff]
        %v636 = vld [vmem:[%s331 + $0x978] sm:$0xff]
        %v637 = vld [vmem:[%s331 + $0x980] sm:$0xff]
        %v638 = vld [vmem:[%s331 + $0x988] sm:$0xff]
        %v639 = vld [vmem:[%s331 + $0x990] sm:$0xff]
        %v640 = vld [vmem:[%s331 + $0x998] sm:$0xff]
        %v641 = vld [vmem:[%s331 + $0x9a0] sm:$0xff]
        %v642 = vld [vmem:[%s331 + $0x9a8] sm:$0xff]
        %v643 = vld [vmem:[%s331 + $0x9b0] sm:$0xff]
        %v644 = vld [vmem:[%s331 + $0x9b8] sm:$0xff]
        %v645 = vld [vmem:[%s331 + $0x9c0] sm:$0xff]
        %v646 = vld [vmem:[%s331 + $0x9c8] sm:$0xff]
        %v647 = vld [vmem:[%s331 + $0x9d0] sm:$0xff]
        %v648 = vld [vmem:[%s331 + $0x9d8] sm:$0xff]
        %v649 = vld [vmem:[%s331 + $0x9e0] sm:$0xff]
        %v650 = vld [vmem:[%s331 + $0x9e8] sm:$0xff]
        %v651 = vld [vmem:[%s331 + $0x9f0] sm:$0xff]
        %v652 = vld [vmem:[%s331 + $0x9f8] sm:$0xff]
        %v653 = vld [vmem:[%s1] sm:$0xff]
        %v654 = vld [vmem:[%s1 + $0x8] sm:$0xff]
        %v655 = vld [vmem:[%s1 + $0x10] sm:$0xff]
        %v656 = vld [vmem:[%s1 + $0x18] sm:$0xff]
        %v657 = vld [vmem:[%s2] sm:$0x1]
        %v659 = vlaneseq
        %v660 = vshrl.u32 %v659, 7
        %v661 = vsub.s32 0, %v660
        %v662 = vrot.slane %v657, %v661
        %vm664 = vcmask 261120
        %v666 = vsel %vm664, %v333, 0
        %v669 = vsel %vm664, %v334, 0
        %v672 = vsel %vm664, %v335, 0
        %v675 = vsel %vm664, %v336, 0
        %v678 = vsel %vm664, %v337, 0
        %v681 = vsel %vm664, %v338, 0
        %v684 = vsel %vm664, %v339, 0
        %v687 = vsel %vm664, %v340, 0
        %v690 = vsel %vm664, %v341, 0
        %v693 = vsel %vm664, %v342, 0
        %v696 = vsel %vm664, %v343, 0
        %v699 = vsel %vm664, %v344, 0
        %v702 = vsel %vm664, %v345, 0
        %v705 = vsel %vm664, %v346, 0
        %v708 = vsel %vm664, %v347, 0
        %v711 = vsel %vm664, %v348, 0
        %v714 = vsel %vm664, %v349, 0
        %v717 = vsel %vm664, %v350, 0
        %v720 = vsel %vm664, %v351, 0
        %v723 = vsel %vm664, %v352, 0
        %v726 = vsel %vm664, %v353, 0
        %v729 = vsel %vm664, %v354, 0
        %v732 = vsel %vm664, %v355, 0
        %v735 = vsel %vm664, %v356, 0
        %v738 = vsel %vm664, %v357, 0
        %v741 = vsel %vm664, %v358, 0
        %v744 = vsel %vm664, %v359, 0
        %v747 = vsel %vm664, %v360, 0
        %v750 = vsel %vm664, %v361, 0
        %v753 = vsel %vm664, %v362, 0
        %v756 = vsel %vm664, %v363, 0
        %v759 = vsel %vm664, %v364, 0
        %v762 = vsel %vm664, %v365, 0
        %v765 = vsel %vm664, %v366, 0
        %v768 = vsel %vm664, %v367, 0
        %v771 = vsel %vm664, %v368, 0
        %v774 = vsel %vm664, %v369, 0
        %v777 = vsel %vm664, %v370, 0
        %v780 = vsel %vm664, %v371, 0
        %v783 = vsel %vm664, %v372, 0
        %v786 = vsel %vm664, %v373, 0
        %v789 = vsel %vm664, %v374, 0
        %v792 = vsel %vm664, %v375, 0
        %v795 = vsel %vm664, %v376, 0
        %v798 = vsel %vm664, %v377, 0
        %v801 = vsel %vm664, %v378, 0
        %v804 = vsel %vm664, %v379, 0
        %v807 = vsel %vm664, %v380, 0
        %v810 = vsel %vm664, %v381, 0
        %v813 = vsel %vm664, %v382, 0
        %v816 = vsel %vm664, %v383, 0
        %v819 = vsel %vm664, %v384, 0
        %v822 = vsel %vm664, %v385, 0
        %v825 = vsel %vm664, %v386, 0
        %v828 = vsel %vm664, %v387, 0
        %v831 = vsel %vm664, %v388, 0
        %v834 = vsel %vm664, %v389, 0
        %v837 = vsel %vm664, %v390, 0
        %v840 = vsel %vm664, %v391, 0
        %v843 = vsel %vm664, %v392, 0
        %v846 = vsel %vm664, %v393, 0
        %v849 = vsel %vm664, %v394, 0
        %v852 = vsel %vm664, %v395, 0
        %v855 = vsel %vm664, %v396, 0
        %v858 = vsel %vm664, %v397, 0
        %v861 = vsel %vm664, %v398, 0
        %v864 = vsel %vm664, %v399, 0
        %v867 = vsel %vm664, %v400, 0
        %v870 = vsel %vm664, %v401, 0
        %v873 = vsel %vm664, %v402, 0
        %v876 = vsel %vm664, %v403, 0
        %v879 = vsel %vm664, %v404, 0
        %v882 = vsel %vm664, %v405, 0
        %v885 = vsel %vm664, %v406, 0
        %v888 = vsel %vm664, %v407, 0
        %v891 = vsel %vm664, %v408, 0
        %v894 = vsel %vm664, %v409, 0
        %v897 = vsel %vm664, %v410, 0
        %v900 = vsel %vm664, %v411, 0
        %v903 = vsel %vm664, %v412, 0
        %v906 = vsel %vm664, %v413, 0
        %v909 = vsel %vm664, %v414, 0
        %v912 = vsel %vm664, %v415, 0
        %v915 = vsel %vm664, %v416, 0
        %v918 = vsel %vm664, %v417, 0
        %v921 = vsel %vm664, %v418, 0
        %v924 = vsel %vm664, %v419, 0
        %v927 = vsel %vm664, %v420, 0
        %v930 = vsel %vm664, %v421, 0
        %v933 = vsel %vm664, %v422, 0
        %v936 = vsel %vm664, %v423, 0
        %v939 = vsel %vm664, %v424, 0
        %v942 = vsel %vm664, %v425, 0
        %v945 = vsel %vm664, %v426, 0
        %v948 = vsel %vm664, %v427, 0
        %v951 = vsel %vm664, %v428, 0
        %v954 = vsel %vm664, %v429, 0
        %v957 = vsel %vm664, %v430, 0
        %v960 = vsel %vm664, %v431, 0
        %v963 = vsel %vm664, %v432, 0
        %v966 = vsel %vm664, %v433, 0
        %v969 = vsel %vm664, %v434, 0
        %v972 = vsel %vm664, %v435, 0
        %v975 = vsel %vm664, %v436, 0
        %v978 = vsel %vm664, %v437, 0
        %v981 = vsel %vm664, %v438, 0
        %v984 = vsel %vm664, %v439, 0
        %v987 = vsel %vm664, %v440, 0
        %v990 = vsel %vm664, %v441, 0
        %v993 = vsel %vm664, %v442, 0
        %v996 = vsel %vm664, %v443, 0
        %v999 = vsel %vm664, %v444, 0
        %v1002 = vsel %vm664, %v445, 0
        %v1005 = vsel %vm664, %v446, 0
        %v1008 = vsel %vm664, %v447, 0
        %v1011 = vsel %vm664, %v448, 0
        %v1014 = vsel %vm664, %v449, 0
        %v1017 = vsel %vm664, %v450, 0
        %v1020 = vsel %vm664, %v451, 0
        %v1023 = vsel %vm664, %v452, 0
        %v1026 = vsel %vm664, %v453, 0
        %v1029 = vsel %vm664, %v454, 0
        %v1032 = vsel %vm664, %v455, 0
        %v1035 = vsel %vm664, %v456, 0
        %v1038 = vsel %vm664, %v457, 0
        %v1041 = vsel %vm664, %v458, 0
        %v1044 = vsel %vm664, %v459, 0
        %v1047 = vsel %vm664, %v460, 0
        %v1050 = vsel %vm664, %v461, 0
        %v1053 = vsel %vm664, %v462, 0
        %v1056 = vsel %vm664, %v463, 0
        %v1059 = vsel %vm664, %v464, 0
        %v1062 = vsel %vm664, %v465, 0
        %v1065 = vsel %vm664, %v466, 0
        %v1068 = vsel %vm664, %v467, 0
        %v1071 = vsel %vm664, %v468, 0
        %v1074 = vsel %vm664, %v469, 0
        %v1077 = vsel %vm664, %v470, 0
        %v1080 = vsel %vm664, %v471, 0
        %v1083 = vsel %vm664, %v472, 0
        %v1086 = vsel %vm664, %v473, 0
        %v1089 = vsel %vm664, %v474, 0
        %v1092 = vsel %vm664, %v475, 0
        %v1095 = vsel %vm664, %v476, 0
        %v1098 = vsel %vm664, %v477, 0
        %v1101 = vsel %vm664, %v478, 0
        %v1104 = vsel %vm664, %v479, 0
        %v1107 = vsel %vm664, %v480, 0
        %v1110 = vsel %vm664, %v481, 0
        %v1113 = vsel %vm664, %v482, 0
        %v1116 = vsel %vm664, %v483, 0
        %v1119 = vsel %vm664, %v484, 0
        %v1122 = vsel %vm664, %v485, 0
        %v1125 = vsel %vm664, %v486, 0
        %v1128 = vsel %vm664, %v487, 0
        %v1131 = vsel %vm664, %v488, 0
        %v1134 = vsel %vm664, %v489, 0
        %v1137 = vsel %vm664, %v490, 0
        %v1140 = vsel %vm664, %v491, 0
        %v1143 = vsel %vm664, %v492, 0
        %v1146 = vsel %vm664, %v493, 0
        %v1149 = vsel %vm664, %v494, 0
        %v1152 = vsel %vm664, %v495, 0
        %v1155 = vsel %vm664, %v496, 0
        %v1158 = vsel %vm664, %v497, 0
        %v1161 = vsel %vm664, %v498, 0
        %v1164 = vsel %vm664, %v499, 0
        %v1167 = vsel %vm664, %v500, 0
        %v1170 = vsel %vm664, %v501, 0
        %v1173 = vsel %vm664, %v502, 0
        %v1176 = vsel %vm664, %v503, 0
        %v1179 = vsel %vm664, %v504, 0
        %v1182 = vsel %vm664, %v505, 0
        %v1185 = vsel %vm664, %v506, 0
        %v1188 = vsel %vm664, %v507, 0
        %v1191 = vsel %vm664, %v508, 0
        %v1194 = vsel %vm664, %v509, 0
        %v1197 = vsel %vm664, %v510, 0
        %v1200 = vsel %vm664, %v511, 0
        %v1203 = vsel %vm664, %v512, 0
        %v1206 = vsel %vm664, %v513, 0
        %v1209 = vsel %vm664, %v514, 0
        %v1212 = vsel %vm664, %v515, 0
        %v1215 = vsel %vm664, %v516, 0
        %v1218 = vsel %vm664, %v517, 0
        %v1221 = vsel %vm664, %v518, 0
        %v1224 = vsel %vm664, %v519, 0
        %v1227 = vsel %vm664, %v520, 0
        %v1230 = vsel %vm664, %v521, 0
        %v1233 = vsel %vm664, %v522, 0
        %v1236 = vsel %vm664, %v523, 0
        %v1239 = vsel %vm664, %v524, 0
        %v1242 = vsel %vm664, %v525, 0
        %v1245 = vsel %vm664, %v526, 0
        %v1248 = vsel %vm664, %v527, 0
        %v1251 = vsel %vm664, %v528, 0
        %v1254 = vsel %vm664, %v529, 0
        %v1257 = vsel %vm664, %v530, 0
        %v1260 = vsel %vm664, %v531, 0
        %v1263 = vsel %vm664, %v532, 0
        %v1266 = vsel %vm664, %v533, 0
        %v1269 = vsel %vm664, %v534, 0
        %v1272 = vsel %vm664, %v535, 0
        %v1275 = vsel %vm664, %v536, 0
        %v1278 = vsel %vm664, %v537, 0
        %v1281 = vsel %vm664, %v538, 0
        %v1284 = vsel %vm664, %v539, 0
        %v1287 = vsel %vm664, %v540, 0
        %v1290 = vsel %vm664, %v541, 0
        %v1293 = vsel %vm664, %v542, 0
        %v1296 = vsel %vm664, %v543, 0
        %v1299 = vsel %vm664, %v544, 0
        %v1302 = vsel %vm664, %v545, 0
        %v1305 = vsel %vm664, %v546, 0
        %v1308 = vsel %vm664, %v547, 0
        %v1311 = vsel %vm664, %v548, 0
        %v1314 = vsel %vm664, %v549, 0
        %v1317 = vsel %vm664, %v550, 0
        %v1320 = vsel %vm664, %v551, 0
        %v1323 = vsel %vm664, %v552, 0
        %v1326 = vsel %vm664, %v553, 0
        %v1329 = vsel %vm664, %v554, 0
        %v1332 = vsel %vm664, %v555, 0
        %v1335 = vsel %vm664, %v556, 0
        %v1338 = vsel %vm664, %v557, 0
        %v1341 = vsel %vm664, %v558, 0
        %v1344 = vsel %vm664, %v559, 0
        %v1347 = vsel %vm664, %v560, 0
        %v1350 = vsel %vm664, %v561, 0
        %v1353 = vsel %vm664, %v562, 0
        %v1356 = vsel %vm664, %v563, 0
        %v1359 = vsel %vm664, %v564, 0
        %v1362 = vsel %vm664, %v565, 0
        %v1365 = vsel %vm664, %v566, 0
        %v1368 = vsel %vm664, %v567, 0
        %v1371 = vsel %vm664, %v568, 0
        %v1374 = vsel %vm664, %v569, 0
        %v1377 = vsel %vm664, %v570, 0
        %v1380 = vsel %vm664, %v571, 0
        %v1383 = vsel %vm664, %v572, 0
        %v1386 = vsel %vm664, %v573, 0
        %v1389 = vsel %vm664, %v574, 0
        %v1392 = vsel %vm664, %v575, 0
        %v1395 = vsel %vm664, %v576, 0
        %v1398 = vsel %vm664, %v577, 0
        %v1401 = vsel %vm664, %v578, 0
        %v1404 = vsel %vm664, %v579, 0
        %v1407 = vsel %vm664, %v580, 0
        %v1410 = vsel %vm664, %v581, 0
        %v1413 = vsel %vm664, %v582, 0
        %v1416 = vsel %vm664, %v583, 0
        %v1419 = vsel %vm664, %v584, 0
        %v1422 = vsel %vm664, %v585, 0
        %v1425 = vsel %vm664, %v586, 0
        %v1428 = vsel %vm664, %v587, 0
        %v1431 = vsel %vm664, %v588, 0
        %v1434 = vsel %vm664, %v589, 0
        %v1437 = vsel %vm664, %v590, 0
        %v1440 = vsel %vm664, %v591, 0
        %v1443 = vsel %vm664, %v592, 0
        %v1446 = vsel %vm664, %v593, 0
        %v1449 = vsel %vm664, %v594, 0
        %v1452 = vsel %vm664, %v595, 0
        %v1455 = vsel %vm664, %v596, 0
        %v1458 = vsel %vm664, %v597, 0
        %v1461 = vsel %vm664, %v598, 0
        %v1464 = vsel %vm664, %v599, 0
        %v1467 = vsel %vm664, %v600, 0
        %v1470 = vsel %vm664, %v601, 0
        %v1473 = vsel %vm664, %v602, 0
        %v1476 = vsel %vm664, %v603, 0
        %v1479 = vsel %vm664, %v604, 0
        %v1482 = vsel %vm664, %v605, 0
        %v1485 = vsel %vm664, %v606, 0
        %v1488 = vsel %vm664, %v607, 0
        %v1491 = vsel %vm664, %v608, 0
        %v1494 = vsel %vm664, %v609, 0
        %v1497 = vsel %vm664, %v610, 0
        %v1500 = vsel %vm664, %v611, 0
        %v1503 = vsel %vm664, %v612, 0
        %v1506 = vsel %vm664, %v613, 0
        %v1509 = vsel %vm664, %v614, 0
        %v1512 = vsel %vm664, %v615, 0
        %v1515 = vsel %vm664, %v616, 0
        %v1518 = vsel %vm664, %v617, 0
        %v1521 = vsel %vm664, %v618, 0
        %v1524 = vsel %vm664, %v619, 0
        %v1527 = vsel %vm664, %v620, 0
        %v1530 = vsel %vm664, %v621, 0
        %v1533 = vsel %vm664, %v622, 0
        %v1536 = vsel %vm664, %v623, 0
        %v1539 = vsel %vm664, %v624, 0
        %v1542 = vsel %vm664, %v625, 0
        %v1545 = vsel %vm664, %v626, 0
        %v1548 = vsel %vm664, %v627, 0
        %v1551 = vsel %vm664, %v628, 0
        %v1554 = vsel %vm664, %v629, 0
        %v1557 = vsel %vm664, %v630, 0
        %v1560 = vsel %vm664, %v631, 0
        %v1563 = vsel %vm664, %v632, 0
        %v1566 = vsel %vm664, %v633, 0
        %v1569 = vsel %vm664, %v634, 0
        %v1572 = vsel %vm664, %v635, 0
        %v1575 = vsel %vm664, %v636, 0
        %v1578 = vsel %vm664, %v637, 0
        %v1581 = vsel %vm664, %v638, 0
        %v1584 = vsel %vm664, %v639, 0
        %v1587 = vsel %vm664, %v640, 0
        %v1590 = vsel %vm664, %v641, 0
        %v1593 = vsel %vm664, %v642, 0
        %v1596 = vsel %vm664, %v643, 0
        %v1599 = vsel %vm664, %v644, 0
        %v1602 = vsel %vm664, %v645, 0
        %v1605 = vsel %vm664, %v646, 0
        %v1608 = vsel %vm664, %v647, 0
        %v1611 = vsel %vm664, %v648, 0
        %v1614 = vsel %vm664, %v649, 0
        %v1617 = vsel %vm664, %v650, 0
        %v1620 = vsel %vm664, %v651, 0
        %v1623 = vsel %vm664, %v652, 0
        %1625 = vmatprep.subr.mxu0 0.0
        %1626 = vmatpush1.msra.mxu0 %v653
        %1627 = vmatprep.subr.mxu0 0.0
        %1628 = vmatpush1.msra.mxu0 %v654
        %1629 = vmatprep.subr.mxu0 0.0
        %1630 = vmatpush1.msra.mxu0 %v655
        %1631 = vmatprep.subr.mxu0 0.0
        %1632 = vmatpush1.msra.mxu0 %v656
        %1633 = vmatprep.subr.mxu0 0.0
        %1634 = vmatpush1.msra.mxu0 0.0
        %1635 = vmatprep.subr.mxu0 0.0
        %1636 = vmatpush1.msra.mxu0 0.0
        %1637 = vmatprep.subr.mxu0 0.0
        %1638 = vmatpush1.msra.mxu0 0.0
        %1639 = vmatprep.subr.mxu0 0.0
        %1640 = vmatpush1.msra.mxu0 0.0
        %1641 = vmatprep.subr.mxu0 0.0
        %1642 = vmatpush1.msra.mxu0 0.0
        %1643 = vmatprep.subr.mxu0 0.0
        %1644 = vmatpush1.msra.mxu0 0.0
        %1645 = vmatprep.subr.mxu0 0.0
        %1646 = vmatpush1.msra.mxu0 0.0
        %1647 = vmatprep.subr.mxu0 0.0
        %1648 = vmatpush1.msra.mxu0 0.0
        %1649 = vmatprep.subr.mxu0 0.0
        %1650 = vmatpush1.msra.mxu0 0.0
        %1651 = vmatprep.subr.mxu0 0.0
        %1652 = vmatpush1.msra.mxu0 0.0
        %1653 = vmatprep.subr.mxu0 0.0
        %1654 = vmatpush1.msra.mxu0 0.0
        %1655 = vmatprep.subr.mxu0 0.0
        %1656 = vmatpush1.msra.mxu0 0.0
        %1657 = vmatprep.subr.mxu0 0.0
        %1658 = vmatpush1.msra.mxu0 0.0
        %1659 = vmatprep.subr.mxu0 0.0
        %1660 = vmatpush1.msra.mxu0 0.0
        %1661 = vmatprep.subr.mxu0 0.0
        %1662 = vmatpush1.msra.mxu0 0.0
        %1663 = vmatprep.subr.mxu0 0.0
        %1664 = vmatpush1.msra.mxu0 0.0
        %1665 = vmatprep.subr.mxu0 0.0
        %1666 = vmatpush1.msra.mxu0 0.0
        %1667 = vmatprep.subr.mxu0 0.0
        %1668 = vmatpush1.msra.mxu0 0.0
        %1669 = vmatprep.subr.mxu0 0.0
        %1670 = vmatpush1.msra.mxu0 0.0
        %1671 = vmatprep.subr.mxu0 0.0
        %1672 = vmatpush1.msra.mxu0 0.0
        %1673 = vmatprep.subr.mxu0 0.0
        %1674 = vmatpush1.msra.mxu0 0.0
        %1675 = vmatprep.subr.mxu0 0.0
        %1676 = vmatpush1.msra.mxu0 0.0
        %1677 = vmatprep.subr.mxu0 0.0
        %1678 = vmatpush1.msra.mxu0 0.0
        %1679 = vmatprep.subr.mxu0 0.0
        %1680 = vmatpush1.msra.mxu0 0.0
        %1681 = vmatprep.subr.mxu0 0.0
        %1682 = vmatpush1.msra.mxu0 0.0
        %1683 = vmatprep.subr.mxu0 0.0
        %1684 = vmatpush1.msra.mxu0 0.0
        %1685 = vmatprep.subr.mxu0 0.0
        %1686 = vmatpush1.msra.mxu0 0.0
        %1687 = vmatprep.subr.mxu0 0.0
        %1688 = vmatpush1.msra.mxu0 0.0
        %1689 = vmatprep.mubr.f32.mxu0 0.0
        %1690 = vmatmul.mubr.f32.gmra.mrb[0].mxu0 %v666
        %v1691 = vpop.f32.mrb[0].mxu0
        %v1692 = vadd.f32 %v662, %v1691
        %v1693 = vpop.f32.mrb[0].mxu0
        %1694 = vmatprep.mubr.f32.mxu0 0.0
        %1695 = vmatmul.mubr.f32.gmra.mrb[0].mxu0 %v669
        %v1696 = vpop.f32.mrb[0].mxu0
        %v1697 = vadd.f32 %v662, %v1696
        %v1698 = vpop.f32.mrb[0].mxu0
        %1699 = vmatprep.mubr.f32.mxu0 0.0
        %1700 = vmatmul.mubr.f32.gmra.mrb[0].mxu0 %v672
        %v1701 = vpop.f32.mrb[0].mxu0
        %v1702 = vadd.f32 %v662, %v1701
        %v1703 = vpop.f32.mrb[0].mxu0
        %1704 = vmatprep.mubr.f32.mxu0 0.0
        %1705 = vmatmul.mubr.f32.gmra.mrb[0].mxu0 %v675
        %v1706 = vpop.f32.mrb[0].mxu0
        %v1707 = vadd.f32 %v662, %v1706
        %v1708 = vpop.f32.mrb[0].mxu0
        %1709 = vmatprep.mubr.f32.mxu0 0.0
        %1710 = vmatmul.mubr.f32.gmra.mrb[0].mxu0 %v678
        %v1711 = vpop.f32.mrb[0].mxu0
        %v1712 = vadd.f32 %v662, %v1711
        %v1713 = vpop.f32.mrb[0].mxu0
        %1714 = vmatprep.mubr.f32.mxu0 0.0
        %1715 = vmatmul.mubr.f32.gmra.mrb[0].mxu0 %v681
        %v1716 = vpop.f32.mrb[0].mxu0
        %v1717 = vadd.f32 %v662, %v1716
        %v1718 = vpop.f32.mrb[0].mxu0
        %1719 = vmatprep.mubr.f32.mxu0 0.0
        %1720 = vmatmul.mubr.f32.gmra.mrb[0].mxu0 %v684
        %v1721 = vpop.f32.mrb[0].mxu0
        %v1722 = vadd.f32 %v662, %v1721
        %v1723 = vpop.f32.mrb[0].mxu0
        %1724 = vmatprep.mubr.f32.mxu0 0.0
        %1725 = vmatmul.mubr.f32.gmra.mrb[0].mxu0 %v687
        %v1726 = vpop.f32.mrb[0].mxu0
        %v1727 = vadd.f32 %v662, %v1726
        %v1728 = vpop.f32.mrb[0].mxu0
        %1729 = vmatprep.mubr.f32.mxu0 0.0
        %1730 = vmatmul.mubr.f32.gmra.mrb[0].mxu0 %v690
        %v1731 = vpop.f32.mrb[0].mxu0
        %v1732 = vadd.f32 %v662, %v1731
        %v1733 = vpop.f32.mrb[0].mxu0
        %1734 = vmatprep.mubr.f32.mxu0 0.0
        %1735 = vmatmul.mubr.f32.gmra.mrb[0].mxu0 %v693
        %v1736 = vpop.f32.mrb[0].mxu0
        %v1737 = vadd.f32 %v662, %v1736
        %v1738 = vpop.f32.mrb[0].mxu0
        %1739 = vmatprep.mubr.f32.mxu0 0.0
        %1740 = vmatmul.mubr.f32.gmra.mrb[0].mxu0 %v696
        %v1741 = vpop.f32.mrb[0].mxu0
        %v1742 = vadd.f32 %v662, %v1741
        %v1743 = vpop.f32.mrb[0].mxu0
        %1744 = vmatprep.mubr.f32.mxu0 0.0
        %1745 = vmatmul.mubr.f32.gmra.mrb[0].mxu0 %v699
        %v1746 = vpop.f32.mrb[0].mxu0
        %v1747 = vadd.f32 %v662, %v1746
        %v1748 = vpop.f32.mrb[0].mxu0
        %1749 = vmatprep.mubr.f32.mxu0 0.0
        %1750 = vmatmul.mubr.f32.gmra.mrb[0].mxu0 %v702
        %v1751 = vpop.f32.mrb[0].mxu0
        %v1752 = vadd.f32 %v662, %v1751
        %v1753 = vpop.f32.mrb[0].mxu0
        %1754 = vmatprep.mubr.f32.mxu0 0.0
        %1755 = vmatmul.mubr.f32.gmra.mrb[0].mxu0 %v705
        %v1756 = vpop.f32.mrb[0].mxu0
        %v1757 = vadd.f32 %v662, %v1756
        %v1758 = vpop.f32.mrb[0].mxu0
        %1759 = vmatprep.mubr.f32.mxu0 0.0
        %1760 = vmatmul.mubr.f32.gmra.mrb[0].mxu0 %v708
        %v1761 = vpop.f32.mrb[0].mxu0
        %v1762 = vadd.f32 %v662, %v1761
        %v1763 = vpop.f32.mrb[0].mxu0
        %1764 = vmatprep.mubr.f32.mxu0 0.0
        %1765 = vmatmul.mubr.f32.gmra.mrb[0].mxu0 %v711
        %v1766 = vpop.f32.mrb[0].mxu0
        %v1767 = vadd.f32 %v662, %v1766
        %v1768 = vpop.f32.mrb[0].mxu0
        %1769 = vmatprep.mubr.f32.mxu0 0.0
        %1770 = vmatmul.mubr.f32.gmra.mrb[0].mxu0 %v714
        %v1771 = vpop.f32.mrb[0].mxu0
        %v1772 = vadd.f32 %v662, %v1771
        %v1773 = vpop.f32.mrb[0].mxu0
        %1774 = vmatprep.mubr.f32.mxu0 0.0
        %1775 = vmatmul.mubr.f32.gmra.mrb[0].mxu0 %v717
        %v1776 = vpop.f32.mrb[0].mxu0
        %v1777 = vadd.f32 %v662, %v1776
        %v1778 = vpop.f32.mrb[0].mxu0
        %1779 = vmatprep.mubr.f32.mxu0 0.0
        %1780 = vmatmul.mubr.f32.gmra.mrb[0].mxu0 %v720
        %v1781 = vpop.f32.mrb[0].mxu0
        %v1782 = vadd.f32 %v662, %v1781
        %v1783 = vpop.f32.mrb[0].mxu0
        %1784 = vmatprep.mubr.f32.mxu0 0.0
        %1785 = vmatmul.mubr.f32.gmra.mrb[0].mxu0 %v723
        %v1786 = vpop.f32.mrb[0].mxu0
        %v1787 = vadd.f32 %v662, %v1786
        %v1788 = vpop.f32.mrb[0].mxu0
        %1789 = vmatprep.mubr.f32.mxu0 0.0
        %1790 = vmatmul.mubr.f32.gmra.mrb[0].mxu0 %v726
        %v1791 = vpop.f32.mrb[0].mxu0
        %v1792 = vadd.f32 %v662, %v1791
        %v1793 = vpop.f32.mrb[0].mxu0
        %1794 = vmatprep.mubr.f32.mxu0 0.0
        %1795 = vmatmul.mubr.f32.gmra.mrb[0].mxu0 %v729
        %v1796 = vpop.f32.mrb[0].mxu0
        %v1797 = vadd.f32 %v662, %v1796
        %v1798 = vpop.f32.mrb[0].mxu0
        %1799 = vmatprep.mubr.f32.mxu0 0.0
        %1800 = vmatmul.mubr.f32.gmra.mrb[0].mxu0 %v732
        %v1801 = vpop.f32.mrb[0].mxu0
        %v1802 = vadd.f32 %v662, %v1801
        %v1803 = vpop.f32.mrb[0].mxu0
        %1804 = vmatprep.mubr.f32.mxu0 0.0
        %1805 = vmatmul.mubr.f32.gmra.mrb[0].mxu0 %v735
        %v1806 = vpop.f32.mrb[0].mxu0
        %v1807 = vadd.f32 %v662, %v1806
        %v1808 = vpop.f32.mrb[0].mxu0
        %1809 = vmatprep.mubr.f32.mxu0 0.0
        %1810 = vmatmul.mubr.f32.gmra.mrb[0].mxu0 %v738
        %v1811 = vpop.f32.mrb[0].mxu0
        %v1812 = vadd.f32 %v662, %v1811
        %v1813 = vpop.f32.mrb[0].mxu0
        %1814 = vmatprep.mubr.f32.mxu0 0.0
        %1815 = vmatmul.mubr.f32.gmra.mrb[0].mxu0 %v741
        %v1816 = vpop.f32.mrb[0].mxu0
        %v1817 = vadd.f32 %v662, %v1816
        %v1818 = vpop.f32.mrb[0].mxu0
        %1819 = vmatprep.mubr.f32.mxu0 0.0
        %1820 = vmatmul.mubr.f32.gmra.mrb[0].mxu0 %v744
        %v1821 = vpop.f32.mrb[0].mxu0
        %v1822 = vadd.f32 %v662, %v1821
        %v1823 = vpop.f32.mrb[0].mxu0
        %1824 = vmatprep.mubr.f32.mxu0 0.0
        %1825 = vmatmul.mubr.f32.gmra.mrb[0].mxu0 %v747
        %v1826 = vpop.f32.mrb[0].mxu0
        %v1827 = vadd.f32 %v662, %v1826
        %v1828 = vpop.f32.mrb[0].mxu0
        %1829 = vmatprep.mubr.f32.mxu0 0.0
        %1830 = vmatmul.mubr.f32.gmra.mrb[0].mxu0 %v750
        %v1831 = vpop.f32.mrb[0].mxu0
        %v1832 = vadd.f32 %v662, %v1831
        %v1833 = vpop.f32.mrb[0].mxu0
        %1834 = vmatprep.mubr.f32.mxu0 0.0
        %1835 = vmatmul.mubr.f32.gmra.mrb[0].mxu0 %v753
        %v1836 = vpop.f32.mrb[0].mxu0
        %v1837 = vadd.f32 %v662, %v1836
        %v1838 = vpop.f32.mrb[0].mxu0
        %1839 = vmatprep.mubr.f32.mxu0 0.0
        %1840 = vmatmul.mubr.f32.gmra.mrb[0].mxu0 %v756
        %v1841 = vpop.f32.mrb[0].mxu0
        %v1842 = vadd.f32 %v662, %v1841
        %v1843 = vpop.f32.mrb[0].mxu0
        %1844 = vmatprep.mubr.f32.mxu0 0.0
        %1845 = vmatmul.mubr.f32.gmra.mrb[0].mxu0 %v759
        %v1846 = vpop.f32.mrb[0].mxu0
        %v1847 = vadd.f32 %v662, %v1846
        %v1848 = vpop.f32.mrb[0].mxu0
        %1849 = vmatprep.mubr.f32.mxu0 0.0
        %1850 = vmatmul.mubr.f32.gmra.mrb[0].mxu0 %v762
        %v1851 = vpop.f32.mrb[0].mxu0
        %v1852 = vadd.f32 %v662, %v1851
        %v1853 = vpop.f32.mrb[0].mxu0
        %1854 = vmatprep.mubr.f32.mxu0 0.0
        %1855 = vmatmul.mubr.f32.gmra.mrb[0].mxu0 %v765
        %v1856 = vpop.f32.mrb[0].mxu0
        %v1857 = vadd.f32 %v662, %v1856
        %v1858 = vpop.f32.mrb[0].mxu0
        %1859 = vmatprep.mubr.f32.mxu0 0.0
        %1860 = vmatmul.mubr.f32.gmra.mrb[0].mxu0 %v768
        %v1861 = vpop.f32.mrb[0].mxu0
        %v1862 = vadd.f32 %v662, %v1861
        %v1863 = vpop.f32.mrb[0].mxu0
        %1864 = vmatprep.mubr.f32.mxu0 0.0
        %1865 = vmatmul.mubr.f32.gmra.mrb[0].mxu0 %v771
        %v1866 = vpop.f32.mrb[0].mxu0
        %v1867 = vadd.f32 %v662, %v1866
        %v1868 = vpop.f32.mrb[0].mxu0
        %1869 = vmatprep.mubr.f32.mxu0 0.0
        %1870 = vmatmul.mubr.f32.gmra.mrb[0].mxu0 %v774
        %v1871 = vpop.f32.mrb[0].mxu0
        %v1872 = vadd.f32 %v662, %v1871
        %v1873 = vpop.f32.mrb[0].mxu0
        %1874 = vmatprep.mubr.f32.mxu0 0.0
        %1875 = vmatmul.mubr.f32.gmra.mrb[0].mxu0 %v777
        %v1876 = vpop.f32.mrb[0].mxu0
        %v1877 = vadd.f32 %v662, %v1876
        %v1878 = vpop.f32.mrb[0].mxu0
        %1879 = vmatprep.mubr.f32.mxu0 0.0
        %1880 = vmatmul.mubr.f32.gmra.mrb[0].mxu0 %v780
        %v1881 = vpop.f32.mrb[0].mxu0
        %v1882 = vadd.f32 %v662, %v1881
        %v1883 = vpop.f32.mrb[0].mxu0
        %1884 = vmatprep.mubr.f32.mxu0 0.0
        %1885 = vmatmul.mubr.f32.gmra.mrb[0].mxu0 %v783
        %v1886 = vpop.f32.mrb[0].mxu0
        %v1887 = vadd.f32 %v662, %v1886
        %v1888 = vpop.f32.mrb[0].mxu0
        %1889 = vmatprep.mubr.f32.mxu0 0.0
        %1890 = vmatmul.mubr.f32.gmra.mrb[0].mxu0 %v786
        %v1891 = vpop.f32.mrb[0].mxu0
        %v1892 = vadd.f32 %v662, %v1891
        %v1893 = vpop.f32.mrb[0].mxu0
        %1894 = vmatprep.mubr.f32.mxu0 0.0
        %1895 = vmatmul.mubr.f32.gmra.mrb[0].mxu0 %v789
        %v1896 = vpop.f32.mrb[0].mxu0
        %v1897 = vadd.f32 %v662, %v1896
        %v1898 = vpop.f32.mrb[0].mxu0
        %1899 = vmatprep.mubr.f32.mxu0 0.0
        %1900 = vmatmul.mubr.f32.gmra.mrb[0].mxu0 %v792
        %v1901 = vpop.f32.mrb[0].mxu0
        %v1902 = vadd.f32 %v662, %v1901
        %v1903 = vpop.f32.mrb[0].mxu0
        %1904 = vmatprep.mubr.f32.mxu0 0.0
        %1905 = vmatmul.mubr.f32.gmra.mrb[0].mxu0 %v795
        %v1906 = vpop.f32.mrb[0].mxu0
        %v1907 = vadd.f32 %v662, %v1906
        %v1908 = vpop.f32.mrb[0].mxu0
        %1909 = vmatprep.mubr.f32.mxu0 0.0
        %1910 = vmatmul.mubr.f32.gmra.mrb[0].mxu0 %v798
        %v1911 = vpop.f32.mrb[0].mxu0
        %v1912 = vadd.f32 %v662, %v1911
        %v1913 = vpop.f32.mrb[0].mxu0
        %1914 = vmatprep.mubr.f32.mxu0 0.0
        %1915 = vmatmul.mubr.f32.gmra.mrb[0].mxu0 %v801
        %v1916 = vpop.f32.mrb[0].mxu0
        %v1917 = vadd.f32 %v662, %v1916
        %v1918 = vpop.f32.mrb[0].mxu0
        %1919 = vmatprep.mubr.f32.mxu0 0.0
        %1920 = vmatmul.mubr.f32.gmra.mrb[0].mxu0 %v804
        %v1921 = vpop.f32.mrb[0].mxu0
        %v1922 = vadd.f32 %v662, %v1921
        %v1923 = vpop.f32.mrb[0].mxu0
        %1924 = vmatprep.mubr.f32.mxu0 0.0
        %1925 = vmatmul.mubr.f32.gmra.mrb[0].mxu0 %v807
        %v1926 = vpop.f32.mrb[0].mxu0
        %v1927 = vadd.f32 %v662, %v1926
        %v1928 = vpop.f32.mrb[0].mxu0
        %1929 = vmatprep.mubr.f32.mxu0 0.0
        %1930 = vmatmul.mubr.f32.gmra.mrb[0].mxu0 %v810
        %v1931 = vpop.f32.mrb[0].mxu0
        %v1932 = vadd.f32 %v662, %v1931
        %v1933 = vpop.f32.mrb[0].mxu0
        %1934 = vmatprep.mubr.f32.mxu0 0.0
        %1935 = vmatmul.mubr.f32.gmra.mrb[0].mxu0 %v813
        %v1936 = vpop.f32.mrb[0].mxu0
        %v1937 = vadd.f32 %v662, %v1936
        %v1938 = vpop.f32.mrb[0].mxu0
        %1939 = vmatprep.mubr.f32.mxu0 0.0
        %1940 = vmatmul.mubr.f32.gmra.mrb[0].mxu0 %v816
        %v1941 = vpop.f32.mrb[0].mxu0
        %v1942 = vadd.f32 %v662, %v1941
        %v1943 = vpop.f32.mrb[0].mxu0
        %1944 = vmatprep.mubr.f32.mxu0 0.0
        %1945 = vmatmul.mubr.f32.gmra.mrb[0].mxu0 %v819
        %v1946 = vpop.f32.mrb[0].mxu0
        %v1947 = vadd.f32 %v662, %v1946
        %v1948 = vpop.f32.mrb[0].mxu0
        %1949 = vmatprep.mubr.f32.mxu0 0.0
        %1950 = vmatmul.mubr.f32.gmra.mrb[0].mxu0 %v822
        %v1951 = vpop.f32.mrb[0].mxu0
        %v1952 = vadd.f32 %v662, %v1951
        %v1953 = vpop.f32.mrb[0].mxu0
        %1954 = vmatprep.mubr.f32.mxu0 0.0
        %1955 = vmatmul.mubr.f32.gmra.mrb[0].mxu0 %v825
        %v1956 = vpop.f32.mrb[0].mxu0
        %v1957 = vadd.f32 %v662, %v1956
        %v1958 = vpop.f32.mrb[0].mxu0
        %1959 = vmatprep.mubr.f32.mxu0 0.0
        %1960 = vmatmul.mubr.f32.gmra.mrb[0].mxu0 %v828
        %v1961 = vpop.f32.mrb[0].mxu0
        %v1962 = vadd.f32 %v662, %v1961
        %v1963 = vpop.f32.mrb[0].mxu0
        %1964 = vmatprep.mubr.f32.mxu0 0.0
        %1965 = vmatmul.mubr.f32.gmra.mrb[0].mxu0 %v831
        %v1966 = vpop.f32.mrb[0].mxu0
        %v1967 = vadd.f32 %v662, %v1966
        %v1968 = vpop.f32.mrb[0].mxu0
        %1969 = vmatprep.mubr.f32.mxu0 0.0
        %1970 = vmatmul.mubr.f32.gmra.mrb[0].mxu0 %v834
        %v1971 = vpop.f32.mrb[0].mxu0
        %v1972 = vadd.f32 %v662, %v1971
        %v1973 = vpop.f32.mrb[0].mxu0
        %1974 = vmatprep.mubr.f32.mxu0 0.0
        %1975 = vmatmul.mubr.f32.gmra.mrb[0].mxu0 %v837
        %v1976 = vpop.f32.mrb[0].mxu0
        %v1977 = vadd.f32 %v662, %v1976
        %v1978 = vpop.f32.mrb[0].mxu0
        %1979 = vmatprep.mubr.f32.mxu0 0.0
        %1980 = vmatmul.mubr.f32.gmra.mrb[0].mxu0 %v840
        %v1981 = vpop.f32.mrb[0].mxu0
        %v1982 = vadd.f32 %v662, %v1981
        %v1983 = vpop.f32.mrb[0].mxu0
        %1984 = vmatprep.mubr.f32.mxu0 0.0
        %1985 = vmatmul.mubr.f32.gmra.mrb[0].mxu0 %v843
        %v1986 = vpop.f32.mrb[0].mxu0
        %v1987 = vadd.f32 %v662, %v1986
        %v1988 = vpop.f32.mrb[0].mxu0
        %1989 = vmatprep.mubr.f32.mxu0 0.0
        %1990 = vmatmul.mubr.f32.gmra.mrb[0].mxu0 %v846
        %v1991 = vpop.f32.mrb[0].mxu0
        %v1992 = vadd.f32 %v662, %v1991
        %v1993 = vpop.f32.mrb[0].mxu0
        %1994 = vmatprep.mubr.f32.mxu0 0.0
        %1995 = vmatmul.mubr.f32.gmra.mrb[0].mxu0 %v849
        %v1996 = vpop.f32.mrb[0].mxu0
        %v1997 = vadd.f32 %v662, %v1996
        %v1998 = vpop.f32.mrb[0].mxu0
        %1999 = vmatprep.mubr.f32.mxu0 0.0
        %2000 = vmatmul.mubr.f32.gmra.mrb[0].mxu0 %v852
        %v2001 = vpop.f32.mrb[0].mxu0
        %v2002 = vadd.f32 %v662, %v2001
        %v2003 = vpop.f32.mrb[0].mxu0
        %2004 = vmatprep.mubr.f32.mxu0 0.0
        %2005 = vmatmul.mubr.f32.gmra.mrb[0].mxu0 %v855
        %v2006 = vpop.f32.mrb[0].mxu0
        %v2007 = vadd.f32 %v662, %v2006
        %v2008 = vpop.f32.mrb[0].mxu0
        %2009 = vmatprep.mubr.f32.mxu0 0.0
        %2010 = vmatmul.mubr.f32.gmra.mrb[0].mxu0 %v858
        %v2011 = vpop.f32.mrb[0].mxu0
        %v2012 = vadd.f32 %v662, %v2011
        %v2013 = vpop.f32.mrb[0].mxu0
        %2014 = vmatprep.mubr.f32.mxu0 0.0
        %2015 = vmatmul.mubr.f32.gmra.mrb[0].mxu0 %v861
        %v2016 = vpop.f32.mrb[0].mxu0
        %v2017 = vadd.f32 %v662, %v2016
        %v2018 = vpop.f32.mrb[0].mxu0
        %2019 = vmatprep.mubr.f32.mxu0 0.0
        %2020 = vmatmul.mubr.f32.gmra.mrb[0].mxu0 %v864
        %v2021 = vpop.f32.mrb[0].mxu0
        %v2022 = vadd.f32 %v662, %v2021
        %v2023 = vpop.f32.mrb[0].mxu0
        %2024 = vmatprep.mubr.f32.mxu0 0.0
        %2025 = vmatmul.mubr.f32.gmra.mrb[0].mxu0 %v867
        %v2026 = vpop.f32.mrb[0].mxu0
        %v2027 = vadd.f32 %v662, %v2026
        %v2028 = vpop.f32.mrb[0].mxu0
        %2029 = vmatprep.mubr.f32.mxu0 0.0
        %2030 = vmatmul.mubr.f32.gmra.mrb[0].mxu0 %v870
        %v2031 = vpop.f32.mrb[0].mxu0
        %v2032 = vadd.f32 %v662, %v2031
        %v2033 = vpop.f32.mrb[0].mxu0
        %2034 = vmatprep.mubr.f32.mxu0 0.0
        %2035 = vmatmul.mubr.f32.gmra.mrb[0].mxu0 %v873
        %v2036 = vpop.f32.mrb[0].mxu0
        %v2037 = vadd.f32 %v662, %v2036
        %v2038 = vpop.f32.mrb[0].mxu0
        %2039 = vmatprep.mubr.f32.mxu0 0.0
        %2040 = vmatmul.mubr.f32.gmra.mrb[0].mxu0 %v876
        %v2041 = vpop.f32.mrb[0].mxu0
        %v2042 = vadd.f32 %v662, %v2041
        %v2043 = vpop.f32.mrb[0].mxu0
        %2044 = vmatprep.mubr.f32.mxu0 0.0
        %2045 = vmatmul.mubr.f32.gmra.mrb[0].mxu0 %v879
        %v2046 = vpop.f32.mrb[0].mxu0
        %v2047 = vadd.f32 %v662, %v2046
        %v2048 = vpop.f32.mrb[0].mxu0
        %2049 = vmatprep.mubr.f32.mxu0 0.0
        %2050 = vmatmul.mubr.f32.gmra.mrb[0].mxu0 %v882
        %v2051 = vpop.f32.mrb[0].mxu0
        %v2052 = vadd.f32 %v662, %v2051
        %v2053 = vpop.f32.mrb[0].mxu0
        %2054 = vmatprep.mubr.f32.mxu0 0.0
        %2055 = vmatmul.mubr.f32.gmra.mrb[0].mxu0 %v885
        %v2056 = vpop.f32.mrb[0].mxu0
        %v2057 = vadd.f32 %v662, %v2056
        %v2058 = vpop.f32.mrb[0].mxu0
        %2059 = vmatprep.mubr.f32.mxu0 0.0
        %2060 = vmatmul.mubr.f32.gmra.mrb[0].mxu0 %v888
        %v2061 = vpop.f32.mrb[0].mxu0
        %v2062 = vadd.f32 %v662, %v2061
        %v2063 = vpop.f32.mrb[0].mxu0
        %2064 = vmatprep.mubr.f32.mxu0 0.0
        %2065 = vmatmul.mubr.f32.gmra.mrb[0].mxu0 %v891
        %v2066 = vpop.f32.mrb[0].mxu0
        %v2067 = vadd.f32 %v662, %v2066
        %v2068 = vpop.f32.mrb[0].mxu0
        %2069 = vmatprep.mubr.f32.mxu0 0.0
        %2070 = vmatmul.mubr.f32.gmra.mrb[0].mxu0 %v894
        %v2071 = vpop.f32.mrb[0].mxu0
        %v2072 = vadd.f32 %v662, %v2071
        %v2073 = vpop.f32.mrb[0].mxu0
        %2074 = vmatprep.mubr.f32.mxu0 0.0
        %2075 = vmatmul.mubr.f32.gmra.mrb[0].mxu0 %v897
        %v2076 = vpop.f32.mrb[0].mxu0
        %v2077 = vadd.f32 %v662, %v2076
        %v2078 = vpop.f32.mrb[0].mxu0
        %2079 = vmatprep.mubr.f32.mxu0 0.0
        %2080 = vmatmul.mubr.f32.gmra.mrb[0].mxu0 %v900
        %v2081 = vpop.f32.mrb[0].mxu0
        %v2082 = vadd.f32 %v662, %v2081
        %v2083 = vpop.f32.mrb[0].mxu0
        %2084 = vmatprep.mubr.f32.mxu0 0.0
        %2085 = vmatmul.mubr.f32.gmra.mrb[0].mxu0 %v903
        %v2086 = vpop.f32.mrb[0].mxu0
        %v2087 = vadd.f32 %v662, %v2086
        %v2088 = vpop.f32.mrb[0].mxu0
        %2089 = vmatprep.mubr.f32.mxu0 0.0
        %2090 = vmatmul.mubr.f32.gmra.mrb[0].mxu0 %v906
        %v2091 = vpop.f32.mrb[0].mxu0
        %v2092 = vadd.f32 %v662, %v2091
        %v2093 = vpop.f32.mrb[0].mxu0
        %2094 = vmatprep.mubr.f32.mxu0 0.0
        %2095 = vmatmul.mubr.f32.gmra.mrb[0].mxu0 %v909
        %v2096 = vpop.f32.mrb[0].mxu0
        %v2097 = vadd.f32 %v662, %v2096
        %v2098 = vpop.f32.mrb[0].mxu0
        %2099 = vmatprep.mubr.f32.mxu0 0.0
        %2100 = vmatmul.mubr.f32.gmra.mrb[0].mxu0 %v912
        %v2101 = vpop.f32.mrb[0].mxu0
        %v2102 = vadd.f32 %v662, %v2101
        %v2103 = vpop.f32.mrb[0].mxu0
        %2104 = vmatprep.mubr.f32.mxu0 0.0
        %2105 = vmatmul.mubr.f32.gmra.mrb[0].mxu0 %v915
        %v2106 = vpop.f32.mrb[0].mxu0
        %v2107 = vadd.f32 %v662, %v2106
        %v2108 = vpop.f32.mrb[0].mxu0
        %2109 = vmatprep.mubr.f32.mxu0 0.0
        %2110 = vmatmul.mubr.f32.gmra.mrb[0].mxu0 %v918
        %v2111 = vpop.f32.mrb[0].mxu0
        %v2112 = vadd.f32 %v662, %v2111
        %v2113 = vpop.f32.mrb[0].mxu0
        %2114 = vmatprep.mubr.f32.mxu0 0.0
        %2115 = vmatmul.mubr.f32.gmra.mrb[0].mxu0 %v921
        %v2116 = vpop.f32.mrb[0].mxu0
        %v2117 = vadd.f32 %v662, %v2116
        %v2118 = vpop.f32.mrb[0].mxu0
        %2119 = vmatprep.mubr.f32.mxu0 0.0
        %2120 = vmatmul.mubr.f32.gmra.mrb[0].mxu0 %v924
        %v2121 = vpop.f32.mrb[0].mxu0
        %v2122 = vadd.f32 %v662, %v2121
        %v2123 = vpop.f32.mrb[0].mxu0
        %2124 = vmatprep.mubr.f32.mxu0 0.0
        %2125 = vmatmul.mubr.f32.gmra.mrb[0].mxu0 %v927
        %v2126 = vpop.f32.mrb[0].mxu0
        %v2127 = vadd.f32 %v662, %v2126
        %v2128 = vpop.f32.mrb[0].mxu0
        %2129 = vmatprep.mubr.f32.mxu0 0.0
        %2130 = vmatmul.mubr.f32.gmra.mrb[0].mxu0 %v930
        %v2131 = vpop.f32.mrb[0].mxu0
        %v2132 = vadd.f32 %v662, %v2131
        %v2133 = vpop.f32.mrb[0].mxu0
        %2134 = vmatprep.mubr.f32.mxu0 0.0
        %2135 = vmatmul.mubr.f32.gmra.mrb[0].mxu0 %v933
        %v2136 = vpop.f32.mrb[0].mxu0
        %v2137 = vadd.f32 %v662, %v2136
        %v2138 = vpop.f32.mrb[0].mxu0
        %2139 = vmatprep.mubr.f32.mxu0 0.0
        %2140 = vmatmul.mubr.f32.gmra.mrb[0].mxu0 %v936
        %v2141 = vpop.f32.mrb[0].mxu0
        %v2142 = vadd.f32 %v662, %v2141
        %v2143 = vpop.f32.mrb[0].mxu0
        %2144 = vmatprep.mubr.f32.mxu0 0.0
        %2145 = vmatmul.mubr.f32.gmra.mrb[0].mxu0 %v939
        %v2146 = vpop.f32.mrb[0].mxu0
        %v2147 = vadd.f32 %v662, %v2146
        %v2148 = vpop.f32.mrb[0].mxu0
        %2149 = vmatprep.mubr.f32.mxu0 0.0
        %2150 = vmatmul.mubr.f32.gmra.mrb[0].mxu0 %v942
        %v2151 = vpop.f32.mrb[0].mxu0
        %v2152 = vadd.f32 %v662, %v2151
        %v2153 = vpop.f32.mrb[0].mxu0
        %2154 = vmatprep.mubr.f32.mxu0 0.0
        %2155 = vmatmul.mubr.f32.gmra.mrb[0].mxu0 %v945
        %v2156 = vpop.f32.mrb[0].mxu0
        %v2157 = vadd.f32 %v662, %v2156
        %v2158 = vpop.f32.mrb[0].mxu0
        %2159 = vmatprep.mubr.f32.mxu0 0.0
        %2160 = vmatmul.mubr.f32.gmra.mrb[0].mxu0 %v948
        %v2161 = vpop.f32.mrb[0].mxu0
        %v2162 = vadd.f32 %v662, %v2161
        %v2163 = vpop.f32.mrb[0].mxu0
        %2164 = vmatprep.mubr.f32.mxu0 0.0
        %2165 = vmatmul.mubr.f32.gmra.mrb[0].mxu0 %v951
        %v2166 = vpop.f32.mrb[0].mxu0
        %v2167 = vadd.f32 %v662, %v2166
        %v2168 = vpop.f32.mrb[0].mxu0
        %2169 = vmatprep.mubr.f32.mxu0 0.0
        %2170 = vmatmul.mubr.f32.gmra.mrb[0].mxu0 %v954
        %v2171 = vpop.f32.mrb[0].mxu0
        %v2172 = vadd.f32 %v662, %v2171
        %v2173 = vpop.f32.mrb[0].mxu0
        %2174 = vmatprep.mubr.f32.mxu0 0.0
        %2175 = vmatmul.mubr.f32.gmra.mrb[0].mxu0 %v957
        %v2176 = vpop.f32.mrb[0].mxu0
        %v2177 = vadd.f32 %v662, %v2176
        %v2178 = vpop.f32.mrb[0].mxu0
        %2179 = vmatprep.mubr.f32.mxu0 0.0
        %2180 = vmatmul.mubr.f32.gmra.mrb[0].mxu0 %v960
        %v2181 = vpop.f32.mrb[0].mxu0
        %v2182 = vadd.f32 %v662, %v2181
        %v2183 = vpop.f32.mrb[0].mxu0
        %2184 = vmatprep.mubr.f32.mxu0 0.0
        %2185 = vmatmul.mubr.f32.gmra.mrb[0].mxu0 %v963
        %v2186 = vpop.f32.mrb[0].mxu0
        %v2187 = vadd.f32 %v662, %v2186
        %v2188 = vpop.f32.mrb[0].mxu0
        %2189 = vmatprep.mubr.f32.mxu0 0.0
        %2190 = vmatmul.mubr.f32.gmra.mrb[0].mxu0 %v966
        %v2191 = vpop.f32.mrb[0].mxu0
        %v2192 = vadd.f32 %v662, %v2191
        %v2193 = vpop.f32.mrb[0].mxu0
        %2194 = vmatprep.mubr.f32.mxu0 0.0
        %2195 = vmatmul.mubr.f32.gmra.mrb[0].mxu0 %v969
        %v2196 = vpop.f32.mrb[0].mxu0
        %v2197 = vadd.f32 %v662, %v2196
        %v2198 = vpop.f32.mrb[0].mxu0
        %2199 = vmatprep.mubr.f32.mxu0 0.0
        %2200 = vmatmul.mubr.f32.gmra.mrb[0].mxu0 %v972
        %v2201 = vpop.f32.mrb[0].mxu0
        %v2202 = vadd.f32 %v662, %v2201
        %v2203 = vpop.f32.mrb[0].mxu0
        %2204 = vmatprep.mubr.f32.mxu0 0.0
        %2205 = vmatmul.mubr.f32.gmra.mrb[0].mxu0 %v975
        %v2206 = vpop.f32.mrb[0].mxu0
        %v2207 = vadd.f32 %v662, %v2206
        %v2208 = vpop.f32.mrb[0].mxu0
        %2209 = vmatprep.mubr.f32.mxu0 0.0
        %2210 = vmatmul.mubr.f32.gmra.mrb[0].mxu0 %v978
        %v2211 = vpop.f32.mrb[0].mxu0
        %v2212 = vadd.f32 %v662, %v2211
        %v2213 = vpop.f32.mrb[0].mxu0
        %2214 = vmatprep.mubr.f32.mxu0 0.0
        %2215 = vmatmul.mubr.f32.gmra.mrb[0].mxu0 %v981
        %v2216 = vpop.f32.mrb[0].mxu0
        %v2217 = vadd.f32 %v662, %v2216
        %v2218 = vpop.f32.mrb[0].mxu0
        %2219 = vmatprep.mubr.f32.mxu0 0.0
        %2220 = vmatmul.mubr.f32.gmra.mrb[0].mxu0 %v984
        %v2221 = vpop.f32.mrb[0].mxu0
        %v2222 = vadd.f32 %v662, %v2221
        %v2223 = vpop.f32.mrb[0].mxu0
        %2224 = vmatprep.mubr.f32.mxu0 0.0
        %2225 = vmatmul.mubr.f32.gmra.mrb[0].mxu0 %v987
        %v2226 = vpop.f32.mrb[0].mxu0
        %v2227 = vadd.f32 %v662, %v2226
        %v2228 = vpop.f32.mrb[0].mxu0
        %2229 = vmatprep.mubr.f32.mxu0 0.0
        %2230 = vmatmul.mubr.f32.gmra.mrb[0].mxu0 %v990
        %v2231 = vpop.f32.mrb[0].mxu0
        %v2232 = vadd.f32 %v662, %v2231
        %v2233 = vpop.f32.mrb[0].mxu0
        %2234 = vmatprep.mubr.f32.mxu0 0.0
        %2235 = vmatmul.mubr.f32.gmra.mrb[0].mxu0 %v993
        %v2236 = vpop.f32.mrb[0].mxu0
        %v2237 = vadd.f32 %v662, %v2236
        %v2238 = vpop.f32.mrb[0].mxu0
        %2239 = vmatprep.mubr.f32.mxu0 0.0
        %2240 = vmatmul.mubr.f32.gmra.mrb[0].mxu0 %v996
        %v2241 = vpop.f32.mrb[0].mxu0
        %v2242 = vadd.f32 %v662, %v2241
        %v2243 = vpop.f32.mrb[0].mxu0
        %2244 = vmatprep.mubr.f32.mxu0 0.0
        %2245 = vmatmul.mubr.f32.gmra.mrb[0].mxu0 %v999
        %v2246 = vpop.f32.mrb[0].mxu0
        %v2247 = vadd.f32 %v662, %v2246
        %v2248 = vpop.f32.mrb[0].mxu0
        %2249 = vmatprep.mubr.f32.mxu0 0.0
        %2250 = vmatmul.mubr.f32.gmra.mrb[0].mxu0 %v1002
        %v2251 = vpop.f32.mrb[0].mxu0
        %v2252 = vadd.f32 %v662, %v2251
        %v2253 = vpop.f32.mrb[0].mxu0
        %2254 = vmatprep.mubr.f32.mxu0 0.0
        %2255 = vmatmul.mubr.f32.gmra.mrb[0].mxu0 %v1005
        %v2256 = vpop.f32.mrb[0].mxu0
        %v2257 = vadd.f32 %v662, %v2256
        %v2258 = vpop.f32.mrb[0].mxu0
        %2259 = vmatprep.mubr.f32.mxu0 0.0
        %2260 = vmatmul.mubr.f32.gmra.mrb[0].mxu0 %v1008
        %v2261 = vpop.f32.mrb[0].mxu0
        %v2262 = vadd.f32 %v662, %v2261
        %v2263 = vpop.f32.mrb[0].mxu0
        %2264 = vmatprep.mubr.f32.mxu0 0.0
        %2265 = vmatmul.mubr.f32.gmra.mrb[0].mxu0 %v1011
        %v2266 = vpop.f32.mrb[0].mxu0
        %v2267 = vadd.f32 %v662, %v2266
        %v2268 = vpop.f32.mrb[0].mxu0
        %2269 = vmatprep.mubr.f32.mxu0 0.0
        %2270 = vmatmul.mubr.f32.gmra.mrb[0].mxu0 %v1014
        %v2271 = vpop.f32.mrb[0].mxu0
        %v2272 = vadd.f32 %v662, %v2271
        %v2273 = vpop.f32.mrb[0].mxu0
        %2274 = vmatprep.mubr.f32.mxu0 0.0
        %2275 = vmatmul.mubr.f32.gmra.mrb[0].mxu0 %v1017
        %v2276 = vpop.f32.mrb[0].mxu0
        %v2277 = vadd.f32 %v662, %v2276
        %v2278 = vpop.f32.mrb[0].mxu0
        %2279 = vmatprep.mubr.f32.mxu0 0.0
        %2280 = vmatmul.mubr.f32.gmra.mrb[0].mxu0 %v1020
        %v2281 = vpop.f32.mrb[0].mxu0
        %v2282 = vadd.f32 %v662, %v2281
        %v2283 = vpop.f32.mrb[0].mxu0
        %2284 = vmatprep.mubr.f32.mxu0 0.0
        %2285 = vmatmul.mubr.f32.gmra.mrb[0].mxu0 %v1023
        %v2286 = vpop.f32.mrb[0].mxu0
        %v2287 = vadd.f32 %v662, %v2286
        %v2288 = vpop.f32.mrb[0].mxu0
        %2289 = vmatprep.mubr.f32.mxu0 0.0
        %2290 = vmatmul.mubr.f32.gmra.mrb[0].mxu0 %v1026
        %v2291 = vpop.f32.mrb[0].mxu0
        %v2292 = vadd.f32 %v662, %v2291
        %v2293 = vpop.f32.mrb[0].mxu0
        %2294 = vmatprep.mubr.f32.mxu0 0.0
        %2295 = vmatmul.mubr.f32.gmra.mrb[0].mxu0 %v1029
        %v2296 = vpop.f32.mrb[0].mxu0
        %v2297 = vadd.f32 %v662, %v2296
        %v2298 = vpop.f32.mrb[0].mxu0
        %2299 = vmatprep.mubr.f32.mxu0 0.0
        %2300 = vmatmul.mubr.f32.gmra.mrb[0].mxu0 %v1032
        %v2301 = vpop.f32.mrb[0].mxu0
        %v2302 = vadd.f32 %v662, %v2301
        %v2303 = vpop.f32.mrb[0].mxu0
        %2304 = vmatprep.mubr.f32.mxu0 0.0
        %2305 = vmatmul.mubr.f32.gmra.mrb[0].mxu0 %v1035
        %v2306 = vpop.f32.mrb[0].mxu0
        %v2307 = vadd.f32 %v662, %v2306
        %v2308 = vpop.f32.mrb[0].mxu0
        %2309 = vmatprep.mubr.f32.mxu0 0.0
        %2310 = vmatmul.mubr.f32.gmra.mrb[0].mxu0 %v1038
        %v2311 = vpop.f32.mrb[0].mxu0
        %v2312 = vadd.f32 %v662, %v2311
        %v2313 = vpop.f32.mrb[0].mxu0
        %2314 = vmatprep.mubr.f32.mxu0 0.0
        %2315 = vmatmul.mubr.f32.gmra.mrb[0].mxu0 %v1041
        %v2316 = vpop.f32.mrb[0].mxu0
        %v2317 = vadd.f32 %v662, %v2316
        %v2318 = vpop.f32.mrb[0].mxu0
        %2319 = vmatprep.mubr.f32.mxu0 0.0
        %2320 = vmatmul.mubr.f32.gmra.mrb[0].mxu0 %v1044
        %v2321 = vpop.f32.mrb[0].mxu0
        %v2322 = vadd.f32 %v662, %v2321
        %v2323 = vpop.f32.mrb[0].mxu0
        %2324 = vmatprep.mubr.f32.mxu0 0.0
        %2325 = vmatmul.mubr.f32.gmra.mrb[0].mxu0 %v1047
        %v2326 = vpop.f32.mrb[0].mxu0
        %v2327 = vadd.f32 %v662, %v2326
        %v2328 = vpop.f32.mrb[0].mxu0
        %2329 = vmatprep.mubr.f32.mxu0 0.0
        %2330 = vmatmul.mubr.f32.gmra.mrb[0].mxu0 %v1050
        %v2331 = vpop.f32.mrb[0].mxu0
        %v2332 = vadd.f32 %v662, %v2331
        %v2333 = vpop.f32.mrb[0].mxu0
        %2334 = vmatprep.mubr.f32.mxu0 0.0
        %2335 = vmatmul.mubr.f32.gmra.mrb[0].mxu0 %v1053
        %v2336 = vpop.f32.mrb[0].mxu0
        %v2337 = vadd.f32 %v662, %v2336
        %v2338 = vpop.f32.mrb[0].mxu0
        %2339 = vmatprep.mubr.f32.mxu0 0.0
        %2340 = vmatmul.mubr.f32.gmra.mrb[0].mxu0 %v1056
        %v2341 = vpop.f32.mrb[0].mxu0
        %v2342 = vadd.f32 %v662, %v2341
        %v2343 = vpop.f32.mrb[0].mxu0
        %2344 = vmatprep.mubr.f32.mxu0 0.0
        %2345 = vmatmul.mubr.f32.gmra.mrb[0].mxu0 %v1059
        %v2346 = vpop.f32.mrb[0].mxu0
        %v2347 = vadd.f32 %v662, %v2346
        %v2348 = vpop.f32.mrb[0].mxu0
        %2349 = vmatprep.mubr.f32.mxu0 0.0
        %2350 = vmatmul.mubr.f32.gmra.mrb[0].mxu0 %v1062
        %v2351 = vpop.f32.mrb[0].mxu0
        %v2352 = vadd.f32 %v662, %v2351
        %v2353 = vpop.f32.mrb[0].mxu0
        %2354 = vmatprep.mubr.f32.mxu0 0.0
        %2355 = vmatmul.mubr.f32.gmra.mrb[0].mxu0 %v1065
        %v2356 = vpop.f32.mrb[0].mxu0
        %v2357 = vadd.f32 %v662, %v2356
        %v2358 = vpop.f32.mrb[0].mxu0
        %2359 = vmatprep.mubr.f32.mxu0 0.0
        %2360 = vmatmul.mubr.f32.gmra.mrb[0].mxu0 %v1068
        %v2361 = vpop.f32.mrb[0].mxu0
        %v2362 = vadd.f32 %v662, %v2361
        %v2363 = vpop.f32.mrb[0].mxu0
        %2364 = vmatprep.mubr.f32.mxu0 0.0
        %2365 = vmatmul.mubr.f32.gmra.mrb[0].mxu0 %v1071
        %v2366 = vpop.f32.mrb[0].mxu0
        %v2367 = vadd.f32 %v662, %v2366
        %v2368 = vpop.f32.mrb[0].mxu0
        %2369 = vmatprep.mubr.f32.mxu0 0.0
        %2370 = vmatmul.mubr.f32.gmra.mrb[0].mxu0 %v1074
        %v2371 = vpop.f32.mrb[0].mxu0
        %v2372 = vadd.f32 %v662, %v2371
        %v2373 = vpop.f32.mrb[0].mxu0
        %2374 = vmatprep.mubr.f32.mxu0 0.0
        %2375 = vmatmul.mubr.f32.gmra.mrb[0].mxu0 %v1077
        %v2376 = vpop.f32.mrb[0].mxu0
        %v2377 = vadd.f32 %v662, %v2376
        %v2378 = vpop.f32.mrb[0].mxu0
        %2379 = vmatprep.mubr.f32.mxu0 0.0
        %2380 = vmatmul.mubr.f32.gmra.mrb[0].mxu0 %v1080
        %v2381 = vpop.f32.mrb[0].mxu0
        %v2382 = vadd.f32 %v662, %v2381
        %v2383 = vpop.f32.mrb[0].mxu0
        %2384 = vmatprep.mubr.f32.mxu0 0.0
        %2385 = vmatmul.mubr.f32.gmra.mrb[0].mxu0 %v1083
        %v2386 = vpop.f32.mrb[0].mxu0
        %v2387 = vadd.f32 %v662, %v2386
        %v2388 = vpop.f32.mrb[0].mxu0
        %2389 = vmatprep.mubr.f32.mxu0 0.0
        %2390 = vmatmul.mubr.f32.gmra.mrb[0].mxu0 %v1086
        %v2391 = vpop.f32.mrb[0].mxu0
        %v2392 = vadd.f32 %v662, %v2391
        %v2393 = vpop.f32.mrb[0].mxu0
        %2394 = vmatprep.mubr.f32.mxu0 0.0
        %2395 = vmatmul.mubr.f32.gmra.mrb[0].mxu0 %v1089
        %v2396 = vpop.f32.mrb[0].mxu0
        %v2397 = vadd.f32 %v662, %v2396
        %v2398 = vpop.f32.mrb[0].mxu0
        %2399 = vmatprep.mubr.f32.mxu0 0.0
        %2400 = vmatmul.mubr.f32.gmra.mrb[0].mxu0 %v1092
        %v2401 = vpop.f32.mrb[0].mxu0
        %v2402 = vadd.f32 %v662, %v2401
        %v2403 = vpop.f32.mrb[0].mxu0
        %2404 = vmatprep.mubr.f32.mxu0 0.0
        %2405 = vmatmul.mubr.f32.gmra.mrb[0].mxu0 %v1095
        %v2406 = vpop.f32.mrb[0].mxu0
        %v2407 = vadd.f32 %v662, %v2406
        %v2408 = vpop.f32.mrb[0].mxu0
        %2409 = vmatprep.mubr.f32.mxu0 0.0
        %2410 = vmatmul.mubr.f32.gmra.mrb[0].mxu0 %v1098
        %v2411 = vpop.f32.mrb[0].mxu0
        %v2412 = vadd.f32 %v662, %v2411
        %v2413 = vpop.f32.mrb[0].mxu0
        %2414 = vmatprep.mubr.f32.mxu0 0.0
        %2415 = vmatmul.mubr.f32.gmra.mrb[0].mxu0 %v1101
        %v2416 = vpop.f32.mrb[0].mxu0
        %v2417 = vadd.f32 %v662, %v2416
        %v2418 = vpop.f32.mrb[0].mxu0
        %2419 = vmatprep.mubr.f32.mxu0 0.0
        %2420 = vmatmul.mubr.f32.gmra.mrb[0].mxu0 %v1104
        %v2421 = vpop.f32.mrb[0].mxu0
        %v2422 = vadd.f32 %v662, %v2421
        %v2423 = vpop.f32.mrb[0].mxu0
        %2424 = vmatprep.mubr.f32.mxu0 0.0
        %2425 = vmatmul.mubr.f32.gmra.mrb[0].mxu0 %v1107
        %v2426 = vpop.f32.mrb[0].mxu0
        %v2427 = vadd.f32 %v662, %v2426
        %v2428 = vpop.f32.mrb[0].mxu0
        %2429 = vmatprep.mubr.f32.mxu0 0.0
        %2430 = vmatmul.mubr.f32.gmra.mrb[0].mxu0 %v1110
        %v2431 = vpop.f32.mrb[0].mxu0
        %v2432 = vadd.f32 %v662, %v2431
        %v2433 = vpop.f32.mrb[0].mxu0
        %2434 = vmatprep.mubr.f32.mxu0 0.0
        %2435 = vmatmul.mubr.f32.gmra.mrb[0].mxu0 %v1113
        %v2436 = vpop.f32.mrb[0].mxu0
        %v2437 = vadd.f32 %v662, %v2436
        %v2438 = vpop.f32.mrb[0].mxu0
        %2439 = vmatprep.mubr.f32.mxu0 0.0
        %2440 = vmatmul.mubr.f32.gmra.mrb[0].mxu0 %v1116
        %v2441 = vpop.f32.mrb[0].mxu0
        %v2442 = vadd.f32 %v662, %v2441
        %v2443 = vpop.f32.mrb[0].mxu0
        %2444 = vmatprep.mubr.f32.mxu0 0.0
        %2445 = vmatmul.mubr.f32.gmra.mrb[0].mxu0 %v1119
        %v2446 = vpop.f32.mrb[0].mxu0
        %v2447 = vadd.f32 %v662, %v2446
        %v2448 = vpop.f32.mrb[0].mxu0
        %2449 = vmatprep.mubr.f32.mxu0 0.0
        %2450 = vmatmul.mubr.f32.gmra.mrb[0].mxu0 %v1122
        %v2451 = vpop.f32.mrb[0].mxu0
        %v2452 = vadd.f32 %v662, %v2451
        %v2453 = vpop.f32.mrb[0].mxu0
        %2454 = vmatprep.mubr.f32.mxu0 0.0
        %2455 = vmatmul.mubr.f32.gmra.mrb[0].mxu0 %v1125
        %v2456 = vpop.f32.mrb[0].mxu0
        %v2457 = vadd.f32 %v662, %v2456
        %v2458 = vpop.f32.mrb[0].mxu0
        %2459 = vmatprep.mubr.f32.mxu0 0.0
        %2460 = vmatmul.mubr.f32.gmra.mrb[0].mxu0 %v1128
        %v2461 = vpop.f32.mrb[0].mxu0
        %v2462 = vadd.f32 %v662, %v2461
        %v2463 = vpop.f32.mrb[0].mxu0
        %2464 = vmatprep.mubr.f32.mxu0 0.0
        %2465 = vmatmul.mubr.f32.gmra.mrb[0].mxu0 %v1131
        %v2466 = vpop.f32.mrb[0].mxu0
        %v2467 = vadd.f32 %v662, %v2466
        %v2468 = vpop.f32.mrb[0].mxu0
        %2469 = vmatprep.mubr.f32.mxu0 0.0
        %2470 = vmatmul.mubr.f32.gmra.mrb[0].mxu0 %v1134
        %v2471 = vpop.f32.mrb[0].mxu0
        %v2472 = vadd.f32 %v662, %v2471
        %v2473 = vpop.f32.mrb[0].mxu0
        %2474 = vmatprep.mubr.f32.mxu0 0.0
        %2475 = vmatmul.mubr.f32.gmra.mrb[0].mxu0 %v1137
        %v2476 = vpop.f32.mrb[0].mxu0
        %v2477 = vadd.f32 %v662, %v2476
        %v2478 = vpop.f32.mrb[0].mxu0
        %2479 = vmatprep.mubr.f32.mxu0 0.0
        %2480 = vmatmul.mubr.f32.gmra.mrb[0].mxu0 %v1140
        %v2481 = vpop.f32.mrb[0].mxu0
        %v2482 = vadd.f32 %v662, %v2481
        %v2483 = vpop.f32.mrb[0].mxu0
        %2484 = vmatprep.mubr.f32.mxu0 0.0
        %2485 = vmatmul.mubr.f32.gmra.mrb[0].mxu0 %v1143
        %v2486 = vpop.f32.mrb[0].mxu0
        %v2487 = vadd.f32 %v662, %v2486
        %v2488 = vpop.f32.mrb[0].mxu0
        %2489 = vmatprep.mubr.f32.mxu0 0.0
        %2490 = vmatmul.mubr.f32.gmra.mrb[0].mxu0 %v1146
        %v2491 = vpop.f32.mrb[0].mxu0
        %v2492 = vadd.f32 %v662, %v2491
        %v2493 = vpop.f32.mrb[0].mxu0
        %2494 = vmatprep.mubr.f32.mxu0 0.0
        %2495 = vmatmul.mubr.f32.gmra.mrb[0].mxu0 %v1149
        %v2496 = vpop.f32.mrb[0].mxu0
        %v2497 = vadd.f32 %v662, %v2496
        %v2498 = vpop.f32.mrb[0].mxu0
        %2499 = vmatprep.mubr.f32.mxu0 0.0
        %2500 = vmatmul.mubr.f32.gmra.mrb[0].mxu0 %v1152
        %v2501 = vpop.f32.mrb[0].mxu0
        %v2502 = vadd.f32 %v662, %v2501
        %v2503 = vpop.f32.mrb[0].mxu0
        %2504 = vmatprep.mubr.f32.mxu0 0.0
        %2505 = vmatmul.mubr.f32.gmra.mrb[0].mxu0 %v1155
        %v2506 = vpop.f32.mrb[0].mxu0
        %v2507 = vadd.f32 %v662, %v2506
        %v2508 = vpop.f32.mrb[0].mxu0
        %2509 = vmatprep.mubr.f32.mxu0 0.0
        %2510 = vmatmul.mubr.f32.gmra.mrb[0].mxu0 %v1158
        %v2511 = vpop.f32.mrb[0].mxu0
        %v2512 = vadd.f32 %v662, %v2511
        %v2513 = vpop.f32.mrb[0].mxu0
        %2514 = vmatprep.mubr.f32.mxu0 0.0
        %2515 = vmatmul.mubr.f32.gmra.mrb[0].mxu0 %v1161
        %v2516 = vpop.f32.mrb[0].mxu0
        %v2517 = vadd.f32 %v662, %v2516
        %v2518 = vpop.f32.mrb[0].mxu0
        %2519 = vmatprep.mubr.f32.mxu0 0.0
        %2520 = vmatmul.mubr.f32.gmra.mrb[0].mxu0 %v1164
        %v2521 = vpop.f32.mrb[0].mxu0
        %v2522 = vadd.f32 %v662, %v2521
        %v2523 = vpop.f32.mrb[0].mxu0
        %2524 = vmatprep.mubr.f32.mxu0 0.0
        %2525 = vmatmul.mubr.f32.gmra.mrb[0].mxu0 %v1167
        %v2526 = vpop.f32.mrb[0].mxu0
        %v2527 = vadd.f32 %v662, %v2526
        %v2528 = vpop.f32.mrb[0].mxu0
        %2529 = vmatprep.mubr.f32.mxu0 0.0
        %2530 = vmatmul.mubr.f32.gmra.mrb[0].mxu0 %v1170
        %v2531 = vpop.f32.mrb[0].mxu0
        %v2532 = vadd.f32 %v662, %v2531
        %v2533 = vpop.f32.mrb[0].mxu0
        %2534 = vmatprep.mubr.f32.mxu0 0.0
        %2535 = vmatmul.mubr.f32.gmra.mrb[0].mxu0 %v1173
        %v2536 = vpop.f32.mrb[0].mxu0
        %v2537 = vadd.f32 %v662, %v2536
        %v2538 = vpop.f32.mrb[0].mxu0
        %2539 = vmatprep.mubr.f32.mxu0 0.0
        %2540 = vmatmul.mubr.f32.gmra.mrb[0].mxu0 %v1176
        %v2541 = vpop.f32.mrb[0].mxu0
        %v2542 = vadd.f32 %v662, %v2541
        %v2543 = vpop.f32.mrb[0].mxu0
        %2544 = vmatprep.mubr.f32.mxu0 0.0
        %2545 = vmatmul.mubr.f32.gmra.mrb[0].mxu0 %v1179
        %v2546 = vpop.f32.mrb[0].mxu0
        %v2547 = vadd.f32 %v662, %v2546
        %v2548 = vpop.f32.mrb[0].mxu0
        %2549 = vmatprep.mubr.f32.mxu0 0.0
        %2550 = vmatmul.mubr.f32.gmra.mrb[0].mxu0 %v1182
        %v2551 = vpop.f32.mrb[0].mxu0
        %v2552 = vadd.f32 %v662, %v2551
        %v2553 = vpop.f32.mrb[0].mxu0
        %2554 = vmatprep.mubr.f32.mxu0 0.0
        %2555 = vmatmul.mubr.f32.gmra.mrb[0].mxu0 %v1185
        %v2556 = vpop.f32.mrb[0].mxu0
        %v2557 = vadd.f32 %v662, %v2556
        %v2558 = vpop.f32.mrb[0].mxu0
        %2559 = vmatprep.mubr.f32.mxu0 0.0
        %2560 = vmatmul.mubr.f32.gmra.mrb[0].mxu0 %v1188
        %v2561 = vpop.f32.mrb[0].mxu0
        %v2562 = vadd.f32 %v662, %v2561
        %v2563 = vpop.f32.mrb[0].mxu0
        %2564 = vmatprep.mubr.f32.mxu0 0.0
        %2565 = vmatmul.mubr.f32.gmra.mrb[0].mxu0 %v1191
        %v2566 = vpop.f32.mrb[0].mxu0
        %v2567 = vadd.f32 %v662, %v2566
        %v2568 = vpop.f32.mrb[0].mxu0
        %2569 = vmatprep.mubr.f32.mxu0 0.0
        %2570 = vmatmul.mubr.f32.gmra.mrb[0].mxu0 %v1194
        %v2571 = vpop.f32.mrb[0].mxu0
        %v2572 = vadd.f32 %v662, %v2571
        %v2573 = vpop.f32.mrb[0].mxu0
        %2574 = vmatprep.mubr.f32.mxu0 0.0
        %2575 = vmatmul.mubr.f32.gmra.mrb[0].mxu0 %v1197
        %v2576 = vpop.f32.mrb[0].mxu0
        %v2577 = vadd.f32 %v662, %v2576
        %v2578 = vpop.f32.mrb[0].mxu0
        %2579 = vmatprep.mubr.f32.mxu0 0.0
        %2580 = vmatmul.mubr.f32.gmra.mrb[0].mxu0 %v1200
        %v2581 = vpop.f32.mrb[0].mxu0
        %v2582 = vadd.f32 %v662, %v2581
        %v2583 = vpop.f32.mrb[0].mxu0
        %2584 = vmatprep.mubr.f32.mxu0 0.0
        %2585 = vmatmul.mubr.f32.gmra.mrb[0].mxu0 %v1203
        %v2586 = vpop.f32.mrb[0].mxu0
        %v2587 = vadd.f32 %v662, %v2586
        %v2588 = vpop.f32.mrb[0].mxu0
        %2589 = vmatprep.mubr.f32.mxu0 0.0
        %2590 = vmatmul.mubr.f32.gmra.mrb[0].mxu0 %v1206
        %v2591 = vpop.f32.mrb[0].mxu0
        %v2592 = vadd.f32 %v662, %v2591
        %v2593 = vpop.f32.mrb[0].mxu0
        %2594 = vmatprep.mubr.f32.mxu0 0.0
        %2595 = vmatmul.mubr.f32.gmra.mrb[0].mxu0 %v1209
        %v2596 = vpop.f32.mrb[0].mxu0
        %v2597 = vadd.f32 %v662, %v2596
        %v2598 = vpop.f32.mrb[0].mxu0
        %2599 = vmatprep.mubr.f32.mxu0 0.0
        %2600 = vmatmul.mubr.f32.gmra.mrb[0].mxu0 %v1212
        %v2601 = vpop.f32.mrb[0].mxu0
        %v2602 = vadd.f32 %v662, %v2601
        %v2603 = vpop.f32.mrb[0].mxu0
        %2604 = vmatprep.mubr.f32.mxu0 0.0
        %2605 = vmatmul.mubr.f32.gmra.mrb[0].mxu0 %v1215
        %v2606 = vpop.f32.mrb[0].mxu0
        %v2607 = vadd.f32 %v662, %v2606
        %v2608 = vpop.f32.mrb[0].mxu0
        %2609 = vmatprep.mubr.f32.mxu0 0.0
        %2610 = vmatmul.mubr.f32.gmra.mrb[0].mxu0 %v1218
        %v2611 = vpop.f32.mrb[0].mxu0
        %v2612 = vadd.f32 %v662, %v2611
        %v2613 = vpop.f32.mrb[0].mxu0
        %2614 = vmatprep.mubr.f32.mxu0 0.0
        %2615 = vmatmul.mubr.f32.gmra.mrb[0].mxu0 %v1221
        %v2616 = vpop.f32.mrb[0].mxu0
        %v2617 = vadd.f32 %v662, %v2616
        %v2618 = vpop.f32.mrb[0].mxu0
        %2619 = vmatprep.mubr.f32.mxu0 0.0
        %2620 = vmatmul.mubr.f32.gmra.mrb[0].mxu0 %v1224
        %v2621 = vpop.f32.mrb[0].mxu0
        %v2622 = vadd.f32 %v662, %v2621
        %v2623 = vpop.f32.mrb[0].mxu0
        %2624 = vmatprep.mubr.f32.mxu0 0.0
        %2625 = vmatmul.mubr.f32.gmra.mrb[0].mxu0 %v1227
        %v2626 = vpop.f32.mrb[0].mxu0
        %v2627 = vadd.f32 %v662, %v2626
        %v2628 = vpop.f32.mrb[0].mxu0
        %2629 = vmatprep.mubr.f32.mxu0 0.0
        %2630 = vmatmul.mubr.f32.gmra.mrb[0].mxu0 %v1230
        %v2631 = vpop.f32.mrb[0].mxu0
        %v2632 = vadd.f32 %v662, %v2631
        %v2633 = vpop.f32.mrb[0].mxu0
        %2634 = vmatprep.mubr.f32.mxu0 0.0
        %2635 = vmatmul.mubr.f32.gmra.mrb[0].mxu0 %v1233
        %v2636 = vpop.f32.mrb[0].mxu0
        %v2637 = vadd.f32 %v662, %v2636
        %v2638 = vpop.f32.mrb[0].mxu0
        %2639 = vmatprep.mubr.f32.mxu0 0.0
        %2640 = vmatmul.mubr.f32.gmra.mrb[0].mxu0 %v1236
        %v2641 = vpop.f32.mrb[0].mxu0
        %v2642 = vadd.f32 %v662, %v2641
        %v2643 = vpop.f32.mrb[0].mxu0
        %2644 = vmatprep.mubr.f32.mxu0 0.0
        %2645 = vmatmul.mubr.f32.gmra.mrb[0].mxu0 %v1239
        %v2646 = vpop.f32.mrb[0].mxu0
        %v2647 = vadd.f32 %v662, %v2646
        %v2648 = vpop.f32.mrb[0].mxu0
        %2649 = vmatprep.mubr.f32.mxu0 0.0
        %2650 = vmatmul.mubr.f32.gmra.mrb[0].mxu0 %v1242
        %v2651 = vpop.f32.mrb[0].mxu0
        %v2652 = vadd.f32 %v662, %v2651
        %v2653 = vpop.f32.mrb[0].mxu0
        %2654 = vmatprep.mubr.f32.mxu0 0.0
        %2655 = vmatmul.mubr.f32.gmra.mrb[0].mxu0 %v1245
        %v2656 = vpop.f32.mrb[0].mxu0
        %v2657 = vadd.f32 %v662, %v2656
        %v2658 = vpop.f32.mrb[0].mxu0
        %2659 = vmatprep.mubr.f32.mxu0 0.0
        %2660 = vmatmul.mubr.f32.gmra.mrb[0].mxu0 %v1248
        %v2661 = vpop.f32.mrb[0].mxu0
        %v2662 = vadd.f32 %v662, %v2661
        %v2663 = vpop.f32.mrb[0].mxu0
        %2664 = vmatprep.mubr.f32.mxu0 0.0
        %2665 = vmatmul.mubr.f32.gmra.mrb[0].mxu0 %v1251
        %v2666 = vpop.f32.mrb[0].mxu0
        %v2667 = vadd.f32 %v662, %v2666
        %v2668 = vpop.f32.mrb[0].mxu0
        %2669 = vmatprep.mubr.f32.mxu0 0.0
        %2670 = vmatmul.mubr.f32.gmra.mrb[0].mxu0 %v1254
        %v2671 = vpop.f32.mrb[0].mxu0
        %v2672 = vadd.f32 %v662, %v2671
        %v2673 = vpop.f32.mrb[0].mxu0
        %2674 = vmatprep.mubr.f32.mxu0 0.0
        %2675 = vmatmul.mubr.f32.gmra.mrb[0].mxu0 %v1257
        %v2676 = vpop.f32.mrb[0].mxu0
        %v2677 = vadd.f32 %v662, %v2676
        %v2678 = vpop.f32.mrb[0].mxu0
        %2679 = vmatprep.mubr.f32.mxu0 0.0
        %2680 = vmatmul.mubr.f32.gmra.mrb[0].mxu0 %v1260
        %v2681 = vpop.f32.mrb[0].mxu0
        %v2682 = vadd.f32 %v662, %v2681
        %v2683 = vpop.f32.mrb[0].mxu0
        %2684 = vmatprep.mubr.f32.mxu0 0.0
        %2685 = vmatmul.mubr.f32.gmra.mrb[0].mxu0 %v1263
        %v2686 = vpop.f32.mrb[0].mxu0
        %v2687 = vadd.f32 %v662, %v2686
        %v2688 = vpop.f32.mrb[0].mxu0
        %2689 = vmatprep.mubr.f32.mxu0 0.0
        %2690 = vmatmul.mubr.f32.gmra.mrb[0].mxu0 %v1266
        %v2691 = vpop.f32.mrb[0].mxu0
        %v2692 = vadd.f32 %v662, %v2691
        %v2693 = vpop.f32.mrb[0].mxu0
        %2694 = vmatprep.mubr.f32.mxu0 0.0
        %2695 = vmatmul.mubr.f32.gmra.mrb[0].mxu0 %v1269
        %v2696 = vpop.f32.mrb[0].mxu0
        %v2697 = vadd.f32 %v662, %v2696
        %v2698 = vpop.f32.mrb[0].mxu0
        %2699 = vmatprep.mubr.f32.mxu0 0.0
        %2700 = vmatmul.mubr.f32.gmra.mrb[0].mxu0 %v1272
        %v2701 = vpop.f32.mrb[0].mxu0
        %v2702 = vadd.f32 %v662, %v2701
        %v2703 = vpop.f32.mrb[0].mxu0
        %2704 = vmatprep.mubr.f32.mxu0 0.0
        %2705 = vmatmul.mubr.f32.gmra.mrb[0].mxu0 %v1275
        %v2706 = vpop.f32.mrb[0].mxu0
        %v2707 = vadd.f32 %v662, %v2706
        %v2708 = vpop.f32.mrb[0].mxu0
        %2709 = vmatprep.mubr.f32.mxu0 0.0
        %2710 = vmatmul.mubr.f32.gmra.mrb[0].mxu0 %v1278
        %v2711 = vpop.f32.mrb[0].mxu0
        %v2712 = vadd.f32 %v662, %v2711
        %v2713 = vpop.f32.mrb[0].mxu0
        %2714 = vmatprep.mubr.f32.mxu0 0.0
        %2715 = vmatmul.mubr.f32.gmra.mrb[0].mxu0 %v1281
        %v2716 = vpop.f32.mrb[0].mxu0
        %v2717 = vadd.f32 %v662, %v2716
        %v2718 = vpop.f32.mrb[0].mxu0
        %2719 = vmatprep.mubr.f32.mxu0 0.0
        %2720 = vmatmul.mubr.f32.gmra.mrb[0].mxu0 %v1284
        %v2721 = vpop.f32.mrb[0].mxu0
        %v2722 = vadd.f32 %v662, %v2721
        %v2723 = vpop.f32.mrb[0].mxu0
        %2724 = vmatprep.mubr.f32.mxu0 0.0
        %2725 = vmatmul.mubr.f32.gmra.mrb[0].mxu0 %v1287
        %v2726 = vpop.f32.mrb[0].mxu0
        %v2727 = vadd.f32 %v662, %v2726
        %v2728 = vpop.f32.mrb[0].mxu0
        %2729 = vmatprep.mubr.f32.mxu0 0.0
        %2730 = vmatmul.mubr.f32.gmra.mrb[0].mxu0 %v1290
        %v2731 = vpop.f32.mrb[0].mxu0
        %v2732 = vadd.f32 %v662, %v2731
        %v2733 = vpop.f32.mrb[0].mxu0
        %2734 = vmatprep.mubr.f32.mxu0 0.0
        %2735 = vmatmul.mubr.f32.gmra.mrb[0].mxu0 %v1293
        %v2736 = vpop.f32.mrb[0].mxu0
        %v2737 = vadd.f32 %v662, %v2736
        %v2738 = vpop.f32.mrb[0].mxu0
        %2739 = vmatprep.mubr.f32.mxu0 0.0
        %2740 = vmatmul.mubr.f32.gmra.mrb[0].mxu0 %v1296
        %v2741 = vpop.f32.mrb[0].mxu0
        %v2742 = vadd.f32 %v662, %v2741
        %v2743 = vpop.f32.mrb[0].mxu0
        %2744 = vmatprep.mubr.f32.mxu0 0.0
        %2745 = vmatmul.mubr.f32.gmra.mrb[0].mxu0 %v1299
        %v2746 = vpop.f32.mrb[0].mxu0
        %v2747 = vadd.f32 %v662, %v2746
        %v2748 = vpop.f32.mrb[0].mxu0
        %2749 = vmatprep.mubr.f32.mxu0 0.0
        %2750 = vmatmul.mubr.f32.gmra.mrb[0].mxu0 %v1302
        %v2751 = vpop.f32.mrb[0].mxu0
        %v2752 = vadd.f32 %v662, %v2751
        %v2753 = vpop.f32.mrb[0].mxu0
        %2754 = vmatprep.mubr.f32.mxu0 0.0
        %2755 = vmatmul.mubr.f32.gmra.mrb[0].mxu0 %v1305
        %v2756 = vpop.f32.mrb[0].mxu0
        %v2757 = vadd.f32 %v662, %v2756
        %v2758 = vpop.f32.mrb[0].mxu0
        %2759 = vmatprep.mubr.f32.mxu0 0.0
        %2760 = vmatmul.mubr.f32.gmra.mrb[0].mxu0 %v1308
        %v2761 = vpop.f32.mrb[0].mxu0
        %v2762 = vadd.f32 %v662, %v2761
        %v2763 = vpop.f32.mrb[0].mxu0
        %2764 = vmatprep.mubr.f32.mxu0 0.0
        %2765 = vmatmul.mubr.f32.gmra.mrb[0].mxu0 %v1311
        %v2766 = vpop.f32.mrb[0].mxu0
        %v2767 = vadd.f32 %v662, %v2766
        %v2768 = vpop.f32.mrb[0].mxu0
        %2769 = vmatprep.mubr.f32.mxu0 0.0
        %2770 = vmatmul.mubr.f32.gmra.mrb[0].mxu0 %v1314
        %v2771 = vpop.f32.mrb[0].mxu0
        %v2772 = vadd.f32 %v662, %v2771
        %v2773 = vpop.f32.mrb[0].mxu0
        %2774 = vmatprep.mubr.f32.mxu0 0.0
        %2775 = vmatmul.mubr.f32.gmra.mrb[0].mxu0 %v1317
        %v2776 = vpop.f32.mrb[0].mxu0
        %v2777 = vadd.f32 %v662, %v2776
        %v2778 = vpop.f32.mrb[0].mxu0
        %2779 = vmatprep.mubr.f32.mxu0 0.0
        %2780 = vmatmul.mubr.f32.gmra.mrb[0].mxu0 %v1320
        %v2781 = vpop.f32.mrb[0].mxu0
        %v2782 = vadd.f32 %v662, %v2781
        %v2783 = vpop.f32.mrb[0].mxu0
        %2784 = vmatprep.mubr.f32.mxu0 0.0
        %2785 = vmatmul.mubr.f32.gmra.mrb[0].mxu0 %v1323
        %v2786 = vpop.f32.mrb[0].mxu0
        %v2787 = vadd.f32 %v662, %v2786
        %v2788 = vpop.f32.mrb[0].mxu0
        %2789 = vmatprep.mubr.f32.mxu0 0.0
        %2790 = vmatmul.mubr.f32.gmra.mrb[0].mxu0 %v1326
        %v2791 = vpop.f32.mrb[0].mxu0
        %v2792 = vadd.f32 %v662, %v2791
        %v2793 = vpop.f32.mrb[0].mxu0
        %2794 = vmatprep.mubr.f32.mxu0 0.0
        %2795 = vmatmul.mubr.f32.gmra.mrb[0].mxu0 %v1329
        %v2796 = vpop.f32.mrb[0].mxu0
        %v2797 = vadd.f32 %v662, %v2796
        %v2798 = vpop.f32.mrb[0].mxu0
        %2799 = vmatprep.mubr.f32.mxu0 0.0
        %2800 = vmatmul.mubr.f32.gmra.mrb[0].mxu0 %v1332
        %v2801 = vpop.f32.mrb[0].mxu0
        %v2802 = vadd.f32 %v662, %v2801
        %v2803 = vpop.f32.mrb[0].mxu0
        %2804 = vmatprep.mubr.f32.mxu0 0.0
        %2805 = vmatmul.mubr.f32.gmra.mrb[0].mxu0 %v1335
        %v2806 = vpop.f32.mrb[0].mxu0
        %v2807 = vadd.f32 %v662, %v2806
        %v2808 = vpop.f32.mrb[0].mxu0
        %2809 = vmatprep.mubr.f32.mxu0 0.0
        %2810 = vmatmul.mubr.f32.gmra.mrb[0].mxu0 %v1338
        %v2811 = vpop.f32.mrb[0].mxu0
        %v2812 = vadd.f32 %v662, %v2811
        %v2813 = vpop.f32.mrb[0].mxu0
        %2814 = vmatprep.mubr.f32.mxu0 0.0
        %2815 = vmatmul.mubr.f32.gmra.mrb[0].mxu0 %v1341
        %v2816 = vpop.f32.mrb[0].mxu0
        %v2817 = vadd.f32 %v662, %v2816
        %v2818 = vpop.f32.mrb[0].mxu0
        %2819 = vmatprep.mubr.f32.mxu0 0.0
        %2820 = vmatmul.mubr.f32.gmra.mrb[0].mxu0 %v1344
        %v2821 = vpop.f32.mrb[0].mxu0
        %v2822 = vadd.f32 %v662, %v2821
        %v2823 = vpop.f32.mrb[0].mxu0
        %2824 = vmatprep.mubr.f32.mxu0 0.0
        %2825 = vmatmul.mubr.f32.gmra.mrb[0].mxu0 %v1347
        %v2826 = vpop.f32.mrb[0].mxu0
        %v2827 = vadd.f32 %v662, %v2826
        %v2828 = vpop.f32.mrb[0].mxu0
        %2829 = vmatprep.mubr.f32.mxu0 0.0
        %2830 = vmatmul.mubr.f32.gmra.mrb[0].mxu0 %v1350
        %v2831 = vpop.f32.mrb[0].mxu0
        %v2832 = vadd.f32 %v662, %v2831
        %v2833 = vpop.f32.mrb[0].mxu0
        %2834 = vmatprep.mubr.f32.mxu0 0.0
        %2835 = vmatmul.mubr.f32.gmra.mrb[0].mxu0 %v1353
        %v2836 = vpop.f32.mrb[0].mxu0
        %v2837 = vadd.f32 %v662, %v2836
        %v2838 = vpop.f32.mrb[0].mxu0
        %2839 = vmatprep.mubr.f32.mxu0 0.0
        %2840 = vmatmul.mubr.f32.gmra.mrb[0].mxu0 %v1356
        %v2841 = vpop.f32.mrb[0].mxu0
        %v2842 = vadd.f32 %v662, %v2841
        %v2843 = vpop.f32.mrb[0].mxu0
        %2844 = vmatprep.mubr.f32.mxu0 0.0
        %2845 = vmatmul.mubr.f32.gmra.mrb[0].mxu0 %v1359
        %v2846 = vpop.f32.mrb[0].mxu0
        %v2847 = vadd.f32 %v662, %v2846
        %v2848 = vpop.f32.mrb[0].mxu0
        %2849 = vmatprep.mubr.f32.mxu0 0.0
        %2850 = vmatmul.mubr.f32.gmra.mrb[0].mxu0 %v1362
        %v2851 = vpop.f32.mrb[0].mxu0
        %v2852 = vadd.f32 %v662, %v2851
        %v2853 = vpop.f32.mrb[0].mxu0
        %2854 = vmatprep.mubr.f32.mxu0 0.0
        %2855 = vmatmul.mubr.f32.gmra.mrb[0].mxu0 %v1365
        %v2856 = vpop.f32.mrb[0].mxu0
        %v2857 = vadd.f32 %v662, %v2856
        %v2858 = vpop.f32.mrb[0].mxu0
        %2859 = vmatprep.mubr.f32.mxu0 0.0
        %2860 = vmatmul.mubr.f32.gmra.mrb[0].mxu0 %v1368
        %v2861 = vpop.f32.mrb[0].mxu0
        %v2862 = vadd.f32 %v662, %v2861
        %v2863 = vpop.f32.mrb[0].mxu0
        %2864 = vmatprep.mubr.f32.mxu0 0.0
        %2865 = vmatmul.mubr.f32.gmra.mrb[0].mxu0 %v1371
        %v2866 = vpop.f32.mrb[0].mxu0
        %v2867 = vadd.f32 %v662, %v2866
        %v2868 = vpop.f32.mrb[0].mxu0
        %2869 = vmatprep.mubr.f32.mxu0 0.0
        %2870 = vmatmul.mubr.f32.gmra.mrb[0].mxu0 %v1374
        %v2871 = vpop.f32.mrb[0].mxu0
        %v2872 = vadd.f32 %v662, %v2871
        %v2873 = vpop.f32.mrb[0].mxu0
        %2874 = vmatprep.mubr.f32.mxu0 0.0
        %2875 = vmatmul.mubr.f32.gmra.mrb[0].mxu0 %v1377
        %v2876 = vpop.f32.mrb[0].mxu0
        %v2877 = vadd.f32 %v662, %v2876
        %v2878 = vpop.f32.mrb[0].mxu0
        %2879 = vmatprep.mubr.f32.mxu0 0.0
        %2880 = vmatmul.mubr.f32.gmra.mrb[0].mxu0 %v1380
        %v2881 = vpop.f32.mrb[0].mxu0
        %v2882 = vadd.f32 %v662, %v2881
        %v2883 = vpop.f32.mrb[0].mxu0
        %2884 = vmatprep.mubr.f32.mxu0 0.0
        %2885 = vmatmul.mubr.f32.gmra.mrb[0].mxu0 %v1383
        %v2886 = vpop.f32.mrb[0].mxu0
        %v2887 = vadd.f32 %v662, %v2886
        %v2888 = vpop.f32.mrb[0].mxu0
        %2889 = vmatprep.mubr.f32.mxu0 0.0
        %2890 = vmatmul.mubr.f32.gmra.mrb[0].mxu0 %v1386
        %v2891 = vpop.f32.mrb[0].mxu0
        %v2892 = vadd.f32 %v662, %v2891
        %v2893 = vpop.f32.mrb[0].mxu0
        %2894 = vmatprep.mubr.f32.mxu0 0.0
        %2895 = vmatmul.mubr.f32.gmra.mrb[0].mxu0 %v1389
        %v2896 = vpop.f32.mrb[0].mxu0
        %v2897 = vadd.f32 %v662, %v2896
        %v2898 = vpop.f32.mrb[0].mxu0
        %2899 = vmatprep.mubr.f32.mxu0 0.0
        %2900 = vmatmul.mubr.f32.gmra.mrb[0].mxu0 %v1392
        %v2901 = vpop.f32.mrb[0].mxu0
        %v2902 = vadd.f32 %v662, %v2901
        %v2903 = vpop.f32.mrb[0].mxu0
        %2904 = vmatprep.mubr.f32.mxu0 0.0
        %2905 = vmatmul.mubr.f32.gmra.mrb[0].mxu0 %v1395
        %v2906 = vpop.f32.mrb[0].mxu0
        %v2907 = vadd.f32 %v662, %v2906
        %v2908 = vpop.f32.mrb[0].mxu0
        %2909 = vmatprep.mubr.f32.mxu0 0.0
        %2910 = vmatmul.mubr.f32.gmra.mrb[0].mxu0 %v1398
        %v2911 = vpop.f32.mrb[0].mxu0
        %v2912 = vadd.f32 %v662, %v2911
        %v2913 = vpop.f32.mrb[0].mxu0
        %2914 = vmatprep.mubr.f32.mxu0 0.0
        %2915 = vmatmul.mubr.f32.gmra.mrb[0].mxu0 %v1401
        %v2916 = vpop.f32.mrb[0].mxu0
        %v2917 = vadd.f32 %v662, %v2916
        %v2918 = vpop.f32.mrb[0].mxu0
        %2919 = vmatprep.mubr.f32.mxu0 0.0
        %2920 = vmatmul.mubr.f32.gmra.mrb[0].mxu0 %v1404
        %v2921 = vpop.f32.mrb[0].mxu0
        %v2922 = vadd.f32 %v662, %v2921
        %v2923 = vpop.f32.mrb[0].mxu0
        %2924 = vmatprep.mubr.f32.mxu0 0.0
        %2925 = vmatmul.mubr.f32.gmra.mrb[0].mxu0 %v1407
        %v2926 = vpop.f32.mrb[0].mxu0
        %v2927 = vadd.f32 %v662, %v2926
        %v2928 = vpop.f32.mrb[0].mxu0
        %2929 = vmatprep.mubr.f32.mxu0 0.0
        %2930 = vmatmul.mubr.f32.gmra.mrb[0].mxu0 %v1410
        %v2931 = vpop.f32.mrb[0].mxu0
        %v2932 = vadd.f32 %v662, %v2931
        %v2933 = vpop.f32.mrb[0].mxu0
        %2934 = vmatprep.mubr.f32.mxu0 0.0
        %2935 = vmatmul.mubr.f32.gmra.mrb[0].mxu0 %v1413
        %v2936 = vpop.f32.mrb[0].mxu0
        %v2937 = vadd.f32 %v662, %v2936
        %v2938 = vpop.f32.mrb[0].mxu0
        %2939 = vmatprep.mubr.f32.mxu0 0.0
        %2940 = vmatmul.mubr.f32.gmra.mrb[0].mxu0 %v1416
        %v2941 = vpop.f32.mrb[0].mxu0
        %v2942 = vadd.f32 %v662, %v2941
        %v2943 = vpop.f32.mrb[0].mxu0
        %2944 = vmatprep.mubr.f32.mxu0 0.0
        %2945 = vmatmul.mubr.f32.gmra.mrb[0].mxu0 %v1419
        %v2946 = vpop.f32.mrb[0].mxu0
        %v2947 = vadd.f32 %v662, %v2946
        %v2948 = vpop.f32.mrb[0].mxu0
        %2949 = vmatprep.mubr.f32.mxu0 0.0
        %2950 = vmatmul.mubr.f32.gmra.mrb[0].mxu0 %v1422
        %v2951 = vpop.f32.mrb[0].mxu0
        %v2952 = vadd.f32 %v662, %v2951
        %v2953 = vpop.f32.mrb[0].mxu0
        %2954 = vmatprep.mubr.f32.mxu0 0.0
        %2955 = vmatmul.mubr.f32.gmra.mrb[0].mxu0 %v1425
        %v2956 = vpop.f32.mrb[0].mxu0
        %v2957 = vadd.f32 %v662, %v2956
        %v2958 = vpop.f32.mrb[0].mxu0
        %2959 = vmatprep.mubr.f32.mxu0 0.0
        %2960 = vmatmul.mubr.f32.gmra.mrb[0].mxu0 %v1428
        %v2961 = vpop.f32.mrb[0].mxu0
        %v2962 = vadd.f32 %v662, %v2961
        %v2963 = vpop.f32.mrb[0].mxu0
        %2964 = vmatprep.mubr.f32.mxu0 0.0
        %2965 = vmatmul.mubr.f32.gmra.mrb[0].mxu0 %v1431
        %v2966 = vpop.f32.mrb[0].mxu0
        %v2967 = vadd.f32 %v662, %v2966
        %v2968 = vpop.f32.mrb[0].mxu0
        %2969 = vmatprep.mubr.f32.mxu0 0.0
        %2970 = vmatmul.mubr.f32.gmra.mrb[0].mxu0 %v1434
        %v2971 = vpop.f32.mrb[0].mxu0
        %v2972 = vadd.f32 %v662, %v2971
        %v2973 = vpop.f32.mrb[0].mxu0
        %2974 = vmatprep.mubr.f32.mxu0 0.0
        %2975 = vmatmul.mubr.f32.gmra.mrb[0].mxu0 %v1437
        %v2976 = vpop.f32.mrb[0].mxu0
        %v2977 = vadd.f32 %v662, %v2976
        %v2978 = vpop.f32.mrb[0].mxu0
        %2979 = vmatprep.mubr.f32.mxu0 0.0
        %2980 = vmatmul.mubr.f32.gmra.mrb[0].mxu0 %v1440
        %v2981 = vpop.f32.mrb[0].mxu0
        %v2982 = vadd.f32 %v662, %v2981
        %v2983 = vpop.f32.mrb[0].mxu0
        %2984 = vmatprep.mubr.f32.mxu0 0.0
        %2985 = vmatmul.mubr.f32.gmra.mrb[0].mxu0 %v1443
        %v2986 = vpop.f32.mrb[0].mxu0
        %v2987 = vadd.f32 %v662, %v2986
        %v2988 = vpop.f32.mrb[0].mxu0
        %2989 = vmatprep.mubr.f32.mxu0 0.0
        %2990 = vmatmul.mubr.f32.gmra.mrb[0].mxu0 %v1446
        %v2991 = vpop.f32.mrb[0].mxu0
        %v2992 = vadd.f32 %v662, %v2991
        %v2993 = vpop.f32.mrb[0].mxu0
        %2994 = vmatprep.mubr.f32.mxu0 0.0
        %2995 = vmatmul.mubr.f32.gmra.mrb[0].mxu0 %v1449
        %v2996 = vpop.f32.mrb[0].mxu0
        %v2997 = vadd.f32 %v662, %v2996
        %v2998 = vpop.f32.mrb[0].mxu0
        %2999 = vmatprep.mubr.f32.mxu0 0.0
        %3000 = vmatmul.mubr.f32.gmra.mrb[0].mxu0 %v1452
        %v3001 = vpop.f32.mrb[0].mxu0
        %v3002 = vadd.f32 %v662, %v3001
        %v3003 = vpop.f32.mrb[0].mxu0
        %3004 = vmatprep.mubr.f32.mxu0 0.0
        %3005 = vmatmul.mubr.f32.gmra.mrb[0].mxu0 %v1455
        %v3006 = vpop.f32.mrb[0].mxu0
        %v3007 = vadd.f32 %v662, %v3006
        %v3008 = vpop.f32.mrb[0].mxu0
        %3009 = vmatprep.mubr.f32.mxu0 0.0
        %3010 = vmatmul.mubr.f32.gmra.mrb[0].mxu0 %v1458
        %v3011 = vpop.f32.mrb[0].mxu0
        %v3012 = vadd.f32 %v662, %v3011
        %v3013 = vpop.f32.mrb[0].mxu0
        %3014 = vmatprep.mubr.f32.mxu0 0.0
        %3015 = vmatmul.mubr.f32.gmra.mrb[0].mxu0 %v1461
        %v3016 = vpop.f32.mrb[0].mxu0
        %v3017 = vadd.f32 %v662, %v3016
        %v3018 = vpop.f32.mrb[0].mxu0
        %3019 = vmatprep.mubr.f32.mxu0 0.0
        %3020 = vmatmul.mubr.f32.gmra.mrb[0].mxu0 %v1464
        %v3021 = vpop.f32.mrb[0].mxu0
        %v3022 = vadd.f32 %v662, %v3021
        %v3023 = vpop.f32.mrb[0].mxu0
        %3024 = vmatprep.mubr.f32.mxu0 0.0
        %3025 = vmatmul.mubr.f32.gmra.mrb[0].mxu0 %v1467
        %v3026 = vpop.f32.mrb[0].mxu0
        %v3027 = vadd.f32 %v662, %v3026
        %v3028 = vpop.f32.mrb[0].mxu0
        %3029 = vmatprep.mubr.f32.mxu0 0.0
        %3030 = vmatmul.mubr.f32.gmra.mrb[0].mxu0 %v1470
        %v3031 = vpop.f32.mrb[0].mxu0
        %v3032 = vadd.f32 %v662, %v3031
        %v3033 = vpop.f32.mrb[0].mxu0
        %3034 = vmatprep.mubr.f32.mxu0 0.0
        %3035 = vmatmul.mubr.f32.gmra.mrb[0].mxu0 %v1473
        %v3036 = vpop.f32.mrb[0].mxu0
        %v3037 = vadd.f32 %v662, %v3036
        %v3038 = vpop.f32.mrb[0].mxu0
        %3039 = vmatprep.mubr.f32.mxu0 0.0
        %3040 = vmatmul.mubr.f32.gmra.mrb[0].mxu0 %v1476
        %v3041 = vpop.f32.mrb[0].mxu0
        %v3042 = vadd.f32 %v662, %v3041
        %v3043 = vpop.f32.mrb[0].mxu0
        %3044 = vmatprep.mubr.f32.mxu0 0.0
        %3045 = vmatmul.mubr.f32.gmra.mrb[0].mxu0 %v1479
        %v3046 = vpop.f32.mrb[0].mxu0
        %v3047 = vadd.f32 %v662, %v3046
        %v3048 = vpop.f32.mrb[0].mxu0
        %3049 = vmatprep.mubr.f32.mxu0 0.0
        %3050 = vmatmul.mubr.f32.gmra.mrb[0].mxu0 %v1482
        %v3051 = vpop.f32.mrb[0].mxu0
        %v3052 = vadd.f32 %v662, %v3051
        %v3053 = vpop.f32.mrb[0].mxu0
        %3054 = vmatprep.mubr.f32.mxu0 0.0
        %3055 = vmatmul.mubr.f32.gmra.mrb[0].mxu0 %v1485
        %v3056 = vpop.f32.mrb[0].mxu0
        %v3057 = vadd.f32 %v662, %v3056
        %v3058 = vpop.f32.mrb[0].mxu0
        %3059 = vmatprep.mubr.f32.mxu0 0.0
        %3060 = vmatmul.mubr.f32.gmra.mrb[0].mxu0 %v1488
        %v3061 = vpop.f32.mrb[0].mxu0
        %v3062 = vadd.f32 %v662, %v3061
        %v3063 = vpop.f32.mrb[0].mxu0
        %3064 = vmatprep.mubr.f32.mxu0 0.0
        %3065 = vmatmul.mubr.f32.gmra.mrb[0].mxu0 %v1491
        %v3066 = vpop.f32.mrb[0].mxu0
        %v3067 = vadd.f32 %v662, %v3066
        %v3068 = vpop.f32.mrb[0].mxu0
        %3069 = vmatprep.mubr.f32.mxu0 0.0
        %3070 = vmatmul.mubr.f32.gmra.mrb[0].mxu0 %v1494
        %v3071 = vpop.f32.mrb[0].mxu0
        %v3072 = vadd.f32 %v662, %v3071
        %v3073 = vpop.f32.mrb[0].mxu0
        %3074 = vmatprep.mubr.f32.mxu0 0.0
        %3075 = vmatmul.mubr.f32.gmra.mrb[0].mxu0 %v1497
        %v3076 = vpop.f32.mrb[0].mxu0
        %v3077 = vadd.f32 %v662, %v3076
        %v3078 = vpop.f32.mrb[0].mxu0
        %3079 = vmatprep.mubr.f32.mxu0 0.0
        %3080 = vmatmul.mubr.f32.gmra.mrb[0].mxu0 %v1500
        %v3081 = vpop.f32.mrb[0].mxu0
        %v3082 = vadd.f32 %v662, %v3081
        %v3083 = vpop.f32.mrb[0].mxu0
        %3084 = vmatprep.mubr.f32.mxu0 0.0
        %3085 = vmatmul.mubr.f32.gmra.mrb[0].mxu0 %v1503
        %v3086 = vpop.f32.mrb[0].mxu0
        %v3087 = vadd.f32 %v662, %v3086
        %v3088 = vpop.f32.mrb[0].mxu0
        %3089 = vmatprep.mubr.f32.mxu0 0.0
        %3090 = vmatmul.mubr.f32.gmra.mrb[0].mxu0 %v1506
        %v3091 = vpop.f32.mrb[0].mxu0
        %v3092 = vadd.f32 %v662, %v3091
        %v3093 = vpop.f32.mrb[0].mxu0
        %3094 = vmatprep.mubr.f32.mxu0 0.0
        %3095 = vmatmul.mubr.f32.gmra.mrb[0].mxu0 %v1509
        %v3096 = vpop.f32.mrb[0].mxu0
        %v3097 = vadd.f32 %v662, %v3096
        %v3098 = vpop.f32.mrb[0].mxu0
        %3099 = vmatprep.mubr.f32.mxu0 0.0
        %3100 = vmatmul.mubr.f32.gmra.mrb[0].mxu0 %v1512
        %v3101 = vpop.f32.mrb[0].mxu0
        %v3102 = vadd.f32 %v662, %v3101
        %v3103 = vpop.f32.mrb[0].mxu0
        %3104 = vmatprep.mubr.f32.mxu0 0.0
        %3105 = vmatmul.mubr.f32.gmra.mrb[0].mxu0 %v1515
        %v3106 = vpop.f32.mrb[0].mxu0
        %v3107 = vadd.f32 %v662, %v3106
        %v3108 = vpop.f32.mrb[0].mxu0
        %3109 = vmatprep.mubr.f32.mxu0 0.0
        %3110 = vmatmul.mubr.f32.gmra.mrb[0].mxu0 %v1518
        %v3111 = vpop.f32.mrb[0].mxu0
        %v3112 = vadd.f32 %v662, %v3111
        %v3113 = vpop.f32.mrb[0].mxu0
        %3114 = vmatprep.mubr.f32.mxu0 0.0
        %3115 = vmatmul.mubr.f32.gmra.mrb[0].mxu0 %v1521
        %v3116 = vpop.f32.mrb[0].mxu0
        %v3117 = vadd.f32 %v662, %v3116
        %v3118 = vpop.f32.mrb[0].mxu0
        %3119 = vmatprep.mubr.f32.mxu0 0.0
        %3120 = vmatmul.mubr.f32.gmra.mrb[0].mxu0 %v1524
        %v3121 = vpop.f32.mrb[0].mxu0
        %v3122 = vadd.f32 %v662, %v3121
        %v3123 = vpop.f32.mrb[0].mxu0
        %3124 = vmatprep.mubr.f32.mxu0 0.0
        %3125 = vmatmul.mubr.f32.gmra.mrb[0].mxu0 %v1527
        %v3126 = vpop.f32.mrb[0].mxu0
        %v3127 = vadd.f32 %v662, %v3126
        %v3128 = vpop.f32.mrb[0].mxu0
        %3129 = vmatprep.mubr.f32.mxu0 0.0
        %3130 = vmatmul.mubr.f32.gmra.mrb[0].mxu0 %v1530
        %v3131 = vpop.f32.mrb[0].mxu0
        %v3132 = vadd.f32 %v662, %v3131
        %v3133 = vpop.f32.mrb[0].mxu0
        %3134 = vmatprep.mubr.f32.mxu0 0.0
        %3135 = vmatmul.mubr.f32.gmra.mrb[0].mxu0 %v1533
        %v3136 = vpop.f32.mrb[0].mxu0
        %v3137 = vadd.f32 %v662, %v3136
        %v3138 = vpop.f32.mrb[0].mxu0
        %3139 = vmatprep.mubr.f32.mxu0 0.0
        %3140 = vmatmul.mubr.f32.gmra.mrb[0].mxu0 %v1536
        %v3141 = vpop.f32.mrb[0].mxu0
        %v3142 = vadd.f32 %v662, %v3141
        %v3143 = vpop.f32.mrb[0].mxu0
        %3144 = vmatprep.mubr.f32.mxu0 0.0
        %3145 = vmatmul.mubr.f32.gmra.mrb[0].mxu0 %v1539
        %v3146 = vpop.f32.mrb[0].mxu0
        %v3147 = vadd.f32 %v662, %v3146
        %v3148 = vpop.f32.mrb[0].mxu0
        %3149 = vmatprep.mubr.f32.mxu0 0.0
        %3150 = vmatmul.mubr.f32.gmra.mrb[0].mxu0 %v1542
        %v3151 = vpop.f32.mrb[0].mxu0
        %v3152 = vadd.f32 %v662, %v3151
        %v3153 = vpop.f32.mrb[0].mxu0
        %3154 = vmatprep.mubr.f32.mxu0 0.0
        %3155 = vmatmul.mubr.f32.gmra.mrb[0].mxu0 %v1545
        %v3156 = vpop.f32.mrb[0].mxu0
        %v3157 = vadd.f32 %v662, %v3156
        %v3158 = vpop.f32.mrb[0].mxu0
        %3159 = vmatprep.mubr.f32.mxu0 0.0
        %3160 = vmatmul.mubr.f32.gmra.mrb[0].mxu0 %v1548
        %v3161 = vpop.f32.mrb[0].mxu0
        %v3162 = vadd.f32 %v662, %v3161
        %v3163 = vpop.f32.mrb[0].mxu0
        %3164 = vmatprep.mubr.f32.mxu0 0.0
        %3165 = vmatmul.mubr.f32.gmra.mrb[0].mxu0 %v1551
        %v3166 = vpop.f32.mrb[0].mxu0
        %v3167 = vadd.f32 %v662, %v3166
        %v3168 = vpop.f32.mrb[0].mxu0
        %3169 = vmatprep.mubr.f32.mxu0 0.0
        %3170 = vmatmul.mubr.f32.gmra.mrb[0].mxu0 %v1554
        %v3171 = vpop.f32.mrb[0].mxu0
        %v3172 = vadd.f32 %v662, %v3171
        %v3173 = vpop.f32.mrb[0].mxu0
        %3174 = vmatprep.mubr.f32.mxu0 0.0
        %3175 = vmatmul.mubr.f32.gmra.mrb[0].mxu0 %v1557
        %v3176 = vpop.f32.mrb[0].mxu0
        %v3177 = vadd.f32 %v662, %v3176
        %v3178 = vpop.f32.mrb[0].mxu0
        %3179 = vmatprep.mubr.f32.mxu0 0.0
        %3180 = vmatmul.mubr.f32.gmra.mrb[0].mxu0 %v1560
        %v3181 = vpop.f32.mrb[0].mxu0
        %v3182 = vadd.f32 %v662, %v3181
        %v3183 = vpop.f32.mrb[0].mxu0
        %3184 = vmatprep.mubr.f32.mxu0 0.0
        %3185 = vmatmul.mubr.f32.gmra.mrb[0].mxu0 %v1563
        %v3186 = vpop.f32.mrb[0].mxu0
        %v3187 = vadd.f32 %v662, %v3186
        %v3188 = vpop.f32.mrb[0].mxu0
        %3189 = vmatprep.mubr.f32.mxu0 0.0
        %3190 = vmatmul.mubr.f32.gmra.mrb[0].mxu0 %v1566
        %v3191 = vpop.f32.mrb[0].mxu0
        %v3192 = vadd.f32 %v662, %v3191
        %v3193 = vpop.f32.mrb[0].mxu0
        %3194 = vmatprep.mubr.f32.mxu0 0.0
        %3195 = vmatmul.mubr.f32.gmra.mrb[0].mxu0 %v1569
        %v3196 = vpop.f32.mrb[0].mxu0
        %v3197 = vadd.f32 %v662, %v3196
        %v3198 = vpop.f32.mrb[0].mxu0
        %3199 = vmatprep.mubr.f32.mxu0 0.0
        %3200 = vmatmul.mubr.f32.gmra.mrb[0].mxu0 %v1572
        %v3201 = vpop.f32.mrb[0].mxu0
        %v3202 = vadd.f32 %v662, %v3201
        %v3203 = vpop.f32.mrb[0].mxu0
        %3204 = vmatprep.mubr.f32.mxu0 0.0
        %3205 = vmatmul.mubr.f32.gmra.mrb[0].mxu0 %v1575
        %v3206 = vpop.f32.mrb[0].mxu0
        %v3207 = vadd.f32 %v662, %v3206
        %v3208 = vpop.f32.mrb[0].mxu0
        %3209 = vmatprep.mubr.f32.mxu0 0.0
        %3210 = vmatmul.mubr.f32.gmra.mrb[0].mxu0 %v1578
        %v3211 = vpop.f32.mrb[0].mxu0
        %v3212 = vadd.f32 %v662, %v3211
        %v3213 = vpop.f32.mrb[0].mxu0
        %3214 = vmatprep.mubr.f32.mxu0 0.0
        %3215 = vmatmul.mubr.f32.gmra.mrb[0].mxu0 %v1581
        %v3216 = vpop.f32.mrb[0].mxu0
        %v3217 = vadd.f32 %v662, %v3216
        %v3218 = vpop.f32.mrb[0].mxu0
        %3219 = vmatprep.mubr.f32.mxu0 0.0
        %3220 = vmatmul.mubr.f32.gmra.mrb[0].mxu0 %v1584
        %v3221 = vpop.f32.mrb[0].mxu0
        %v3222 = vadd.f32 %v662, %v3221
        %v3223 = vpop.f32.mrb[0].mxu0
        %3224 = vmatprep.mubr.f32.mxu0 0.0
        %3225 = vmatmul.mubr.f32.gmra.mrb[0].mxu0 %v1587
        %v3226 = vpop.f32.mrb[0].mxu0
        %v3227 = vadd.f32 %v662, %v3226
        %v3228 = vpop.f32.mrb[0].mxu0
        %3229 = vmatprep.mubr.f32.mxu0 0.0
        %3230 = vmatmul.mubr.f32.gmra.mrb[0].mxu0 %v1590
        %v3231 = vpop.f32.mrb[0].mxu0
        %v3232 = vadd.f32 %v662, %v3231
        %v3233 = vpop.f32.mrb[0].mxu0
        %3234 = vmatprep.mubr.f32.mxu0 0.0
        %3235 = vmatmul.mubr.f32.gmra.mrb[0].mxu0 %v1593
        %v3236 = vpop.f32.mrb[0].mxu0
        %v3237 = vadd.f32 %v662, %v3236
        %v3238 = vpop.f32.mrb[0].mxu0
        %3239 = vmatprep.mubr.f32.mxu0 0.0
        %3240 = vmatmul.mubr.f32.gmra.mrb[0].mxu0 %v1596
        %v3241 = vpop.f32.mrb[0].mxu0
        %v3242 = vadd.f32 %v662, %v3241
        %v3243 = vpop.f32.mrb[0].mxu0
        %3244 = vmatprep.mubr.f32.mxu0 0.0
        %3245 = vmatmul.mubr.f32.gmra.mrb[0].mxu0 %v1599
        %v3246 = vpop.f32.mrb[0].mxu0
        %v3247 = vadd.f32 %v662, %v3246
        %v3248 = vpop.f32.mrb[0].mxu0
        %3249 = vmatprep.mubr.f32.mxu0 0.0
        %3250 = vmatmul.mubr.f32.gmra.mrb[0].mxu0 %v1602
        %v3251 = vpop.f32.mrb[0].mxu0
        %v3252 = vadd.f32 %v662, %v3251
        %v3253 = vpop.f32.mrb[0].mxu0
        %3254 = vmatprep.mubr.f32.mxu0 0.0
        %3255 = vmatmul.mubr.f32.gmra.mrb[0].mxu0 %v1605
        %v3256 = vpop.f32.mrb[0].mxu0
        %v3257 = vadd.f32 %v662, %v3256
        %v3258 = vpop.f32.mrb[0].mxu0
        %3259 = vmatprep.mubr.f32.mxu0 0.0
        %3260 = vmatmul.mubr.f32.gmra.mrb[0].mxu0 %v1608
        %v3261 = vpop.f32.mrb[0].mxu0
        %v3262 = vadd.f32 %v662, %v3261
        %v3263 = vpop.f32.mrb[0].mxu0
        %3264 = vmatprep.mubr.f32.mxu0 0.0
        %3265 = vmatmul.mubr.f32.gmra.mrb[0].mxu0 %v1611
        %v3266 = vpop.f32.mrb[0].mxu0
        %v3267 = vadd.f32 %v662, %v3266
        %v3268 = vpop.f32.mrb[0].mxu0
        %3269 = vmatprep.mubr.f32.mxu0 0.0
        %3270 = vmatmul.mubr.f32.gmra.mrb[0].mxu0 %v1614
        %v3271 = vpop.f32.mrb[0].mxu0
        %v3272 = vadd.f32 %v662, %v3271
        %v3273 = vpop.f32.mrb[0].mxu0
        %3274 = vmatprep.mubr.f32.mxu0 0.0
        %3275 = vmatmul.mubr.f32.gmra.mrb[0].mxu0 %v1617
        %v3276 = vpop.f32.mrb[0].mxu0
        %v3277 = vadd.f32 %v662, %v3276
        %v3278 = vpop.f32.mrb[0].mxu0
        %3279 = vmatprep.mubr.f32.mxu0 0.0
        %3280 = vmatmul.mubr.f32.gmra.mrb[0].mxu0 %v1620
        %v3281 = vpop.f32.mrb[0].mxu0
        %v3282 = vadd.f32 %v662, %v3281
        %v3283 = vpop.f32.mrb[0].mxu0
        %3284 = vmatprep.mubr.f32.mxu0 0.0
        %3285 = vmatmul.mubr.f32.gmra.mrb[0].mxu0 %v1623
        %v3286 = vpop.f32.mrb[0].mxu0
        %v3287 = vadd.f32 %v662, %v3286
        %v3288 = vpop.f32.mrb[0].mxu0
        %3289 = vdwg.mxu0
        %v3290 = vmax.f32 %v1692, 0.0
        %v3291 = vmax.f32 %v1697, 0.0
        %v3292 = vmax.f32 %v1702, 0.0
        %v3293 = vmax.f32 %v1707, 0.0
        %v3294 = vmax.f32 %v1712, 0.0
        %v3295 = vmax.f32 %v1717, 0.0
        %v3296 = vmax.f32 %v1722, 0.0
        %v3297 = vmax.f32 %v1727, 0.0
        %v3298 = vmax.f32 %v1732, 0.0
        %v3299 = vmax.f32 %v1737, 0.0
        %v3300 = vmax.f32 %v1742, 0.0
        %v3301 = vmax.f32 %v1747, 0.0
        %v3302 = vmax.f32 %v1752, 0.0
        %v3303 = vmax.f32 %v1757, 0.0
        %v3304 = vmax.f32 %v1762, 0.0
        %v3305 = vmax.f32 %v1767, 0.0
        %v3306 = vmax.f32 %v1772, 0.0
        %v3307 = vmax.f32 %v1777, 0.0
        %v3308 = vmax.f32 %v1782, 0.0
        %v3309 = vmax.f32 %v1787, 0.0
        %v3310 = vmax.f32 %v1792, 0.0
        %v3311 = vmax.f32 %v1797, 0.0
        %v3312 = vmax.f32 %v1802, 0.0
        %v3313 = vmax.f32 %v1807, 0.0
        %v3314 = vmax.f32 %v1812, 0.0
        %v3315 = vmax.f32 %v1817, 0.0
        %v3316 = vmax.f32 %v1822, 0.0
        %v3317 = vmax.f32 %v1827, 0.0
        %v3318 = vmax.f32 %v1832, 0.0
        %v3319 = vmax.f32 %v1837, 0.0
        %v3320 = vmax.f32 %v1842, 0.0
        %v3321 = vmax.f32 %v1847, 0.0
        %v3322 = vmax.f32 %v1852, 0.0
        %v3323 = vmax.f32 %v1857, 0.0
        %v3324 = vmax.f32 %v1862, 0.0
        %v3325 = vmax.f32 %v1867, 0.0
        %v3326 = vmax.f32 %v1872, 0.0
        %v3327 = vmax.f32 %v1877, 0.0
        %v3328 = vmax.f32 %v1882, 0.0
        %v3329 = vmax.f32 %v1887, 0.0
        %v3330 = vmax.f32 %v1892, 0.0
        %v3331 = vmax.f32 %v1897, 0.0
        %v3332 = vmax.f32 %v1902, 0.0
        %v3333 = vmax.f32 %v1907, 0.0
        %v3334 = vmax.f32 %v1912, 0.0
        %v3335 = vmax.f32 %v1917, 0.0
        %v3336 = vmax.f32 %v1922, 0.0
        %v3337 = vmax.f32 %v1927, 0.0
        %v3338 = vmax.f32 %v1932, 0.0
        %v3339 = vmax.f32 %v1937, 0.0
        %v3340 = vmax.f32 %v1942, 0.0
        %v3341 = vmax.f32 %v1947, 0.0
        %v3342 = vmax.f32 %v1952, 0.0
        %v3343 = vmax.f32 %v1957, 0.0
        %v3344 = vmax.f32 %v1962, 0.0
        %v3345 = vmax.f32 %v1967, 0.0
        %v3346 = vmax.f32 %v1972, 0.0
        %v3347 = vmax.f32 %v1977, 0.0
        %v3348 = vmax.f32 %v1982, 0.0
        %v3349 = vmax.f32 %v1987, 0.0
        %v3350 = vmax.f32 %v1992, 0.0
        %v3351 = vmax.f32 %v1997, 0.0
        %v3352 = vmax.f32 %v2002, 0.0
        %v3353 = vmax.f32 %v2007, 0.0
        %v3354 = vmax.f32 %v2012, 0.0
        %v3355 = vmax.f32 %v2017, 0.0
        %v3356 = vmax.f32 %v2022, 0.0
        %v3357 = vmax.f32 %v2027, 0.0
        %v3358 = vmax.f32 %v2032, 0.0
        %v3359 = vmax.f32 %v2037, 0.0
        %v3360 = vmax.f32 %v2042, 0.0
        %v3361 = vmax.f32 %v2047, 0.0
        %v3362 = vmax.f32 %v2052, 0.0
        %v3363 = vmax.f32 %v2057, 0.0
        %v3364 = vmax.f32 %v2062, 0.0
        %v3365 = vmax.f32 %v2067, 0.0
        %v3366 = vmax.f32 %v2072, 0.0
        %v3367 = vmax.f32 %v2077, 0.0
        %v3368 = vmax.f32 %v2082, 0.0
        %v3369 = vmax.f32 %v2087, 0.0
        %v3370 = vmax.f32 %v2092, 0.0
        %v3371 = vmax.f32 %v2097, 0.0
        %v3372 = vmax.f32 %v2102, 0.0
        %v3373 = vmax.f32 %v2107, 0.0
        %v3374 = vmax.f32 %v2112, 0.0
        %v3375 = vmax.f32 %v2117, 0.0
        %v3376 = vmax.f32 %v2122, 0.0
        %v3377 = vmax.f32 %v2127, 0.0
        %v3378 = vmax.f32 %v2132, 0.0
        %v3379 = vmax.f32 %v2137, 0.0
        %v3380 = vmax.f32 %v2142, 0.0
        %v3381 = vmax.f32 %v2147, 0.0
        %v3382 = vmax.f32 %v2152, 0.0
        %v3383 = vmax.f32 %v2157, 0.0
        %v3384 = vmax.f32 %v2162, 0.0
        %v3385 = vmax.f32 %v2167, 0.0
        %v3386 = vmax.f32 %v2172, 0.0
        %v3387 = vmax.f32 %v2177, 0.0
        %v3388 = vmax.f32 %v2182, 0.0
        %v3389 = vmax.f32 %v2187, 0.0
        %v3390 = vmax.f32 %v2192, 0.0
        %v3391 = vmax.f32 %v2197, 0.0
        %v3392 = vmax.f32 %v2202, 0.0
        %v3393 = vmax.f32 %v2207, 0.0
        %v3394 = vmax.f32 %v2212, 0.0
        %v3395 = vmax.f32 %v2217, 0.0
        %v3396 = vmax.f32 %v2222, 0.0
        %v3397 = vmax.f32 %v2227, 0.0
        %v3398 = vmax.f32 %v2232, 0.0
        %v3399 = vmax.f32 %v2237, 0.0
        %v3400 = vmax.f32 %v2242, 0.0
        %v3401 = vmax.f32 %v2247, 0.0
        %v3402 = vmax.f32 %v2252, 0.0
        %v3403 = vmax.f32 %v2257, 0.0
        %v3404 = vmax.f32 %v2262, 0.0
        %v3405 = vmax.f32 %v2267, 0.0
        %v3406 = vmax.f32 %v2272, 0.0
        %v3407 = vmax.f32 %v2277, 0.0
        %v3408 = vmax.f32 %v2282, 0.0
        %v3409 = vmax.f32 %v2287, 0.0
        %v3410 = vmax.f32 %v2292, 0.0
        %v3411 = vmax.f32 %v2297, 0.0
        %v3412 = vmax.f32 %v2302, 0.0
        %v3413 = vmax.f32 %v2307, 0.0
        %v3414 = vmax.f32 %v2312, 0.0
        %v3415 = vmax.f32 %v2317, 0.0
        %v3416 = vmax.f32 %v2322, 0.0
        %v3417 = vmax.f32 %v2327, 0.0
        %v3418 = vmax.f32 %v2332, 0.0
        %v3419 = vmax.f32 %v2337, 0.0
        %v3420 = vmax.f32 %v2342, 0.0
        %v3421 = vmax.f32 %v2347, 0.0
        %v3422 = vmax.f32 %v2352, 0.0
        %v3423 = vmax.f32 %v2357, 0.0
        %v3424 = vmax.f32 %v2362, 0.0
        %v3425 = vmax.f32 %v2367, 0.0
        %v3426 = vmax.f32 %v2372, 0.0
        %v3427 = vmax.f32 %v2377, 0.0
        %v3428 = vmax.f32 %v2382, 0.0
        %v3429 = vmax.f32 %v2387, 0.0
        %v3430 = vmax.f32 %v2392, 0.0
        %v3431 = vmax.f32 %v2397, 0.0
        %v3432 = vmax.f32 %v2402, 0.0
        %v3433 = vmax.f32 %v2407, 0.0
        %v3434 = vmax.f32 %v2412, 0.0
        %v3435 = vmax.f32 %v2417, 0.0
        %v3436 = vmax.f32 %v2422, 0.0
        %v3437 = vmax.f32 %v2427, 0.0
        %v3438 = vmax.f32 %v2432, 0.0
        %v3439 = vmax.f32 %v2437, 0.0
        %v3440 = vmax.f32 %v2442, 0.0
        %v3441 = vmax.f32 %v2447, 0.0
        %v3442 = vmax.f32 %v2452, 0.0
        %v3443 = vmax.f32 %v2457, 0.0
        %v3444 = vmax.f32 %v2462, 0.0
        %v3445 = vmax.f32 %v2467, 0.0
        %v3446 = vmax.f32 %v2472, 0.0
        %v3447 = vmax.f32 %v2477, 0.0
        %v3448 = vmax.f32 %v2482, 0.0
        %v3449 = vmax.f32 %v2487, 0.0
        %v3450 = vmax.f32 %v2492, 0.0
        %v3451 = vmax.f32 %v2497, 0.0
        %v3452 = vmax.f32 %v2502, 0.0
        %v3453 = vmax.f32 %v2507, 0.0
        %v3454 = vmax.f32 %v2512, 0.0
        %v3455 = vmax.f32 %v2517, 0.0
        %v3456 = vmax.f32 %v2522, 0.0
        %v3457 = vmax.f32 %v2527, 0.0
        %v3458 = vmax.f32 %v2532, 0.0
        %v3459 = vmax.f32 %v2537, 0.0
        %v3460 = vmax.f32 %v2542, 0.0
        %v3461 = vmax.f32 %v2547, 0.0
        %v3462 = vmax.f32 %v2552, 0.0
        %v3463 = vmax.f32 %v2557, 0.0
        %v3464 = vmax.f32 %v2562, 0.0
        %v3465 = vmax.f32 %v2567, 0.0
        %v3466 = vmax.f32 %v2572, 0.0
        %v3467 = vmax.f32 %v2577, 0.0
        %v3468 = vmax.f32 %v2582, 0.0
        %v3469 = vmax.f32 %v2587, 0.0
        %v3470 = vmax.f32 %v2592, 0.0
        %v3471 = vmax.f32 %v2597, 0.0
        %v3472 = vmax.f32 %v2602, 0.0
        %v3473 = vmax.f32 %v2607, 0.0
        %v3474 = vmax.f32 %v2612, 0.0
        %v3475 = vmax.f32 %v2617, 0.0
        %v3476 = vmax.f32 %v2622, 0.0
        %v3477 = vmax.f32 %v2627, 0.0
        %v3478 = vmax.f32 %v2632, 0.0
        %v3479 = vmax.f32 %v2637, 0.0
        %v3480 = vmax.f32 %v2642, 0.0
        %v3481 = vmax.f32 %v2647, 0.0
        %v3482 = vmax.f32 %v2652, 0.0
        %v3483 = vmax.f32 %v2657, 0.0
        %v3484 = vmax.f32 %v2662, 0.0
        %v3485 = vmax.f32 %v2667, 0.0
        %v3486 = vmax.f32 %v2672, 0.0
        %v3487 = vmax.f32 %v2677, 0.0
        %v3488 = vmax.f32 %v2682, 0.0
        %v3489 = vmax.f32 %v2687, 0.0
        %v3490 = vmax.f32 %v2692, 0.0
        %v3491 = vmax.f32 %v2697, 0.0
        %v3492 = vmax.f32 %v2702, 0.0
        %v3493 = vmax.f32 %v2707, 0.0
        %v3494 = vmax.f32 %v2712, 0.0
        %v3495 = vmax.f32 %v2717, 0.0
        %v3496 = vmax.f32 %v2722, 0.0
        %v3497 = vmax.f32 %v2727, 0.0
        %v3498 = vmax.f32 %v2732, 0.0
        %v3499 = vmax.f32 %v2737, 0.0
        %v3500 = vmax.f32 %v2742, 0.0
        %v3501 = vmax.f32 %v2747, 0.0
        %v3502 = vmax.f32 %v2752, 0.0
        %v3503 = vmax.f32 %v2757, 0.0
        %v3504 = vmax.f32 %v2762, 0.0
        %v3505 = vmax.f32 %v2767, 0.0
        %v3506 = vmax.f32 %v2772, 0.0
        %v3507 = vmax.f32 %v2777, 0.0
        %v3508 = vmax.f32 %v2782, 0.0
        %v3509 = vmax.f32 %v2787, 0.0
        %v3510 = vmax.f32 %v2792, 0.0
        %v3511 = vmax.f32 %v2797, 0.0
        %v3512 = vmax.f32 %v2802, 0.0
        %v3513 = vmax.f32 %v2807, 0.0
        %v3514 = vmax.f32 %v2812, 0.0
        %v3515 = vmax.f32 %v2817, 0.0
        %v3516 = vmax.f32 %v2822, 0.0
        %v3517 = vmax.f32 %v2827, 0.0
        %v3518 = vmax.f32 %v2832, 0.0
        %v3519 = vmax.f32 %v2837, 0.0
        %v3520 = vmax.f32 %v2842, 0.0
        %v3521 = vmax.f32 %v2847, 0.0
        %v3522 = vmax.f32 %v2852, 0.0
        %v3523 = vmax.f32 %v2857, 0.0
        %v3524 = vmax.f32 %v2862, 0.0
        %v3525 = vmax.f32 %v2867, 0.0
        %v3526 = vmax.f32 %v2872, 0.0
        %v3527 = vmax.f32 %v2877, 0.0
        %v3528 = vmax.f32 %v2882, 0.0
        %v3529 = vmax.f32 %v2887, 0.0
        %v3530 = vmax.f32 %v2892, 0.0
        %v3531 = vmax.f32 %v2897, 0.0
        %v3532 = vmax.f32 %v2902, 0.0
        %v3533 = vmax.f32 %v2907, 0.0
        %v3534 = vmax.f32 %v2912, 0.0
        %v3535 = vmax.f32 %v2917, 0.0
        %v3536 = vmax.f32 %v2922, 0.0
        %v3537 = vmax.f32 %v2927, 0.0
        %v3538 = vmax.f32 %v2932, 0.0
        %v3539 = vmax.f32 %v2937, 0.0
        %v3540 = vmax.f32 %v2942, 0.0
        %v3541 = vmax.f32 %v2947, 0.0
        %v3542 = vmax.f32 %v2952, 0.0
        %v3543 = vmax.f32 %v2957, 0.0
        %v3544 = vmax.f32 %v2962, 0.0
        %v3545 = vmax.f32 %v2967, 0.0
        %v3546 = vmax.f32 %v2972, 0.0
        %v3547 = vmax.f32 %v2977, 0.0
        %v3548 = vmax.f32 %v2982, 0.0
        %v3549 = vmax.f32 %v2987, 0.0
        %v3550 = vmax.f32 %v2992, 0.0
        %v3551 = vmax.f32 %v2997, 0.0
        %v3552 = vmax.f32 %v3002, 0.0
        %v3553 = vmax.f32 %v3007, 0.0
        %v3554 = vmax.f32 %v3012, 0.0
        %v3555 = vmax.f32 %v3017, 0.0
        %v3556 = vmax.f32 %v3022, 0.0
        %v3557 = vmax.f32 %v3027, 0.0
        %v3558 = vmax.f32 %v3032, 0.0
        %v3559 = vmax.f32 %v3037, 0.0
        %v3560 = vmax.f32 %v3042, 0.0
        %v3561 = vmax.f32 %v3047, 0.0
        %v3562 = vmax.f32 %v3052, 0.0
        %v3563 = vmax.f32 %v3057, 0.0
        %v3564 = vmax.f32 %v3062, 0.0
        %v3565 = vmax.f32 %v3067, 0.0
        %v3566 = vmax.f32 %v3072, 0.0
        %v3567 = vmax.f32 %v3077, 0.0
        %v3568 = vmax.f32 %v3082, 0.0
        %v3569 = vmax.f32 %v3087, 0.0
        %v3570 = vmax.f32 %v3092, 0.0
        %v3571 = vmax.f32 %v3097, 0.0
        %v3572 = vmax.f32 %v3102, 0.0
        %v3573 = vmax.f32 %v3107, 0.0
        %v3574 = vmax.f32 %v3112, 0.0
        %v3575 = vmax.f32 %v3117, 0.0
        %v3576 = vmax.f32 %v3122, 0.0
        %v3577 = vmax.f32 %v3127, 0.0
        %v3578 = vmax.f32 %v3132, 0.0
        %v3579 = vmax.f32 %v3137, 0.0
        %v3580 = vmax.f32 %v3142, 0.0
        %v3581 = vmax.f32 %v3147, 0.0
        %v3582 = vmax.f32 %v3152, 0.0
        %v3583 = vmax.f32 %v3157, 0.0
        %v3584 = vmax.f32 %v3162, 0.0
        %v3585 = vmax.f32 %v3167, 0.0
        %v3586 = vmax.f32 %v3172, 0.0
        %v3587 = vmax.f32 %v3177, 0.0
        %v3588 = vmax.f32 %v3182, 0.0
        %v3589 = vmax.f32 %v3187, 0.0
        %v3590 = vmax.f32 %v3192, 0.0
        %v3591 = vmax.f32 %v3197, 0.0
        %v3592 = vmax.f32 %v3202, 0.0
        %v3593 = vmax.f32 %v3207, 0.0
        %v3594 = vmax.f32 %v3212, 0.0
        %v3595 = vmax.f32 %v3217, 0.0
        %v3596 = vmax.f32 %v3222, 0.0
        %v3597 = vmax.f32 %v3227, 0.0
        %v3598 = vmax.f32 %v3232, 0.0
        %v3599 = vmax.f32 %v3237, 0.0
        %v3600 = vmax.f32 %v3242, 0.0
        %v3601 = vmax.f32 %v3247, 0.0
        %v3602 = vmax.f32 %v3252, 0.0
        %v3603 = vmax.f32 %v3257, 0.0
        %v3604 = vmax.f32 %v3262, 0.0
        %v3605 = vmax.f32 %v3267, 0.0
        %v3606 = vmax.f32 %v3272, 0.0
        %v3607 = vmax.f32 %v3277, 0.0
        %v3608 = vmax.f32 %v3282, 0.0
        %v3609 = vmax.f32 %v3287, 0.0
        %v3610 = vld [vmem:[%s3] sm:$0x1]
        %v3612 = vlaneseq
        %v3613 = vshrl.u32 %v3612, 7
        %v3614 = vsub.s32 0, %v3613
        %v3615 = vrot.slane %v3610, %v3614
        %v3617 = vmul.f32 %v3290, %v3615
        %v3618 = vmul.f32 %v3291, %v3615
        %v3619 = vmul.f32 %v3292, %v3615
        %v3620 = vmul.f32 %v3293, %v3615
        %v3621 = vmul.f32 %v3294, %v3615
        %v3622 = vmul.f32 %v3295, %v3615
        %v3623 = vmul.f32 %v3296, %v3615
        %v3624 = vmul.f32 %v3297, %v3615
        %v3625 = vmul.f32 %v3298, %v3615
        %v3626 = vmul.f32 %v3299, %v3615
        %v3627 = vmul.f32 %v3300, %v3615
        %v3628 = vmul.f32 %v3301, %v3615
        %v3629 = vmul.f32 %v3302, %v3615
        %v3630 = vmul.f32 %v3303, %v3615
        %v3631 = vmul.f32 %v3304, %v3615
        %v3632 = vmul.f32 %v3305, %v3615
        %v3633 = vmul.f32 %v3306, %v3615
        %v3634 = vmul.f32 %v3307, %v3615
        %v3635 = vmul.f32 %v3308, %v3615
        %v3636 = vmul.f32 %v3309, %v3615
        %v3637 = vmul.f32 %v3310, %v3615
        %v3638 = vmul.f32 %v3311, %v3615
        %v3639 = vmul.f32 %v3312, %v3615
        %v3640 = vmul.f32 %v3313, %v3615
        %v3641 = vmul.f32 %v3314, %v3615
        %v3642 = vmul.f32 %v3315, %v3615
        %v3643 = vmul.f32 %v3316, %v3615
        %v3644 = vmul.f32 %v3317, %v3615
        %v3645 = vmul.f32 %v3318, %v3615
        %v3646 = vmul.f32 %v3319, %v3615
        %v3647 = vmul.f32 %v3320, %v3615
        %v3648 = vmul.f32 %v3321, %v3615
        %v3649 = vmul.f32 %v3322, %v3615
        %v3650 = vmul.f32 %v3323, %v3615
        %v3651 = vmul.f32 %v3324, %v3615
        %v3652 = vmul.f32 %v3325, %v3615
        %v3653 = vmul.f32 %v3326, %v3615
        %v3654 = vmul.f32 %v3327, %v3615
        %v3655 = vmul.f32 %v3328, %v3615
        %v3656 = vmul.f32 %v3329, %v3615
        %v3657 = vmul.f32 %v3330, %v3615
        %v3658 = vmul.f32 %v3331, %v3615
        %v3659 = vmul.f32 %v3332, %v3615
        %v3660 = vmul.f32 %v3333, %v3615
        %v3661 = vmul.f32 %v3334, %v3615
        %v3662 = vmul.f32 %v3335, %v3615
        %v3663 = vmul.f32 %v3336, %v3615
        %v3664 = vmul.f32 %v3337, %v3615
        %v3665 = vmul.f32 %v3338, %v3615
        %v3666 = vmul.f32 %v3339, %v3615
        %v3667 = vmul.f32 %v3340, %v3615
        %v3668 = vmul.f32 %v3341, %v3615
        %v3669 = vmul.f32 %v3342, %v3615
        %v3670 = vmul.f32 %v3343, %v3615
        %v3671 = vmul.f32 %v3344, %v3615
        %v3672 = vmul.f32 %v3345, %v3615
        %v3673 = vmul.f32 %v3346, %v3615
        %v3674 = vmul.f32 %v3347, %v3615
        %v3675 = vmul.f32 %v3348, %v3615
        %v3676 = vmul.f32 %v3349, %v3615
        %v3677 = vmul.f32 %v3350, %v3615
        %v3678 = vmul.f32 %v3351, %v3615
        %v3679 = vmul.f32 %v3352, %v3615
        %v3680 = vmul.f32 %v3353, %v3615
        %v3681 = vmul.f32 %v3354, %v3615
        %v3682 = vmul.f32 %v3355, %v3615
        %v3683 = vmul.f32 %v3356, %v3615
        %v3684 = vmul.f32 %v3357, %v3615
        %v3685 = vmul.f32 %v3358, %v3615
        %v3686 = vmul.f32 %v3359, %v3615
        %v3687 = vmul.f32 %v3360, %v3615
        %v3688 = vmul.f32 %v3361, %v3615
        %v3689 = vmul.f32 %v3362, %v3615
        %v3690 = vmul.f32 %v3363, %v3615
        %v3691 = vmul.f32 %v3364, %v3615
        %v3692 = vmul.f32 %v3365, %v3615
        %v3693 = vmul.f32 %v3366, %v3615
        %v3694 = vmul.f32 %v3367, %v3615
        %v3695 = vmul.f32 %v3368, %v3615
        %v3696 = vmul.f32 %v3369, %v3615
        %v3697 = vmul.f32 %v3370, %v3615
        %v3698 = vmul.f32 %v3371, %v3615
        %v3699 = vmul.f32 %v3372, %v3615
        %v3700 = vmul.f32 %v3373, %v3615
        %v3701 = vmul.f32 %v3374, %v3615
        %v3702 = vmul.f32 %v3375, %v3615
        %v3703 = vmul.f32 %v3376, %v3615
        %v3704 = vmul.f32 %v3377, %v3615
        %v3705 = vmul.f32 %v3378, %v3615
        %v3706 = vmul.f32 %v3379, %v3615
        %v3707 = vmul.f32 %v3380, %v3615
        %v3708 = vmul.f32 %v3381, %v3615
        %v3709 = vmul.f32 %v3382, %v3615
        %v3710 = vmul.f32 %v3383, %v3615
        %v3711 = vmul.f32 %v3384, %v3615
        %v3712 = vmul.f32 %v3385, %v3615
        %v3713 = vmul.f32 %v3386, %v3615
        %v3714 = vmul.f32 %v3387, %v3615
        %v3715 = vmul.f32 %v3388, %v3615
        %v3716 = vmul.f32 %v3389, %v3615
        %v3717 = vmul.f32 %v3390, %v3615
        %v3718 = vmul.f32 %v3391, %v3615
        %v3719 = vmul.f32 %v3392, %v3615
        %v3720 = vmul.f32 %v3393, %v3615
        %v3721 = vmul.f32 %v3394, %v3615
        %v3722 = vmul.f32 %v3395, %v3615
        %v3723 = vmul.f32 %v3396, %v3615
        %v3724 = vmul.f32 %v3397, %v3615
        %v3725 = vmul.f32 %v3398, %v3615
        %v3726 = vmul.f32 %v3399, %v3615
        %v3727 = vmul.f32 %v3400, %v3615
        %v3728 = vmul.f32 %v3401, %v3615
        %v3729 = vmul.f32 %v3402, %v3615
        %v3730 = vmul.f32 %v3403, %v3615
        %v3731 = vmul.f32 %v3404, %v3615
        %v3732 = vmul.f32 %v3405, %v3615
        %v3733 = vmul.f32 %v3406, %v3615
        %v3734 = vmul.f32 %v3407, %v3615
        %v3735 = vmul.f32 %v3408, %v3615
        %v3736 = vmul.f32 %v3409, %v3615
        %v3737 = vmul.f32 %v3410, %v3615
        %v3738 = vmul.f32 %v3411, %v3615
        %v3739 = vmul.f32 %v3412, %v3615
        %v3740 = vmul.f32 %v3413, %v3615
        %v3741 = vmul.f32 %v3414, %v3615
        %v3742 = vmul.f32 %v3415, %v3615
        %v3743 = vmul.f32 %v3416, %v3615
        %v3744 = vmul.f32 %v3417, %v3615
        %v3745 = vmul.f32 %v3418, %v3615
        %v3746 = vmul.f32 %v3419, %v3615
        %v3747 = vmul.f32 %v3420, %v3615
        %v3748 = vmul.f32 %v3421, %v3615
        %v3749 = vmul.f32 %v3422, %v3615
        %v3750 = vmul.f32 %v3423, %v3615
        %v3751 = vmul.f32 %v3424, %v3615
        %v3752 = vmul.f32 %v3425, %v3615
        %v3753 = vmul.f32 %v3426, %v3615
        %v3754 = vmul.f32 %v3427, %v3615
        %v3755 = vmul.f32 %v3428, %v3615
        %v3756 = vmul.f32 %v3429, %v3615
        %v3757 = vmul.f32 %v3430, %v3615
        %v3758 = vmul.f32 %v3431, %v3615
        %v3759 = vmul.f32 %v3432, %v3615
        %v3760 = vmul.f32 %v3433, %v3615
        %v3761 = vmul.f32 %v3434, %v3615
        %v3762 = vmul.f32 %v3435, %v3615
        %v3763 = vmul.f32 %v3436, %v3615
        %v3764 = vmul.f32 %v3437, %v3615
        %v3765 = vmul.f32 %v3438, %v3615
        %v3766 = vmul.f32 %v3439, %v3615
        %v3767 = vmul.f32 %v3440, %v3615
        %v3768 = vmul.f32 %v3441, %v3615
        %v3769 = vmul.f32 %v3442, %v3615
        %v3770 = vmul.f32 %v3443, %v3615
        %v3771 = vmul.f32 %v3444, %v3615
        %v3772 = vmul.f32 %v3445, %v3615
        %v3773 = vmul.f32 %v3446, %v3615
        %v3774 = vmul.f32 %v3447, %v3615
        %v3775 = vmul.f32 %v3448, %v3615
        %v3776 = vmul.f32 %v3449, %v3615
        %v3777 = vmul.f32 %v3450, %v3615
        %v3778 = vmul.f32 %v3451, %v3615
        %v3779 = vmul.f32 %v3452, %v3615
        %v3780 = vmul.f32 %v3453, %v3615
        %v3781 = vmul.f32 %v3454, %v3615
        %v3782 = vmul.f32 %v3455, %v3615
        %v3783 = vmul.f32 %v3456, %v3615
        %v3784 = vmul.f32 %v3457, %v3615
        %v3785 = vmul.f32 %v3458, %v3615
        %v3786 = vmul.f32 %v3459, %v3615
        %v3787 = vmul.f32 %v3460, %v3615
        %v3788 = vmul.f32 %v3461, %v3615
        %v3789 = vmul.f32 %v3462, %v3615
        %v3790 = vmul.f32 %v3463, %v3615
        %v3791 = vmul.f32 %v3464, %v3615
        %v3792 = vmul.f32 %v3465, %v3615
        %v3793 = vmul.f32 %v3466, %v3615
        %v3794 = vmul.f32 %v3467, %v3615
        %v3795 = vmul.f32 %v3468, %v3615
        %v3796 = vmul.f32 %v3469, %v3615
        %v3797 = vmul.f32 %v3470, %v3615
        %v3798 = vmul.f32 %v3471, %v3615
        %v3799 = vmul.f32 %v3472, %v3615
        %v3800 = vmul.f32 %v3473, %v3615
        %v3801 = vmul.f32 %v3474, %v3615
        %v3802 = vmul.f32 %v3475, %v3615
        %v3803 = vmul.f32 %v3476, %v3615
        %v3804 = vmul.f32 %v3477, %v3615
        %v3805 = vmul.f32 %v3478, %v3615
        %v3806 = vmul.f32 %v3479, %v3615
        %v3807 = vmul.f32 %v3480, %v3615
        %v3808 = vmul.f32 %v3481, %v3615
        %v3809 = vmul.f32 %v3482, %v3615
        %v3810 = vmul.f32 %v3483, %v3615
        %v3811 = vmul.f32 %v3484, %v3615
        %v3812 = vmul.f32 %v3485, %v3615
        %v3813 = vmul.f32 %v3486, %v3615
        %v3814 = vmul.f32 %v3487, %v3615
        %v3815 = vmul.f32 %v3488, %v3615
        %v3816 = vmul.f32 %v3489, %v3615
        %v3817 = vmul.f32 %v3490, %v3615
        %v3818 = vmul.f32 %v3491, %v3615
        %v3819 = vmul.f32 %v3492, %v3615
        %v3820 = vmul.f32 %v3493, %v3615
        %v3821 = vmul.f32 %v3494, %v3615
        %v3822 = vmul.f32 %v3495, %v3615
        %v3823 = vmul.f32 %v3496, %v3615
        %v3824 = vmul.f32 %v3497, %v3615
        %v3825 = vmul.f32 %v3498, %v3615
        %v3826 = vmul.f32 %v3499, %v3615
        %v3827 = vmul.f32 %v3500, %v3615
        %v3828 = vmul.f32 %v3501, %v3615
        %v3829 = vmul.f32 %v3502, %v3615
        %v3830 = vmul.f32 %v3503, %v3615
        %v3831 = vmul.f32 %v3504, %v3615
        %v3832 = vmul.f32 %v3505, %v3615
        %v3833 = vmul.f32 %v3506, %v3615
        %v3834 = vmul.f32 %v3507, %v3615
        %v3835 = vmul.f32 %v3508, %v3615
        %v3836 = vmul.f32 %v3509, %v3615
        %v3837 = vmul.f32 %v3510, %v3615
        %v3838 = vmul.f32 %v3511, %v3615
        %v3839 = vmul.f32 %v3512, %v3615
        %v3840 = vmul.f32 %v3513, %v3615
        %v3841 = vmul.f32 %v3514, %v3615
        %v3842 = vmul.f32 %v3515, %v3615
        %v3843 = vmul.f32 %v3516, %v3615
        %v3844 = vmul.f32 %v3517, %v3615
        %v3845 = vmul.f32 %v3518, %v3615
        %v3846 = vmul.f32 %v3519, %v3615
        %v3847 = vmul.f32 %v3520, %v3615
        %v3848 = vmul.f32 %v3521, %v3615
        %v3849 = vmul.f32 %v3522, %v3615
        %v3850 = vmul.f32 %v3523, %v3615
        %v3851 = vmul.f32 %v3524, %v3615
        %v3852 = vmul.f32 %v3525, %v3615
        %v3853 = vmul.f32 %v3526, %v3615
        %v3854 = vmul.f32 %v3527, %v3615
        %v3855 = vmul.f32 %v3528, %v3615
        %v3856 = vmul.f32 %v3529, %v3615
        %v3857 = vmul.f32 %v3530, %v3615
        %v3858 = vmul.f32 %v3531, %v3615
        %v3859 = vmul.f32 %v3532, %v3615
        %v3860 = vmul.f32 %v3533, %v3615
        %v3861 = vmul.f32 %v3534, %v3615
        %v3862 = vmul.f32 %v3535, %v3615
        %v3863 = vmul.f32 %v3536, %v3615
        %v3864 = vmul.f32 %v3537, %v3615
        %v3865 = vmul.f32 %v3538, %v3615
        %v3866 = vmul.f32 %v3539, %v3615
        %v3867 = vmul.f32 %v3540, %v3615
        %v3868 = vmul.f32 %v3541, %v3615
        %v3869 = vmul.f32 %v3542, %v3615
        %v3870 = vmul.f32 %v3543, %v3615
        %v3871 = vmul.f32 %v3544, %v3615
        %v3872 = vmul.f32 %v3545, %v3615
        %v3873 = vmul.f32 %v3546, %v3615
        %v3874 = vmul.f32 %v3547, %v3615
        %v3875 = vmul.f32 %v3548, %v3615
        %v3876 = vmul.f32 %v3549, %v3615
        %v3877 = vmul.f32 %v3550, %v3615
        %v3878 = vmul.f32 %v3551, %v3615
        %v3879 = vmul.f32 %v3552, %v3615
        %v3880 = vmul.f32 %v3553, %v3615
        %v3881 = vmul.f32 %v3554, %v3615
        %v3882 = vmul.f32 %v3555, %v3615
        %v3883 = vmul.f32 %v3556, %v3615
        %v3884 = vmul.f32 %v3557, %v3615
        %v3885 = vmul.f32 %v3558, %v3615
        %v3886 = vmul.f32 %v3559, %v3615
        %v3887 = vmul.f32 %v3560, %v3615
        %v3888 = vmul.f32 %v3561, %v3615
        %v3889 = vmul.f32 %v3562, %v3615
        %v3890 = vmul.f32 %v3563, %v3615
        %v3891 = vmul.f32 %v3564, %v3615
        %v3892 = vmul.f32 %v3565, %v3615
        %v3893 = vmul.f32 %v3566, %v3615
        %v3894 = vmul.f32 %v3567, %v3615
        %v3895 = vmul.f32 %v3568, %v3615
        %v3896 = vmul.f32 %v3569, %v3615
        %v3897 = vmul.f32 %v3570, %v3615
        %v3898 = vmul.f32 %v3571, %v3615
        %v3899 = vmul.f32 %v3572, %v3615
        %v3900 = vmul.f32 %v3573, %v3615
        %v3901 = vmul.f32 %v3574, %v3615
        %v3902 = vmul.f32 %v3575, %v3615
        %v3903 = vmul.f32 %v3576, %v3615
        %v3904 = vmul.f32 %v3577, %v3615
        %v3905 = vmul.f32 %v3578, %v3615
        %v3906 = vmul.f32 %v3579, %v3615
        %v3907 = vmul.f32 %v3580, %v3615
        %v3908 = vmul.f32 %v3581, %v3615
        %v3909 = vmul.f32 %v3582, %v3615
        %v3910 = vmul.f32 %v3583, %v3615
        %v3911 = vmul.f32 %v3584, %v3615
        %v3912 = vmul.f32 %v3585, %v3615
        %v3913 = vmul.f32 %v3586, %v3615
        %v3914 = vmul.f32 %v3587, %v3615
        %v3915 = vmul.f32 %v3588, %v3615
        %v3916 = vmul.f32 %v3589, %v3615
        %v3917 = vmul.f32 %v3590, %v3615
        %v3918 = vmul.f32 %v3591, %v3615
        %v3919 = vmul.f32 %v3592, %v3615
        %v3920 = vmul.f32 %v3593, %v3615
        %v3921 = vmul.f32 %v3594, %v3615
        %v3922 = vmul.f32 %v3595, %v3615
        %v3923 = vmul.f32 %v3596, %v3615
        %v3924 = vmul.f32 %v3597, %v3615
        %v3925 = vmul.f32 %v3598, %v3615
        %v3926 = vmul.f32 %v3599, %v3615
        %v3927 = vmul.f32 %v3600, %v3615
        %v3928 = vmul.f32 %v3601, %v3615
        %v3929 = vmul.f32 %v3602, %v3615
        %v3930 = vmul.f32 %v3603, %v3615
        %v3931 = vmul.f32 %v3604, %v3615
        %v3932 = vmul.f32 %v3605, %v3615
        %v3933 = vmul.f32 %v3606, %v3615
        %v3934 = vmul.f32 %v3607, %v3615
        %v3935 = vmul.f32 %v3608, %v3615
        %v3936 = vmul.f32 %v3609, %v3615
        %vm3937 = vcmask 523264
        %v3938 = vsel %vm3937, %v3617, 0.0
        %3939 = vadd.xlane.f32.xlu0 %v3938
        %v3940 = vpop.xlane.xlu0 %3939
        %v3941 = vsel %vm3937, %v3618, 0.0
        %3942 = vadd.xlane.f32.xlu0 %v3941
        %v3943 = vpop.xlane.xlu0 %3942
        %v3944 = vsel %vm3937, %v3619, 0.0
        %3945 = vadd.xlane.f32.xlu0 %v3944
        %v3946 = vpop.xlane.xlu0 %3945
        %v3947 = vsel %vm3937, %v3620, 0.0
        %3948 = vadd.xlane.f32.xlu0 %v3947
        %v3949 = vpop.xlane.xlu0 %3948
        %v3950 = vsel %vm3937, %v3621, 0.0
        %3951 = vadd.xlane.f32.xlu0 %v3950
        %v3952 = vpop.xlane.xlu0 %3951
        %v3953 = vsel %vm3937, %v3622, 0.0
        %3954 = vadd.xlane.f32.xlu0 %v3953
        %v3955 = vpop.xlane.xlu0 %3954
        %v3956 = vsel %vm3937, %v3623, 0.0
        %3957 = vadd.xlane.f32.xlu0 %v3956
        %v3958 = vpop.xlane.xlu0 %3957
        %v3959 = vsel %vm3937, %v3624, 0.0
        %3960 = vadd.xlane.f32.xlu0 %v3959
        %v3961 = vpop.xlane.xlu0 %3960
        %v3962 = vsel %vm3937, %v3625, 0.0
        %3963 = vadd.xlane.f32.xlu0 %v3962
        %v3964 = vpop.xlane.xlu0 %3963
        %v3965 = vsel %vm3937, %v3626, 0.0
        %3966 = vadd.xlane.f32.xlu0 %v3965
        %v3967 = vpop.xlane.xlu0 %3966
        %v3968 = vsel %vm3937, %v3627, 0.0
        %3969 = vadd.xlane.f32.xlu0 %v3968
        %v3970 = vpop.xlane.xlu0 %3969
        %v3971 = vsel %vm3937, %v3628, 0.0
        %3972 = vadd.xlane.f32.xlu0 %v3971
        %v3973 = vpop.xlane.xlu0 %3972
        %v3974 = vsel %vm3937, %v3629, 0.0
        %3975 = vadd.xlane.f32.xlu0 %v3974
        %v3976 = vpop.xlane.xlu0 %3975
        %v3977 = vsel %vm3937, %v3630, 0.0
        %3978 = vadd.xlane.f32.xlu0 %v3977
        %v3979 = vpop.xlane.xlu0 %3978
        %v3980 = vsel %vm3937, %v3631, 0.0
        %3981 = vadd.xlane.f32.xlu0 %v3980
        %v3982 = vpop.xlane.xlu0 %3981
        %v3983 = vsel %vm3937, %v3632, 0.0
        %3984 = vadd.xlane.f32.xlu0 %v3983
        %v3985 = vpop.xlane.xlu0 %3984
        %v3986 = vsel %vm3937, %v3633, 0.0
        %3987 = vadd.xlane.f32.xlu0 %v3986
        %v3988 = vpop.xlane.xlu0 %3987
        %v3989 = vsel %vm3937, %v3634, 0.0
        %3990 = vadd.xlane.f32.xlu0 %v3989
        %v3991 = vpop.xlane.xlu0 %3990
        %v3992 = vsel %vm3937, %v3635, 0.0
        %3993 = vadd.xlane.f32.xlu0 %v3992
        %v3994 = vpop.xlane.xlu0 %3993
        %v3995 = vsel %vm3937, %v3636, 0.0
        %3996 = vadd.xlane.f32.xlu0 %v3995
        %v3997 = vpop.xlane.xlu0 %3996
        %v3998 = vsel %vm3937, %v3637, 0.0
        %3999 = vadd.xlane.f32.xlu0 %v3998
        %v4000 = vpop.xlane.xlu0 %3999
        %v4001 = vsel %vm3937, %v3638, 0.0
        %4002 = vadd.xlane.f32.xlu0 %v4001
        %v4003 = vpop.xlane.xlu0 %4002
        %v4004 = vsel %vm3937, %v3639, 0.0
        %4005 = vadd.xlane.f32.xlu0 %v4004
        %v4006 = vpop.xlane.xlu0 %4005
        %v4007 = vsel %vm3937, %v3640, 0.0
        %4008 = vadd.xlane.f32.xlu0 %v4007
        %v4009 = vpop.xlane.xlu0 %4008
        %v4010 = vsel %vm3937, %v3641, 0.0
        %4011 = vadd.xlane.f32.xlu0 %v4010
        %v4012 = vpop.xlane.xlu0 %4011
        %v4013 = vsel %vm3937, %v3642, 0.0
        %4014 = vadd.xlane.f32.xlu0 %v4013
        %v4015 = vpop.xlane.xlu0 %4014
        %v4016 = vsel %vm3937, %v3643, 0.0
        %4017 = vadd.xlane.f32.xlu0 %v4016
        %v4018 = vpop.xlane.xlu0 %4017
        %v4019 = vsel %vm3937, %v3644, 0.0
        %4020 = vadd.xlane.f32.xlu0 %v4019
        %v4021 = vpop.xlane.xlu0 %4020
        %v4022 = vsel %vm3937, %v3645, 0.0
        %4023 = vadd.xlane.f32.xlu0 %v4022
        %v4024 = vpop.xlane.xlu0 %4023
        %v4025 = vsel %vm3937, %v3646, 0.0
        %4026 = vadd.xlane.f32.xlu0 %v4025
        %v4027 = vpop.xlane.xlu0 %4026
        %v4028 = vsel %vm3937, %v3647, 0.0
        %4029 = vadd.xlane.f32.xlu0 %v4028
        %v4030 = vpop.xlane.xlu0 %4029
        %v4031 = vsel %vm3937, %v3648, 0.0
        %4032 = vadd.xlane.f32.xlu0 %v4031
        %v4033 = vpop.xlane.xlu0 %4032
        %v4034 = vsel %vm3937, %v3649, 0.0
        %4035 = vadd.xlane.f32.xlu0 %v4034
        %v4036 = vpop.xlane.xlu0 %4035
        %v4037 = vsel %vm3937, %v3650, 0.0
        %4038 = vadd.xlane.f32.xlu0 %v4037
        %v4039 = vpop.xlane.xlu0 %4038
        %v4040 = vsel %vm3937, %v3651, 0.0
        %4041 = vadd.xlane.f32.xlu0 %v4040
        %v4042 = vpop.xlane.xlu0 %4041
        %v4043 = vsel %vm3937, %v3652, 0.0
        %4044 = vadd.xlane.f32.xlu0 %v4043
        %v4045 = vpop.xlane.xlu0 %4044
        %v4046 = vsel %vm3937, %v3653, 0.0
        %4047 = vadd.xlane.f32.xlu0 %v4046
        %v4048 = vpop.xlane.xlu0 %4047
        %v4049 = vsel %vm3937, %v3654, 0.0
        %4050 = vadd.xlane.f32.xlu0 %v4049
        %v4051 = vpop.xlane.xlu0 %4050
        %v4052 = vsel %vm3937, %v3655, 0.0
        %4053 = vadd.xlane.f32.xlu0 %v4052
        %v4054 = vpop.xlane.xlu0 %4053
        %v4055 = vsel %vm3937, %v3656, 0.0
        %4056 = vadd.xlane.f32.xlu0 %v4055
        %v4057 = vpop.xlane.xlu0 %4056
        %v4058 = vsel %vm3937, %v3657, 0.0
        %4059 = vadd.xlane.f32.xlu0 %v4058
        %v4060 = vpop.xlane.xlu0 %4059
        %v4061 = vsel %vm3937, %v3658, 0.0
        %4062 = vadd.xlane.f32.xlu0 %v4061
        %v4063 = vpop.xlane.xlu0 %4062
        %v4064 = vsel %vm3937, %v3659, 0.0
        %4065 = vadd.xlane.f32.xlu0 %v4064
        %v4066 = vpop.xlane.xlu0 %4065
        %v4067 = vsel %vm3937, %v3660, 0.0
        %4068 = vadd.xlane.f32.xlu0 %v4067
        %v4069 = vpop.xlane.xlu0 %4068
        %v4070 = vsel %vm3937, %v3661, 0.0
        %4071 = vadd.xlane.f32.xlu0 %v4070
        %v4072 = vpop.xlane.xlu0 %4071
        %v4073 = vsel %vm3937, %v3662, 0.0
        %4074 = vadd.xlane.f32.xlu0 %v4073
        %v4075 = vpop.xlane.xlu0 %4074
        %v4076 = vsel %vm3937, %v3663, 0.0
        %4077 = vadd.xlane.f32.xlu0 %v4076
        %v4078 = vpop.xlane.xlu0 %4077
        %v4079 = vsel %vm3937, %v3664, 0.0
        %4080 = vadd.xlane.f32.xlu0 %v4079
        %v4081 = vpop.xlane.xlu0 %4080
        %v4082 = vsel %vm3937, %v3665, 0.0
        %4083 = vadd.xlane.f32.xlu0 %v4082
        %v4084 = vpop.xlane.xlu0 %4083
        %v4085 = vsel %vm3937, %v3666, 0.0
        %4086 = vadd.xlane.f32.xlu0 %v4085
        %v4087 = vpop.xlane.xlu0 %4086
        %v4088 = vsel %vm3937, %v3667, 0.0
        %4089 = vadd.xlane.f32.xlu0 %v4088
        %v4090 = vpop.xlane.xlu0 %4089
        %v4091 = vsel %vm3937, %v3668, 0.0
        %4092 = vadd.xlane.f32.xlu0 %v4091
        %v4093 = vpop.xlane.xlu0 %4092
        %v4094 = vsel %vm3937, %v3669, 0.0
        %4095 = vadd.xlane.f32.xlu0 %v4094
        %v4096 = vpop.xlane.xlu0 %4095
        %v4097 = vsel %vm3937, %v3670, 0.0
        %4098 = vadd.xlane.f32.xlu0 %v4097
        %v4099 = vpop.xlane.xlu0 %4098
        %v4100 = vsel %vm3937, %v3671, 0.0
        %4101 = vadd.xlane.f32.xlu0 %v4100
        %v4102 = vpop.xlane.xlu0 %4101
        %v4103 = vsel %vm3937, %v3672, 0.0
        %4104 = vadd.xlane.f32.xlu0 %v4103
        %v4105 = vpop.xlane.xlu0 %4104
        %v4106 = vsel %vm3937, %v3673, 0.0
        %4107 = vadd.xlane.f32.xlu0 %v4106
        %v4108 = vpop.xlane.xlu0 %4107
        %v4109 = vsel %vm3937, %v3674, 0.0
        %4110 = vadd.xlane.f32.xlu0 %v4109
        %v4111 = vpop.xlane.xlu0 %4110
        %v4112 = vsel %vm3937, %v3675, 0.0
        %4113 = vadd.xlane.f32.xlu0 %v4112
        %v4114 = vpop.xlane.xlu0 %4113
        %v4115 = vsel %vm3937, %v3676, 0.0
        %4116 = vadd.xlane.f32.xlu0 %v4115
        %v4117 = vpop.xlane.xlu0 %4116
        %v4118 = vsel %vm3937, %v3677, 0.0
        %4119 = vadd.xlane.f32.xlu0 %v4118
        %v4120 = vpop.xlane.xlu0 %4119
        %v4121 = vsel %vm3937, %v3678, 0.0
        %4122 = vadd.xlane.f32.xlu0 %v4121
        %v4123 = vpop.xlane.xlu0 %4122
        %v4124 = vsel %vm3937, %v3679, 0.0
        %4125 = vadd.xlane.f32.xlu0 %v4124
        %v4126 = vpop.xlane.xlu0 %4125
        %v4127 = vsel %vm3937, %v3680, 0.0
        %4128 = vadd.xlane.f32.xlu0 %v4127
        %v4129 = vpop.xlane.xlu0 %4128
        %v4130 = vsel %vm3937, %v3681, 0.0
        %4131 = vadd.xlane.f32.xlu0 %v4130
        %v4132 = vpop.xlane.xlu0 %4131
        %v4133 = vsel %vm3937, %v3682, 0.0
        %4134 = vadd.xlane.f32.xlu0 %v4133
        %v4135 = vpop.xlane.xlu0 %4134
        %v4136 = vsel %vm3937, %v3683, 0.0
        %4137 = vadd.xlane.f32.xlu0 %v4136
        %v4138 = vpop.xlane.xlu0 %4137
        %v4139 = vsel %vm3937, %v3684, 0.0
        %4140 = vadd.xlane.f32.xlu0 %v4139
        %v4141 = vpop.xlane.xlu0 %4140
        %v4142 = vsel %vm3937, %v3685, 0.0
        %4143 = vadd.xlane.f32.xlu0 %v4142
        %v4144 = vpop.xlane.xlu0 %4143
        %v4145 = vsel %vm3937, %v3686, 0.0
        %4146 = vadd.xlane.f32.xlu0 %v4145
        %v4147 = vpop.xlane.xlu0 %4146
        %v4148 = vsel %vm3937, %v3687, 0.0
        %4149 = vadd.xlane.f32.xlu0 %v4148
        %v4150 = vpop.xlane.xlu0 %4149
        %v4151 = vsel %vm3937, %v3688, 0.0
        %4152 = vadd.xlane.f32.xlu0 %v4151
        %v4153 = vpop.xlane.xlu0 %4152
        %v4154 = vsel %vm3937, %v3689, 0.0
        %4155 = vadd.xlane.f32.xlu0 %v4154
        %v4156 = vpop.xlane.xlu0 %4155
        %v4157 = vsel %vm3937, %v3690, 0.0
        %4158 = vadd.xlane.f32.xlu0 %v4157
        %v4159 = vpop.xlane.xlu0 %4158
        %v4160 = vsel %vm3937, %v3691, 0.0
        %4161 = vadd.xlane.f32.xlu0 %v4160
        %v4162 = vpop.xlane.xlu0 %4161
        %v4163 = vsel %vm3937, %v3692, 0.0
        %4164 = vadd.xlane.f32.xlu0 %v4163
        %v4165 = vpop.xlane.xlu0 %4164
        %v4166 = vsel %vm3937, %v3693, 0.0
        %4167 = vadd.xlane.f32.xlu0 %v4166
        %v4168 = vpop.xlane.xlu0 %4167
        %v4169 = vsel %vm3937, %v3694, 0.0
        %4170 = vadd.xlane.f32.xlu0 %v4169
        %v4171 = vpop.xlane.xlu0 %4170
        %v4172 = vsel %vm3937, %v3695, 0.0
        %4173 = vadd.xlane.f32.xlu0 %v4172
        %v4174 = vpop.xlane.xlu0 %4173
        %v4175 = vsel %vm3937, %v3696, 0.0
        %4176 = vadd.xlane.f32.xlu0 %v4175
        %v4177 = vpop.xlane.xlu0 %4176
        %v4178 = vsel %vm3937, %v3697, 0.0
        %4179 = vadd.xlane.f32.xlu0 %v4178
        %v4180 = vpop.xlane.xlu0 %4179
        %v4181 = vsel %vm3937, %v3698, 0.0
        %4182 = vadd.xlane.f32.xlu0 %v4181
        %v4183 = vpop.xlane.xlu0 %4182
        %v4184 = vsel %vm3937, %v3699, 0.0
        %4185 = vadd.xlane.f32.xlu0 %v4184
        %v4186 = vpop.xlane.xlu0 %4185
        %v4187 = vsel %vm3937, %v3700, 0.0
        %4188 = vadd.xlane.f32.xlu0 %v4187
        %v4189 = vpop.xlane.xlu0 %4188
        %v4190 = vsel %vm3937, %v3701, 0.0
        %4191 = vadd.xlane.f32.xlu0 %v4190
        %v4192 = vpop.xlane.xlu0 %4191
        %v4193 = vsel %vm3937, %v3702, 0.0
        %4194 = vadd.xlane.f32.xlu0 %v4193
        %v4195 = vpop.xlane.xlu0 %4194
        %v4196 = vsel %vm3937, %v3703, 0.0
        %4197 = vadd.xlane.f32.xlu0 %v4196
        %v4198 = vpop.xlane.xlu0 %4197
        %v4199 = vsel %vm3937, %v3704, 0.0
        %4200 = vadd.xlane.f32.xlu0 %v4199
        %v4201 = vpop.xlane.xlu0 %4200
        %v4202 = vsel %vm3937, %v3705, 0.0
        %4203 = vadd.xlane.f32.xlu0 %v4202
        %v4204 = vpop.xlane.xlu0 %4203
        %v4205 = vsel %vm3937, %v3706, 0.0
        %4206 = vadd.xlane.f32.xlu0 %v4205
        %v4207 = vpop.xlane.xlu0 %4206
        %v4208 = vsel %vm3937, %v3707, 0.0
        %4209 = vadd.xlane.f32.xlu0 %v4208
        %v4210 = vpop.xlane.xlu0 %4209
        %v4211 = vsel %vm3937, %v3708, 0.0
        %4212 = vadd.xlane.f32.xlu0 %v4211
        %v4213 = vpop.xlane.xlu0 %4212
        %v4214 = vsel %vm3937, %v3709, 0.0
        %4215 = vadd.xlane.f32.xlu0 %v4214
        %v4216 = vpop.xlane.xlu0 %4215
        %v4217 = vsel %vm3937, %v3710, 0.0
        %4218 = vadd.xlane.f32.xlu0 %v4217
        %v4219 = vpop.xlane.xlu0 %4218
        %v4220 = vsel %vm3937, %v3711, 0.0
        %4221 = vadd.xlane.f32.xlu0 %v4220
        %v4222 = vpop.xlane.xlu0 %4221
        %v4223 = vsel %vm3937, %v3712, 0.0
        %4224 = vadd.xlane.f32.xlu0 %v4223
        %v4225 = vpop.xlane.xlu0 %4224
        %v4226 = vsel %vm3937, %v3713, 0.0
        %4227 = vadd.xlane.f32.xlu0 %v4226
        %v4228 = vpop.xlane.xlu0 %4227
        %v4229 = vsel %vm3937, %v3714, 0.0
        %4230 = vadd.xlane.f32.xlu0 %v4229
        %v4231 = vpop.xlane.xlu0 %4230
        %v4232 = vsel %vm3937, %v3715, 0.0
        %4233 = vadd.xlane.f32.xlu0 %v4232
        %v4234 = vpop.xlane.xlu0 %4233
        %v4235 = vsel %vm3937, %v3716, 0.0
        %4236 = vadd.xlane.f32.xlu0 %v4235
        %v4237 = vpop.xlane.xlu0 %4236
        %v4238 = vsel %vm3937, %v3717, 0.0
        %4239 = vadd.xlane.f32.xlu0 %v4238
        %v4240 = vpop.xlane.xlu0 %4239
        %v4241 = vsel %vm3937, %v3718, 0.0
        %4242 = vadd.xlane.f32.xlu0 %v4241
        %v4243 = vpop.xlane.xlu0 %4242
        %v4244 = vsel %vm3937, %v3719, 0.0
        %4245 = vadd.xlane.f32.xlu0 %v4244
        %v4246 = vpop.xlane.xlu0 %4245
        %v4247 = vsel %vm3937, %v3720, 0.0
        %4248 = vadd.xlane.f32.xlu0 %v4247
        %v4249 = vpop.xlane.xlu0 %4248
        %v4250 = vsel %vm3937, %v3721, 0.0
        %4251 = vadd.xlane.f32.xlu0 %v4250
        %v4252 = vpop.xlane.xlu0 %4251
        %v4253 = vsel %vm3937, %v3722, 0.0
        %4254 = vadd.xlane.f32.xlu0 %v4253
        %v4255 = vpop.xlane.xlu0 %4254
        %v4256 = vsel %vm3937, %v3723, 0.0
        %4257 = vadd.xlane.f32.xlu0 %v4256
        %v4258 = vpop.xlane.xlu0 %4257
        %v4259 = vsel %vm3937, %v3724, 0.0
        %4260 = vadd.xlane.f32.xlu0 %v4259
        %v4261 = vpop.xlane.xlu0 %4260
        %v4262 = vsel %vm3937, %v3725, 0.0
        %4263 = vadd.xlane.f32.xlu0 %v4262
        %v4264 = vpop.xlane.xlu0 %4263
        %v4265 = vsel %vm3937, %v3726, 0.0
        %4266 = vadd.xlane.f32.xlu0 %v4265
        %v4267 = vpop.xlane.xlu0 %4266
        %v4268 = vsel %vm3937, %v3727, 0.0
        %4269 = vadd.xlane.f32.xlu0 %v4268
        %v4270 = vpop.xlane.xlu0 %4269
        %v4271 = vsel %vm3937, %v3728, 0.0
        %4272 = vadd.xlane.f32.xlu0 %v4271
        %v4273 = vpop.xlane.xlu0 %4272
        %v4274 = vsel %vm3937, %v3729, 0.0
        %4275 = vadd.xlane.f32.xlu0 %v4274
        %v4276 = vpop.xlane.xlu0 %4275
        %v4277 = vsel %vm3937, %v3730, 0.0
        %4278 = vadd.xlane.f32.xlu0 %v4277
        %v4279 = vpop.xlane.xlu0 %4278
        %v4280 = vsel %vm3937, %v3731, 0.0
        %4281 = vadd.xlane.f32.xlu0 %v4280
        %v4282 = vpop.xlane.xlu0 %4281
        %v4283 = vsel %vm3937, %v3732, 0.0
        %4284 = vadd.xlane.f32.xlu0 %v4283
        %v4285 = vpop.xlane.xlu0 %4284
        %v4286 = vsel %vm3937, %v3733, 0.0
        %4287 = vadd.xlane.f32.xlu0 %v4286
        %v4288 = vpop.xlane.xlu0 %4287
        %v4289 = vsel %vm3937, %v3734, 0.0
        %4290 = vadd.xlane.f32.xlu0 %v4289
        %v4291 = vpop.xlane.xlu0 %4290
        %v4292 = vsel %vm3937, %v3735, 0.0
        %4293 = vadd.xlane.f32.xlu0 %v4292
        %v4294 = vpop.xlane.xlu0 %4293
        %v4295 = vsel %vm3937, %v3736, 0.0
        %4296 = vadd.xlane.f32.xlu0 %v4295
        %v4297 = vpop.xlane.xlu0 %4296
        %v4298 = vsel %vm3937, %v3737, 0.0
        %4299 = vadd.xlane.f32.xlu0 %v4298
        %v4300 = vpop.xlane.xlu0 %4299
        %v4301 = vsel %vm3937, %v3738, 0.0
        %4302 = vadd.xlane.f32.xlu0 %v4301
        %v4303 = vpop.xlane.xlu0 %4302
        %v4304 = vsel %vm3937, %v3739, 0.0
        %4305 = vadd.xlane.f32.xlu0 %v4304
        %v4306 = vpop.xlane.xlu0 %4305
        %v4307 = vsel %vm3937, %v3740, 0.0
        %4308 = vadd.xlane.f32.xlu0 %v4307
        %v4309 = vpop.xlane.xlu0 %4308
        %v4310 = vsel %vm3937, %v3741, 0.0
        %4311 = vadd.xlane.f32.xlu0 %v4310
        %v4312 = vpop.xlane.xlu0 %4311
        %v4313 = vsel %vm3937, %v3742, 0.0
        %4314 = vadd.xlane.f32.xlu0 %v4313
        %v4315 = vpop.xlane.xlu0 %4314
        %v4316 = vsel %vm3937, %v3743, 0.0
        %4317 = vadd.xlane.f32.xlu0 %v4316
        %v4318 = vpop.xlane.xlu0 %4317
        %v4319 = vsel %vm3937, %v3744, 0.0
        %4320 = vadd.xlane.f32.xlu0 %v4319
        %v4321 = vpop.xlane.xlu0 %4320
        %v4322 = vsel %vm3937, %v3745, 0.0
        %4323 = vadd.xlane.f32.xlu0 %v4322
        %v4324 = vpop.xlane.xlu0 %4323
        %v4325 = vsel %vm3937, %v3746, 0.0
        %4326 = vadd.xlane.f32.xlu0 %v4325
        %v4327 = vpop.xlane.xlu0 %4326
        %v4328 = vsel %vm3937, %v3747, 0.0
        %4329 = vadd.xlane.f32.xlu0 %v4328
        %v4330 = vpop.xlane.xlu0 %4329
        %v4331 = vsel %vm3937, %v3748, 0.0
        %4332 = vadd.xlane.f32.xlu0 %v4331
        %v4333 = vpop.xlane.xlu0 %4332
        %v4334 = vsel %vm3937, %v3749, 0.0
        %4335 = vadd.xlane.f32.xlu0 %v4334
        %v4336 = vpop.xlane.xlu0 %4335
        %v4337 = vsel %vm3937, %v3750, 0.0
        %4338 = vadd.xlane.f32.xlu0 %v4337
        %v4339 = vpop.xlane.xlu0 %4338
        %v4340 = vsel %vm3937, %v3751, 0.0
        %4341 = vadd.xlane.f32.xlu0 %v4340
        %v4342 = vpop.xlane.xlu0 %4341
        %v4343 = vsel %vm3937, %v3752, 0.0
        %4344 = vadd.xlane.f32.xlu0 %v4343
        %v4345 = vpop.xlane.xlu0 %4344
        %v4346 = vsel %vm3937, %v3753, 0.0
        %4347 = vadd.xlane.f32.xlu0 %v4346
        %v4348 = vpop.xlane.xlu0 %4347
        %v4349 = vsel %vm3937, %v3754, 0.0
        %4350 = vadd.xlane.f32.xlu0 %v4349
        %v4351 = vpop.xlane.xlu0 %4350
        %v4352 = vsel %vm3937, %v3755, 0.0
        %4353 = vadd.xlane.f32.xlu0 %v4352
        %v4354 = vpop.xlane.xlu0 %4353
        %v4355 = vsel %vm3937, %v3756, 0.0
        %4356 = vadd.xlane.f32.xlu0 %v4355
        %v4357 = vpop.xlane.xlu0 %4356
        %v4358 = vsel %vm3937, %v3757, 0.0
        %4359 = vadd.xlane.f32.xlu0 %v4358
        %v4360 = vpop.xlane.xlu0 %4359
        %v4361 = vsel %vm3937, %v3758, 0.0
        %4362 = vadd.xlane.f32.xlu0 %v4361
        %v4363 = vpop.xlane.xlu0 %4362
        %v4364 = vsel %vm3937, %v3759, 0.0
        %4365 = vadd.xlane.f32.xlu0 %v4364
        %v4366 = vpop.xlane.xlu0 %4365
        %v4367 = vsel %vm3937, %v3760, 0.0
        %4368 = vadd.xlane.f32.xlu0 %v4367
        %v4369 = vpop.xlane.xlu0 %4368
        %v4370 = vsel %vm3937, %v3761, 0.0
        %4371 = vadd.xlane.f32.xlu0 %v4370
        %v4372 = vpop.xlane.xlu0 %4371
        %v4373 = vsel %vm3937, %v3762, 0.0
        %4374 = vadd.xlane.f32.xlu0 %v4373
        %v4375 = vpop.xlane.xlu0 %4374
        %v4376 = vsel %vm3937, %v3763, 0.0
        %4377 = vadd.xlane.f32.xlu0 %v4376
        %v4378 = vpop.xlane.xlu0 %4377
        %v4379 = vsel %vm3937, %v3764, 0.0
        %4380 = vadd.xlane.f32.xlu0 %v4379
        %v4381 = vpop.xlane.xlu0 %4380
        %v4382 = vsel %vm3937, %v3765, 0.0
        %4383 = vadd.xlane.f32.xlu0 %v4382
        %v4384 = vpop.xlane.xlu0 %4383
        %v4385 = vsel %vm3937, %v3766, 0.0
        %4386 = vadd.xlane.f32.xlu0 %v4385
        %v4387 = vpop.xlane.xlu0 %4386
        %v4388 = vsel %vm3937, %v3767, 0.0
        %4389 = vadd.xlane.f32.xlu0 %v4388
        %v4390 = vpop.xlane.xlu0 %4389
        %v4391 = vsel %vm3937, %v3768, 0.0
        %4392 = vadd.xlane.f32.xlu0 %v4391
        %v4393 = vpop.xlane.xlu0 %4392
        %v4394 = vsel %vm3937, %v3769, 0.0
        %4395 = vadd.xlane.f32.xlu0 %v4394
        %v4396 = vpop.xlane.xlu0 %4395
        %v4397 = vsel %vm3937, %v3770, 0.0
        %4398 = vadd.xlane.f32.xlu0 %v4397
        %v4399 = vpop.xlane.xlu0 %4398
        %v4400 = vsel %vm3937, %v3771, 0.0
        %4401 = vadd.xlane.f32.xlu0 %v4400
        %v4402 = vpop.xlane.xlu0 %4401
        %v4403 = vsel %vm3937, %v3772, 0.0
        %4404 = vadd.xlane.f32.xlu0 %v4403
        %v4405 = vpop.xlane.xlu0 %4404
        %v4406 = vsel %vm3937, %v3773, 0.0
        %4407 = vadd.xlane.f32.xlu0 %v4406
        %v4408 = vpop.xlane.xlu0 %4407
        %v4409 = vsel %vm3937, %v3774, 0.0
        %4410 = vadd.xlane.f32.xlu0 %v4409
        %v4411 = vpop.xlane.xlu0 %4410
        %v4412 = vsel %vm3937, %v3775, 0.0
        %4413 = vadd.xlane.f32.xlu0 %v4412
        %v4414 = vpop.xlane.xlu0 %4413
        %v4415 = vsel %vm3937, %v3776, 0.0
        %4416 = vadd.xlane.f32.xlu0 %v4415
        %v4417 = vpop.xlane.xlu0 %4416
        %v4418 = vsel %vm3937, %v3777, 0.0
        %4419 = vadd.xlane.f32.xlu0 %v4418
        %v4420 = vpop.xlane.xlu0 %4419
        %v4421 = vsel %vm3937, %v3778, 0.0
        %4422 = vadd.xlane.f32.xlu0 %v4421
        %v4423 = vpop.xlane.xlu0 %4422
        %v4424 = vsel %vm3937, %v3779, 0.0
        %4425 = vadd.xlane.f32.xlu0 %v4424
        %v4426 = vpop.xlane.xlu0 %4425
        %v4427 = vsel %vm3937, %v3780, 0.0
        %4428 = vadd.xlane.f32.xlu0 %v4427
        %v4429 = vpop.xlane.xlu0 %4428
        %v4430 = vsel %vm3937, %v3781, 0.0
        %4431 = vadd.xlane.f32.xlu0 %v4430
        %v4432 = vpop.xlane.xlu0 %4431
        %v4433 = vsel %vm3937, %v3782, 0.0
        %4434 = vadd.xlane.f32.xlu0 %v4433
        %v4435 = vpop.xlane.xlu0 %4434
        %v4436 = vsel %vm3937, %v3783, 0.0
        %4437 = vadd.xlane.f32.xlu0 %v4436
        %v4438 = vpop.xlane.xlu0 %4437
        %v4439 = vsel %vm3937, %v3784, 0.0
        %4440 = vadd.xlane.f32.xlu0 %v4439
        %v4441 = vpop.xlane.xlu0 %4440
        %v4442 = vsel %vm3937, %v3785, 0.0
        %4443 = vadd.xlane.f32.xlu0 %v4442
        %v4444 = vpop.xlane.xlu0 %4443
        %v4445 = vsel %vm3937, %v3786, 0.0
        %4446 = vadd.xlane.f32.xlu0 %v4445
        %v4447 = vpop.xlane.xlu0 %4446
        %v4448 = vsel %vm3937, %v3787, 0.0
        %4449 = vadd.xlane.f32.xlu0 %v4448
        %v4450 = vpop.xlane.xlu0 %4449
        %v4451 = vsel %vm3937, %v3788, 0.0
        %4452 = vadd.xlane.f32.xlu0 %v4451
        %v4453 = vpop.xlane.xlu0 %4452
        %v4454 = vsel %vm3937, %v3789, 0.0
        %4455 = vadd.xlane.f32.xlu0 %v4454
        %v4456 = vpop.xlane.xlu0 %4455
        %v4457 = vsel %vm3937, %v3790, 0.0
        %4458 = vadd.xlane.f32.xlu0 %v4457
        %v4459 = vpop.xlane.xlu0 %4458
        %v4460 = vsel %vm3937, %v3791, 0.0
        %4461 = vadd.xlane.f32.xlu0 %v4460
        %v4462 = vpop.xlane.xlu0 %4461
        %v4463 = vsel %vm3937, %v3792, 0.0
        %4464 = vadd.xlane.f32.xlu0 %v4463
        %v4465 = vpop.xlane.xlu0 %4464
        %v4466 = vsel %vm3937, %v3793, 0.0
        %4467 = vadd.xlane.f32.xlu0 %v4466
        %v4468 = vpop.xlane.xlu0 %4467
        %v4469 = vsel %vm3937, %v3794, 0.0
        %4470 = vadd.xlane.f32.xlu0 %v4469
        %v4471 = vpop.xlane.xlu0 %4470
        %v4472 = vsel %vm3937, %v3795, 0.0
        %4473 = vadd.xlane.f32.xlu0 %v4472
        %v4474 = vpop.xlane.xlu0 %4473
        %v4475 = vsel %vm3937, %v3796, 0.0
        %4476 = vadd.xlane.f32.xlu0 %v4475
        %v4477 = vpop.xlane.xlu0 %4476
        %v4478 = vsel %vm3937, %v3797, 0.0
        %4479 = vadd.xlane.f32.xlu0 %v4478
        %v4480 = vpop.xlane.xlu0 %4479
        %v4481 = vsel %vm3937, %v3798, 0.0
        %4482 = vadd.xlane.f32.xlu0 %v4481
        %v4483 = vpop.xlane.xlu0 %4482
        %v4484 = vsel %vm3937, %v3799, 0.0
        %4485 = vadd.xlane.f32.xlu0 %v4484
        %v4486 = vpop.xlane.xlu0 %4485
        %v4487 = vsel %vm3937, %v3800, 0.0
        %4488 = vadd.xlane.f32.xlu0 %v4487
        %v4489 = vpop.xlane.xlu0 %4488
        %v4490 = vsel %vm3937, %v3801, 0.0
        %4491 = vadd.xlane.f32.xlu0 %v4490
        %v4492 = vpop.xlane.xlu0 %4491
        %v4493 = vsel %vm3937, %v3802, 0.0
        %4494 = vadd.xlane.f32.xlu0 %v4493
        %v4495 = vpop.xlane.xlu0 %4494
        %v4496 = vsel %vm3937, %v3803, 0.0
        %4497 = vadd.xlane.f32.xlu0 %v4496
        %v4498 = vpop.xlane.xlu0 %4497
        %v4499 = vsel %vm3937, %v3804, 0.0
        %4500 = vadd.xlane.f32.xlu0 %v4499
        %v4501 = vpop.xlane.xlu0 %4500
        %v4502 = vsel %vm3937, %v3805, 0.0
        %4503 = vadd.xlane.f32.xlu0 %v4502
        %v4504 = vpop.xlane.xlu0 %4503
        %v4505 = vsel %vm3937, %v3806, 0.0
        %4506 = vadd.xlane.f32.xlu0 %v4505
        %v4507 = vpop.xlane.xlu0 %4506
        %v4508 = vsel %vm3937, %v3807, 0.0
        %4509 = vadd.xlane.f32.xlu0 %v4508
        %v4510 = vpop.xlane.xlu0 %4509
        %v4511 = vsel %vm3937, %v3808, 0.0
        %4512 = vadd.xlane.f32.xlu0 %v4511
        %v4513 = vpop.xlane.xlu0 %4512
        %v4514 = vsel %vm3937, %v3809, 0.0
        %4515 = vadd.xlane.f32.xlu0 %v4514
        %v4516 = vpop.xlane.xlu0 %4515
        %v4517 = vsel %vm3937, %v3810, 0.0
        %4518 = vadd.xlane.f32.xlu0 %v4517
        %v4519 = vpop.xlane.xlu0 %4518
        %v4520 = vsel %vm3937, %v3811, 0.0
        %4521 = vadd.xlane.f32.xlu0 %v4520
        %v4522 = vpop.xlane.xlu0 %4521
        %v4523 = vsel %vm3937, %v3812, 0.0
        %4524 = vadd.xlane.f32.xlu0 %v4523
        %v4525 = vpop.xlane.xlu0 %4524
        %v4526 = vsel %vm3937, %v3813, 0.0
        %4527 = vadd.xlane.f32.xlu0 %v4526
        %v4528 = vpop.xlane.xlu0 %4527
        %v4529 = vsel %vm3937, %v3814, 0.0
        %4530 = vadd.xlane.f32.xlu0 %v4529
        %v4531 = vpop.xlane.xlu0 %4530
        %v4532 = vsel %vm3937, %v3815, 0.0
        %4533 = vadd.xlane.f32.xlu0 %v4532
        %v4534 = vpop.xlane.xlu0 %4533
        %v4535 = vsel %vm3937, %v3816, 0.0
        %4536 = vadd.xlane.f32.xlu0 %v4535
        %v4537 = vpop.xlane.xlu0 %4536
        %v4538 = vsel %vm3937, %v3817, 0.0
        %4539 = vadd.xlane.f32.xlu0 %v4538
        %v4540 = vpop.xlane.xlu0 %4539
        %v4541 = vsel %vm3937, %v3818, 0.0
        %4542 = vadd.xlane.f32.xlu0 %v4541
        %v4543 = vpop.xlane.xlu0 %4542
        %v4544 = vsel %vm3937, %v3819, 0.0
        %4545 = vadd.xlane.f32.xlu0 %v4544
        %v4546 = vpop.xlane.xlu0 %4545
        %v4547 = vsel %vm3937, %v3820, 0.0
        %4548 = vadd.xlane.f32.xlu0 %v4547
        %v4549 = vpop.xlane.xlu0 %4548
        %v4550 = vsel %vm3937, %v3821, 0.0
        %4551 = vadd.xlane.f32.xlu0 %v4550
        %v4552 = vpop.xlane.xlu0 %4551
        %v4553 = vsel %vm3937, %v3822, 0.0
        %4554 = vadd.xlane.f32.xlu0 %v4553
        %v4555 = vpop.xlane.xlu0 %4554
        %v4556 = vsel %vm3937, %v3823, 0.0
        %4557 = vadd.xlane.f32.xlu0 %v4556
        %v4558 = vpop.xlane.xlu0 %4557
        %v4559 = vsel %vm3937, %v3824, 0.0
        %4560 = vadd.xlane.f32.xlu0 %v4559
        %v4561 = vpop.xlane.xlu0 %4560
        %v4562 = vsel %vm3937, %v3825, 0.0
        %4563 = vadd.xlane.f32.xlu0 %v4562
        %v4564 = vpop.xlane.xlu0 %4563
        %v4565 = vsel %vm3937, %v3826, 0.0
        %4566 = vadd.xlane.f32.xlu0 %v4565
        %v4567 = vpop.xlane.xlu0 %4566
        %v4568 = vsel %vm3937, %v3827, 0.0
        %4569 = vadd.xlane.f32.xlu0 %v4568
        %v4570 = vpop.xlane.xlu0 %4569
        %v4571 = vsel %vm3937, %v3828, 0.0
        %4572 = vadd.xlane.f32.xlu0 %v4571
        %v4573 = vpop.xlane.xlu0 %4572
        %v4574 = vsel %vm3937, %v3829, 0.0
        %4575 = vadd.xlane.f32.xlu0 %v4574
        %v4576 = vpop.xlane.xlu0 %4575
        %v4577 = vsel %vm3937, %v3830, 0.0
        %4578 = vadd.xlane.f32.xlu0 %v4577
        %v4579 = vpop.xlane.xlu0 %4578
        %v4580 = vsel %vm3937, %v3831, 0.0
        %4581 = vadd.xlane.f32.xlu0 %v4580
        %v4582 = vpop.xlane.xlu0 %4581
        %v4583 = vsel %vm3937, %v3832, 0.0
        %4584 = vadd.xlane.f32.xlu0 %v4583
        %v4585 = vpop.xlane.xlu0 %4584
        %v4586 = vsel %vm3937, %v3833, 0.0
        %4587 = vadd.xlane.f32.xlu0 %v4586
        %v4588 = vpop.xlane.xlu0 %4587
        %v4589 = vsel %vm3937, %v3834, 0.0
        %4590 = vadd.xlane.f32.xlu0 %v4589
        %v4591 = vpop.xlane.xlu0 %4590
        %v4592 = vsel %vm3937, %v3835, 0.0
        %4593 = vadd.xlane.f32.xlu0 %v4592
        %v4594 = vpop.xlane.xlu0 %4593
        %v4595 = vsel %vm3937, %v3836, 0.0
        %4596 = vadd.xlane.f32.xlu0 %v4595
        %v4597 = vpop.xlane.xlu0 %4596
        %v4598 = vsel %vm3937, %v3837, 0.0
        %4599 = vadd.xlane.f32.xlu0 %v4598
        %v4600 = vpop.xlane.xlu0 %4599
        %v4601 = vsel %vm3937, %v3838, 0.0
        %4602 = vadd.xlane.f32.xlu0 %v4601
        %v4603 = vpop.xlane.xlu0 %4602
        %v4604 = vsel %vm3937, %v3839, 0.0
        %4605 = vadd.xlane.f32.xlu0 %v4604
        %v4606 = vpop.xlane.xlu0 %4605
        %v4607 = vsel %vm3937, %v3840, 0.0
        %4608 = vadd.xlane.f32.xlu0 %v4607
        %v4609 = vpop.xlane.xlu0 %4608
        %v4610 = vsel %vm3937, %v3841, 0.0
        %4611 = vadd.xlane.f32.xlu0 %v4610
        %v4612 = vpop.xlane.xlu0 %4611
        %v4613 = vsel %vm3937, %v3842, 0.0
        %4614 = vadd.xlane.f32.xlu0 %v4613
        %v4615 = vpop.xlane.xlu0 %4614
        %v4616 = vsel %vm3937, %v3843, 0.0
        %4617 = vadd.xlane.f32.xlu0 %v4616
        %v4618 = vpop.xlane.xlu0 %4617
        %v4619 = vsel %vm3937, %v3844, 0.0
        %4620 = vadd.xlane.f32.xlu0 %v4619
        %v4621 = vpop.xlane.xlu0 %4620
        %v4622 = vsel %vm3937, %v3845, 0.0
        %4623 = vadd.xlane.f32.xlu0 %v4622
        %v4624 = vpop.xlane.xlu0 %4623
        %v4625 = vsel %vm3937, %v3846, 0.0
        %4626 = vadd.xlane.f32.xlu0 %v4625
        %v4627 = vpop.xlane.xlu0 %4626
        %v4628 = vsel %vm3937, %v3847, 0.0
        %4629 = vadd.xlane.f32.xlu0 %v4628
        %v4630 = vpop.xlane.xlu0 %4629
        %v4631 = vsel %vm3937, %v3848, 0.0
        %4632 = vadd.xlane.f32.xlu0 %v4631
        %v4633 = vpop.xlane.xlu0 %4632
        %v4634 = vsel %vm3937, %v3849, 0.0
        %4635 = vadd.xlane.f32.xlu0 %v4634
        %v4636 = vpop.xlane.xlu0 %4635
        %v4637 = vsel %vm3937, %v3850, 0.0
        %4638 = vadd.xlane.f32.xlu0 %v4637
        %v4639 = vpop.xlane.xlu0 %4638
        %v4640 = vsel %vm3937, %v3851, 0.0
        %4641 = vadd.xlane.f32.xlu0 %v4640
        %v4642 = vpop.xlane.xlu0 %4641
        %v4643 = vsel %vm3937, %v3852, 0.0
        %4644 = vadd.xlane.f32.xlu0 %v4643
        %v4645 = vpop.xlane.xlu0 %4644
        %v4646 = vsel %vm3937, %v3853, 0.0
        %4647 = vadd.xlane.f32.xlu0 %v4646
        %v4648 = vpop.xlane.xlu0 %4647
        %v4649 = vsel %vm3937, %v3854, 0.0
        %4650 = vadd.xlane.f32.xlu0 %v4649
        %v4651 = vpop.xlane.xlu0 %4650
        %v4652 = vsel %vm3937, %v3855, 0.0
        %4653 = vadd.xlane.f32.xlu0 %v4652
        %v4654 = vpop.xlane.xlu0 %4653
        %v4655 = vsel %vm3937, %v3856, 0.0
        %4656 = vadd.xlane.f32.xlu0 %v4655
        %v4657 = vpop.xlane.xlu0 %4656
        %v4658 = vsel %vm3937, %v3857, 0.0
        %4659 = vadd.xlane.f32.xlu0 %v4658
        %v4660 = vpop.xlane.xlu0 %4659
        %v4661 = vsel %vm3937, %v3858, 0.0
        %4662 = vadd.xlane.f32.xlu0 %v4661
        %v4663 = vpop.xlane.xlu0 %4662
        %v4664 = vsel %vm3937, %v3859, 0.0
        %4665 = vadd.xlane.f32.xlu0 %v4664
        %v4666 = vpop.xlane.xlu0 %4665
        %v4667 = vsel %vm3937, %v3860, 0.0
        %4668 = vadd.xlane.f32.xlu0 %v4667
        %v4669 = vpop.xlane.xlu0 %4668
        %v4670 = vsel %vm3937, %v3861, 0.0
        %4671 = vadd.xlane.f32.xlu0 %v4670
        %v4672 = vpop.xlane.xlu0 %4671
        %v4673 = vsel %vm3937, %v3862, 0.0
        %4674 = vadd.xlane.f32.xlu0 %v4673
        %v4675 = vpop.xlane.xlu0 %4674
        %v4676 = vsel %vm3937, %v3863, 0.0
        %4677 = vadd.xlane.f32.xlu0 %v4676
        %v4678 = vpop.xlane.xlu0 %4677
        %v4679 = vsel %vm3937, %v3864, 0.0
        %4680 = vadd.xlane.f32.xlu0 %v4679
        %v4681 = vpop.xlane.xlu0 %4680
        %v4682 = vsel %vm3937, %v3865, 0.0
        %4683 = vadd.xlane.f32.xlu0 %v4682
        %v4684 = vpop.xlane.xlu0 %4683
        %v4685 = vsel %vm3937, %v3866, 0.0
        %4686 = vadd.xlane.f32.xlu0 %v4685
        %v4687 = vpop.xlane.xlu0 %4686
        %v4688 = vsel %vm3937, %v3867, 0.0
        %4689 = vadd.xlane.f32.xlu0 %v4688
        %v4690 = vpop.xlane.xlu0 %4689
        %v4691 = vsel %vm3937, %v3868, 0.0
        %4692 = vadd.xlane.f32.xlu0 %v4691
        %v4693 = vpop.xlane.xlu0 %4692
        %v4694 = vsel %vm3937, %v3869, 0.0
        %4695 = vadd.xlane.f32.xlu0 %v4694
        %v4696 = vpop.xlane.xlu0 %4695
        %v4697 = vsel %vm3937, %v3870, 0.0
        %4698 = vadd.xlane.f32.xlu0 %v4697
        %v4699 = vpop.xlane.xlu0 %4698
        %v4700 = vsel %vm3937, %v3871, 0.0
        %4701 = vadd.xlane.f32.xlu0 %v4700
        %v4702 = vpop.xlane.xlu0 %4701
        %v4703 = vsel %vm3937, %v3872, 0.0
        %4704 = vadd.xlane.f32.xlu0 %v4703
        %v4705 = vpop.xlane.xlu0 %4704
        %v4706 = vsel %vm3937, %v3873, 0.0
        %4707 = vadd.xlane.f32.xlu0 %v4706
        %v4708 = vpop.xlane.xlu0 %4707
        %v4709 = vsel %vm3937, %v3874, 0.0
        %4710 = vadd.xlane.f32.xlu0 %v4709
        %v4711 = vpop.xlane.xlu0 %4710
        %v4712 = vsel %vm3937, %v3875, 0.0
        %4713 = vadd.xlane.f32.xlu0 %v4712
        %v4714 = vpop.xlane.xlu0 %4713
        %v4715 = vsel %vm3937, %v3876, 0.0
        %4716 = vadd.xlane.f32.xlu0 %v4715
        %v4717 = vpop.xlane.xlu0 %4716
        %v4718 = vsel %vm3937, %v3877, 0.0
        %4719 = vadd.xlane.f32.xlu0 %v4718
        %v4720 = vpop.xlane.xlu0 %4719
        %v4721 = vsel %vm3937, %v3878, 0.0
        %4722 = vadd.xlane.f32.xlu0 %v4721
        %v4723 = vpop.xlane.xlu0 %4722
        %v4724 = vsel %vm3937, %v3879, 0.0
        %4725 = vadd.xlane.f32.xlu0 %v4724
        %v4726 = vpop.xlane.xlu0 %4725
        %v4727 = vsel %vm3937, %v3880, 0.0
        %4728 = vadd.xlane.f32.xlu0 %v4727
        %v4729 = vpop.xlane.xlu0 %4728
        %v4730 = vsel %vm3937, %v3881, 0.0
        %4731 = vadd.xlane.f32.xlu0 %v4730
        %v4732 = vpop.xlane.xlu0 %4731
        %v4733 = vsel %vm3937, %v3882, 0.0
        %4734 = vadd.xlane.f32.xlu0 %v4733
        %v4735 = vpop.xlane.xlu0 %4734
        %v4736 = vsel %vm3937, %v3883, 0.0
        %4737 = vadd.xlane.f32.xlu0 %v4736
        %v4738 = vpop.xlane.xlu0 %4737
        %v4739 = vsel %vm3937, %v3884, 0.0
        %4740 = vadd.xlane.f32.xlu0 %v4739
        %v4741 = vpop.xlane.xlu0 %4740
        %v4742 = vsel %vm3937, %v3885, 0.0
        %4743 = vadd.xlane.f32.xlu0 %v4742
        %v4744 = vpop.xlane.xlu0 %4743
        %v4745 = vsel %vm3937, %v3886, 0.0
        %4746 = vadd.xlane.f32.xlu0 %v4745
        %v4747 = vpop.xlane.xlu0 %4746
        %v4748 = vsel %vm3937, %v3887, 0.0
        %4749 = vadd.xlane.f32.xlu0 %v4748
        %v4750 = vpop.xlane.xlu0 %4749
        %v4751 = vsel %vm3937, %v3888, 0.0
        %4752 = vadd.xlane.f32.xlu0 %v4751
        %v4753 = vpop.xlane.xlu0 %4752
        %v4754 = vsel %vm3937, %v3889, 0.0
        %4755 = vadd.xlane.f32.xlu0 %v4754
        %v4756 = vpop.xlane.xlu0 %4755
        %v4757 = vsel %vm3937, %v3890, 0.0
        %4758 = vadd.xlane.f32.xlu0 %v4757
        %v4759 = vpop.xlane.xlu0 %4758
        %v4760 = vsel %vm3937, %v3891, 0.0
        %4761 = vadd.xlane.f32.xlu0 %v4760
        %v4762 = vpop.xlane.xlu0 %4761
        %v4763 = vsel %vm3937, %v3892, 0.0
        %4764 = vadd.xlane.f32.xlu0 %v4763
        %v4765 = vpop.xlane.xlu0 %4764
        %v4766 = vsel %vm3937, %v3893, 0.0
        %4767 = vadd.xlane.f32.xlu0 %v4766
        %v4768 = vpop.xlane.xlu0 %4767
        %v4769 = vsel %vm3937, %v3894, 0.0
        %4770 = vadd.xlane.f32.xlu0 %v4769
        %v4771 = vpop.xlane.xlu0 %4770
        %v4772 = vsel %vm3937, %v3895, 0.0
        %4773 = vadd.xlane.f32.xlu0 %v4772
        %v4774 = vpop.xlane.xlu0 %4773
        %v4775 = vsel %vm3937, %v3896, 0.0
        %4776 = vadd.xlane.f32.xlu0 %v4775
        %v4777 = vpop.xlane.xlu0 %4776
        %v4778 = vsel %vm3937, %v3897, 0.0
        %4779 = vadd.xlane.f32.xlu0 %v4778
        %v4780 = vpop.xlane.xlu0 %4779
        %v4781 = vsel %vm3937, %v3898, 0.0
        %4782 = vadd.xlane.f32.xlu0 %v4781
        %v4783 = vpop.xlane.xlu0 %4782
        %v4784 = vsel %vm3937, %v3899, 0.0
        %4785 = vadd.xlane.f32.xlu0 %v4784
        %v4786 = vpop.xlane.xlu0 %4785
        %v4787 = vsel %vm3937, %v3900, 0.0
        %4788 = vadd.xlane.f32.xlu0 %v4787
        %v4789 = vpop.xlane.xlu0 %4788
        %v4790 = vsel %vm3937, %v3901, 0.0
        %4791 = vadd.xlane.f32.xlu0 %v4790
        %v4792 = vpop.xlane.xlu0 %4791
        %v4793 = vsel %vm3937, %v3902, 0.0
        %4794 = vadd.xlane.f32.xlu0 %v4793
        %v4795 = vpop.xlane.xlu0 %4794
        %v4796 = vsel %vm3937, %v3903, 0.0
        %4797 = vadd.xlane.f32.xlu0 %v4796
        %v4798 = vpop.xlane.xlu0 %4797
        %v4799 = vsel %vm3937, %v3904, 0.0
        %4800 = vadd.xlane.f32.xlu0 %v4799
        %v4801 = vpop.xlane.xlu0 %4800
        %v4802 = vsel %vm3937, %v3905, 0.0
        %4803 = vadd.xlane.f32.xlu0 %v4802
        %v4804 = vpop.xlane.xlu0 %4803
        %v4805 = vsel %vm3937, %v3906, 0.0
        %4806 = vadd.xlane.f32.xlu0 %v4805
        %v4807 = vpop.xlane.xlu0 %4806
        %v4808 = vsel %vm3937, %v3907, 0.0
        %4809 = vadd.xlane.f32.xlu0 %v4808
        %v4810 = vpop.xlane.xlu0 %4809
        %v4811 = vsel %vm3937, %v3908, 0.0
        %4812 = vadd.xlane.f32.xlu0 %v4811
        %v4813 = vpop.xlane.xlu0 %4812
        %v4814 = vsel %vm3937, %v3909, 0.0
        %4815 = vadd.xlane.f32.xlu0 %v4814
        %v4816 = vpop.xlane.xlu0 %4815
        %v4817 = vsel %vm3937, %v3910, 0.0
        %4818 = vadd.xlane.f32.xlu0 %v4817
        %v4819 = vpop.xlane.xlu0 %4818
        %v4820 = vsel %vm3937, %v3911, 0.0
        %4821 = vadd.xlane.f32.xlu0 %v4820
        %v4822 = vpop.xlane.xlu0 %4821
        %v4823 = vsel %vm3937, %v3912, 0.0
        %4824 = vadd.xlane.f32.xlu0 %v4823
        %v4825 = vpop.xlane.xlu0 %4824
        %v4826 = vsel %vm3937, %v3913, 0.0
        %4827 = vadd.xlane.f32.xlu0 %v4826
        %v4828 = vpop.xlane.xlu0 %4827
        %v4829 = vsel %vm3937, %v3914, 0.0
        %4830 = vadd.xlane.f32.xlu0 %v4829
        %v4831 = vpop.xlane.xlu0 %4830
        %v4832 = vsel %vm3937, %v3915, 0.0
        %4833 = vadd.xlane.f32.xlu0 %v4832
        %v4834 = vpop.xlane.xlu0 %4833
        %v4835 = vsel %vm3937, %v3916, 0.0
        %4836 = vadd.xlane.f32.xlu0 %v4835
        %v4837 = vpop.xlane.xlu0 %4836
        %v4838 = vsel %vm3937, %v3917, 0.0
        %4839 = vadd.xlane.f32.xlu0 %v4838
        %v4840 = vpop.xlane.xlu0 %4839
        %v4841 = vsel %vm3937, %v3918, 0.0
        %4842 = vadd.xlane.f32.xlu0 %v4841
        %v4843 = vpop.xlane.xlu0 %4842
        %v4844 = vsel %vm3937, %v3919, 0.0
        %4845 = vadd.xlane.f32.xlu0 %v4844
        %v4846 = vpop.xlane.xlu0 %4845
        %v4847 = vsel %vm3937, %v3920, 0.0
        %4848 = vadd.xlane.f32.xlu0 %v4847
        %v4849 = vpop.xlane.xlu0 %4848
        %v4850 = vsel %vm3937, %v3921, 0.0
        %4851 = vadd.xlane.f32.xlu0 %v4850
        %v4852 = vpop.xlane.xlu0 %4851
        %v4853 = vsel %vm3937, %v3922, 0.0
        %4854 = vadd.xlane.f32.xlu0 %v4853
        %v4855 = vpop.xlane.xlu0 %4854
        %v4856 = vsel %vm3937, %v3923, 0.0
        %4857 = vadd.xlane.f32.xlu0 %v4856
        %v4858 = vpop.xlane.xlu0 %4857
        %v4859 = vsel %vm3937, %v3924, 0.0
        %4860 = vadd.xlane.f32.xlu0 %v4859
        %v4861 = vpop.xlane.xlu0 %4860
        %v4862 = vsel %vm3937, %v3925, 0.0
        %4863 = vadd.xlane.f32.xlu0 %v4862
        %v4864 = vpop.xlane.xlu0 %4863
        %v4865 = vsel %vm3937, %v3926, 0.0
        %4866 = vadd.xlane.f32.xlu0 %v4865
        %v4867 = vpop.xlane.xlu0 %4866
        %v4868 = vsel %vm3937, %v3927, 0.0
        %4869 = vadd.xlane.f32.xlu0 %v4868
        %v4870 = vpop.xlane.xlu0 %4869
        %v4871 = vsel %vm3937, %v3928, 0.0
        %4872 = vadd.xlane.f32.xlu0 %v4871
        %v4873 = vpop.xlane.xlu0 %4872
        %v4874 = vsel %vm3937, %v3929, 0.0
        %4875 = vadd.xlane.f32.xlu0 %v4874
        %v4876 = vpop.xlane.xlu0 %4875
        %v4877 = vsel %vm3937, %v3930, 0.0
        %4878 = vadd.xlane.f32.xlu0 %v4877
        %v4879 = vpop.xlane.xlu0 %4878
        %v4880 = vsel %vm3937, %v3931, 0.0
        %4881 = vadd.xlane.f32.xlu0 %v4880
        %v4882 = vpop.xlane.xlu0 %4881
        %v4883 = vsel %vm3937, %v3932, 0.0
        %4884 = vadd.xlane.f32.xlu0 %v4883
        %v4885 = vpop.xlane.xlu0 %4884
        %v4886 = vsel %vm3937, %v3933, 0.0
        %4887 = vadd.xlane.f32.xlu0 %v4886
        %v4888 = vpop.xlane.xlu0 %4887
        %v4889 = vsel %vm3937, %v3934, 0.0
        %4890 = vadd.xlane.f32.xlu0 %v4889
        %v4891 = vpop.xlane.xlu0 %4890
        %v4892 = vsel %vm3937, %v3935, 0.0
        %4893 = vadd.xlane.f32.xlu0 %v4892
        %v4894 = vpop.xlane.xlu0 %4893
        %v4895 = vsel %vm3937, %v3936, 0.0
        %4896 = vadd.xlane.f32.xlu0 %v4895
        %v4897 = vpop.xlane.xlu0 %4896
        %s4898 = sld [smem:[#allocation2]]
        %v4899 = vstv %s4898
        %v4900 = vadd.f32 %v3940, %v4899
        %v4901 = vadd.f32 %v3943, %v4899
        %v4902 = vadd.f32 %v3946, %v4899
        %v4903 = vadd.f32 %v3949, %v4899
        %v4904 = vadd.f32 %v3952, %v4899
        %v4905 = vadd.f32 %v3955, %v4899
        %v4906 = vadd.f32 %v3958, %v4899
        %v4907 = vadd.f32 %v3961, %v4899
        %v4908 = vadd.f32 %v3964, %v4899
        %v4909 = vadd.f32 %v3967, %v4899
        %v4910 = vadd.f32 %v3970, %v4899
        %v4911 = vadd.f32 %v3973, %v4899
        %v4912 = vadd.f32 %v3976, %v4899
        %v4913 = vadd.f32 %v3979, %v4899
        %v4914 = vadd.f32 %v3982, %v4899
        %v4915 = vadd.f32 %v3985, %v4899
        %v4916 = vadd.f32 %v3988, %v4899
        %v4917 = vadd.f32 %v3991, %v4899
        %v4918 = vadd.f32 %v3994, %v4899
        %v4919 = vadd.f32 %v3997, %v4899
        %v4920 = vadd.f32 %v4000, %v4899
        %v4921 = vadd.f32 %v4003, %v4899
        %v4922 = vadd.f32 %v4006, %v4899
        %v4923 = vadd.f32 %v4009, %v4899
        %v4924 = vadd.f32 %v4012, %v4899
        %v4925 = vadd.f32 %v4015, %v4899
        %v4926 = vadd.f32 %v4018, %v4899
        %v4927 = vadd.f32 %v4021, %v4899
        %v4928 = vadd.f32 %v4024, %v4899
        %v4929 = vadd.f32 %v4027, %v4899
        %v4930 = vadd.f32 %v4030, %v4899
        %v4931 = vadd.f32 %v4033, %v4899
        %v4932 = vadd.f32 %v4036, %v4899
        %v4933 = vadd.f32 %v4039, %v4899
        %v4934 = vadd.f32 %v4042, %v4899
        %v4935 = vadd.f32 %v4045, %v4899
        %v4936 = vadd.f32 %v4048, %v4899
        %v4937 = vadd.f32 %v4051, %v4899
        %v4938 = vadd.f32 %v4054, %v4899
        %v4939 = vadd.f32 %v4057, %v4899
        %v4940 = vadd.f32 %v4060, %v4899
        %v4941 = vadd.f32 %v4063, %v4899
        %v4942 = vadd.f32 %v4066, %v4899
        %v4943 = vadd.f32 %v4069, %v4899
        %v4944 = vadd.f32 %v4072, %v4899
        %v4945 = vadd.f32 %v4075, %v4899
        %v4946 = vadd.f32 %v4078, %v4899
        %v4947 = vadd.f32 %v4081, %v4899
        %v4948 = vadd.f32 %v4084, %v4899
        %v4949 = vadd.f32 %v4087, %v4899
        %v4950 = vadd.f32 %v4090, %v4899
        %v4951 = vadd.f32 %v4093, %v4899
        %v4952 = vadd.f32 %v4096, %v4899
        %v4953 = vadd.f32 %v4099, %v4899
        %v4954 = vadd.f32 %v4102, %v4899
        %v4955 = vadd.f32 %v4105, %v4899
        %v4956 = vadd.f32 %v4108, %v4899
        %v4957 = vadd.f32 %v4111, %v4899
        %v4958 = vadd.f32 %v4114, %v4899
        %v4959 = vadd.f32 %v4117, %v4899
        %v4960 = vadd.f32 %v4120, %v4899
        %v4961 = vadd.f32 %v4123, %v4899
        %v4962 = vadd.f32 %v4126, %v4899
        %v4963 = vadd.f32 %v4129, %v4899
        %v4964 = vadd.f32 %v4132, %v4899
        %v4965 = vadd.f32 %v4135, %v4899
        %v4966 = vadd.f32 %v4138, %v4899
        %v4967 = vadd.f32 %v4141, %v4899
        %v4968 = vadd.f32 %v4144, %v4899
        %v4969 = vadd.f32 %v4147, %v4899
        %v4970 = vadd.f32 %v4150, %v4899
        %v4971 = vadd.f32 %v4153, %v4899
        %v4972 = vadd.f32 %v4156, %v4899
        %v4973 = vadd.f32 %v4159, %v4899
        %v4974 = vadd.f32 %v4162, %v4899
        %v4975 = vadd.f32 %v4165, %v4899
        %v4976 = vadd.f32 %v4168, %v4899
        %v4977 = vadd.f32 %v4171, %v4899
        %v4978 = vadd.f32 %v4174, %v4899
        %v4979 = vadd.f32 %v4177, %v4899
        %v4980 = vadd.f32 %v4180, %v4899
        %v4981 = vadd.f32 %v4183, %v4899
        %v4982 = vadd.f32 %v4186, %v4899
        %v4983 = vadd.f32 %v4189, %v4899
        %v4984 = vadd.f32 %v4192, %v4899
        %v4985 = vadd.f32 %v4195, %v4899
        %v4986 = vadd.f32 %v4198, %v4899
        %v4987 = vadd.f32 %v4201, %v4899
        %v4988 = vadd.f32 %v4204, %v4899
        %v4989 = vadd.f32 %v4207, %v4899
        %v4990 = vadd.f32 %v4210, %v4899
        %v4991 = vadd.f32 %v4213, %v4899
        %v4992 = vadd.f32 %v4216, %v4899
        %v4993 = vadd.f32 %v4219, %v4899
        %v4994 = vadd.f32 %v4222, %v4899
        %v4995 = vadd.f32 %v4225, %v4899
        %v4996 = vadd.f32 %v4228, %v4899
        %v4997 = vadd.f32 %v4231, %v4899
        %v4998 = vadd.f32 %v4234, %v4899
        %v4999 = vadd.f32 %v4237, %v4899
        %v5000 = vadd.f32 %v4240, %v4899
        %v5001 = vadd.f32 %v4243, %v4899
        %v5002 = vadd.f32 %v4246, %v4899
        %v5003 = vadd.f32 %v4249, %v4899
        %v5004 = vadd.f32 %v4252, %v4899
        %v5005 = vadd.f32 %v4255, %v4899
        %v5006 = vadd.f32 %v4258, %v4899
        %v5007 = vadd.f32 %v4261, %v4899
        %v5008 = vadd.f32 %v4264, %v4899
        %v5009 = vadd.f32 %v4267, %v4899
        %v5010 = vadd.f32 %v4270, %v4899
        %v5011 = vadd.f32 %v4273, %v4899
        %v5012 = vadd.f32 %v4276, %v4899
        %v5013 = vadd.f32 %v4279, %v4899
        %v5014 = vadd.f32 %v4282, %v4899
        %v5015 = vadd.f32 %v4285, %v4899
        %v5016 = vadd.f32 %v4288, %v4899
        %v5017 = vadd.f32 %v4291, %v4899
        %v5018 = vadd.f32 %v4294, %v4899
        %v5019 = vadd.f32 %v4297, %v4899
        %v5020 = vadd.f32 %v4300, %v4899
        %v5021 = vadd.f32 %v4303, %v4899
        %v5022 = vadd.f32 %v4306, %v4899
        %v5023 = vadd.f32 %v4309, %v4899
        %v5024 = vadd.f32 %v4312, %v4899
        %v5025 = vadd.f32 %v4315, %v4899
        %v5026 = vadd.f32 %v4318, %v4899
        %v5027 = vadd.f32 %v4321, %v4899
        %v5028 = vadd.f32 %v4324, %v4899
        %v5029 = vadd.f32 %v4327, %v4899
        %v5030 = vadd.f32 %v4330, %v4899
        %v5031 = vadd.f32 %v4333, %v4899
        %v5032 = vadd.f32 %v4336, %v4899
        %v5033 = vadd.f32 %v4339, %v4899
        %v5034 = vadd.f32 %v4342, %v4899
        %v5035 = vadd.f32 %v4345, %v4899
        %v5036 = vadd.f32 %v4348, %v4899
        %v5037 = vadd.f32 %v4351, %v4899
        %v5038 = vadd.f32 %v4354, %v4899
        %v5039 = vadd.f32 %v4357, %v4899
        %v5040 = vadd.f32 %v4360, %v4899
        %v5041 = vadd.f32 %v4363, %v4899
        %v5042 = vadd.f32 %v4366, %v4899
        %v5043 = vadd.f32 %v4369, %v4899
        %v5044 = vadd.f32 %v4372, %v4899
        %v5045 = vadd.f32 %v4375, %v4899
        %v5046 = vadd.f32 %v4378, %v4899
        %v5047 = vadd.f32 %v4381, %v4899
        %v5048 = vadd.f32 %v4384, %v4899
        %v5049 = vadd.f32 %v4387, %v4899
        %v5050 = vadd.f32 %v4390, %v4899
        %v5051 = vadd.f32 %v4393, %v4899
        %v5052 = vadd.f32 %v4396, %v4899
        %v5053 = vadd.f32 %v4399, %v4899
        %v5054 = vadd.f32 %v4402, %v4899
        %v5055 = vadd.f32 %v4405, %v4899
        %v5056 = vadd.f32 %v4408, %v4899
        %v5057 = vadd.f32 %v4411, %v4899
        %v5058 = vadd.f32 %v4414, %v4899
        %v5059 = vadd.f32 %v4417, %v4899
        %v5060 = vadd.f32 %v4420, %v4899
        %v5061 = vadd.f32 %v4423, %v4899
        %v5062 = vadd.f32 %v4426, %v4899
        %v5063 = vadd.f32 %v4429, %v4899
        %v5064 = vadd.f32 %v4432, %v4899
        %v5065 = vadd.f32 %v4435, %v4899
        %v5066 = vadd.f32 %v4438, %v4899
        %v5067 = vadd.f32 %v4441, %v4899
        %v5068 = vadd.f32 %v4444, %v4899
        %v5069 = vadd.f32 %v4447, %v4899
        %v5070 = vadd.f32 %v4450, %v4899
        %v5071 = vadd.f32 %v4453, %v4899
        %v5072 = vadd.f32 %v4456, %v4899
        %v5073 = vadd.f32 %v4459, %v4899
        %v5074 = vadd.f32 %v4462, %v4899
        %v5075 = vadd.f32 %v4465, %v4899
        %v5076 = vadd.f32 %v4468, %v4899
        %v5077 = vadd.f32 %v4471, %v4899
        %v5078 = vadd.f32 %v4474, %v4899
        %v5079 = vadd.f32 %v4477, %v4899
        %v5080 = vadd.f32 %v4480, %v4899
        %v5081 = vadd.f32 %v4483, %v4899
        %v5082 = vadd.f32 %v4486, %v4899
        %v5083 = vadd.f32 %v4489, %v4899
        %v5084 = vadd.f32 %v4492, %v4899
        %v5085 = vadd.f32 %v4495, %v4899
        %v5086 = vadd.f32 %v4498, %v4899
        %v5087 = vadd.f32 %v4501, %v4899
        %v5088 = vadd.f32 %v4504, %v4899
        %v5089 = vadd.f32 %v4507, %v4899
        %v5090 = vadd.f32 %v4510, %v4899
        %v5091 = vadd.f32 %v4513, %v4899
        %v5092 = vadd.f32 %v4516, %v4899
        %v5093 = vadd.f32 %v4519, %v4899
        %v5094 = vadd.f32 %v4522, %v4899
        %v5095 = vadd.f32 %v4525, %v4899
        %v5096 = vadd.f32 %v4528, %v4899
        %v5097 = vadd.f32 %v4531, %v4899
        %v5098 = vadd.f32 %v4534, %v4899
        %v5099 = vadd.f32 %v4537, %v4899
        %v5100 = vadd.f32 %v4540, %v4899
        %v5101 = vadd.f32 %v4543, %v4899
        %v5102 = vadd.f32 %v4546, %v4899
        %v5103 = vadd.f32 %v4549, %v4899
        %v5104 = vadd.f32 %v4552, %v4899
        %v5105 = vadd.f32 %v4555, %v4899
        %v5106 = vadd.f32 %v4558, %v4899
        %v5107 = vadd.f32 %v4561, %v4899
        %v5108 = vadd.f32 %v4564, %v4899
        %v5109 = vadd.f32 %v4567, %v4899
        %v5110 = vadd.f32 %v4570, %v4899
        %v5111 = vadd.f32 %v4573, %v4899
        %v5112 = vadd.f32 %v4576, %v4899
        %v5113 = vadd.f32 %v4579, %v4899
        %v5114 = vadd.f32 %v4582, %v4899
        %v5115 = vadd.f32 %v4585, %v4899
        %v5116 = vadd.f32 %v4588, %v4899
        %v5117 = vadd.f32 %v4591, %v4899
        %v5118 = vadd.f32 %v4594, %v4899
        %v5119 = vadd.f32 %v4597, %v4899
        %v5120 = vadd.f32 %v4600, %v4899
        %v5121 = vadd.f32 %v4603, %v4899
        %v5122 = vadd.f32 %v4606, %v4899
        %v5123 = vadd.f32 %v4609, %v4899
        %v5124 = vadd.f32 %v4612, %v4899
        %v5125 = vadd.f32 %v4615, %v4899
        %v5126 = vadd.f32 %v4618, %v4899
        %v5127 = vadd.f32 %v4621, %v4899
        %v5128 = vadd.f32 %v4624, %v4899
        %v5129 = vadd.f32 %v4627, %v4899
        %v5130 = vadd.f32 %v4630, %v4899
        %v5131 = vadd.f32 %v4633, %v4899
        %v5132 = vadd.f32 %v4636, %v4899
        %v5133 = vadd.f32 %v4639, %v4899
        %v5134 = vadd.f32 %v4642, %v4899
        %v5135 = vadd.f32 %v4645, %v4899
        %v5136 = vadd.f32 %v4648, %v4899
        %v5137 = vadd.f32 %v4651, %v4899
        %v5138 = vadd.f32 %v4654, %v4899
        %v5139 = vadd.f32 %v4657, %v4899
        %v5140 = vadd.f32 %v4660, %v4899
        %v5141 = vadd.f32 %v4663, %v4899
        %v5142 = vadd.f32 %v4666, %v4899
        %v5143 = vadd.f32 %v4669, %v4899
        %v5144 = vadd.f32 %v4672, %v4899
        %v5145 = vadd.f32 %v4675, %v4899
        %v5146 = vadd.f32 %v4678, %v4899
        %v5147 = vadd.f32 %v4681, %v4899
        %v5148 = vadd.f32 %v4684, %v4899
        %v5149 = vadd.f32 %v4687, %v4899
        %v5150 = vadd.f32 %v4690, %v4899
        %v5151 = vadd.f32 %v4693, %v4899
        %v5152 = vadd.f32 %v4696, %v4899
        %v5153 = vadd.f32 %v4699, %v4899
        %v5154 = vadd.f32 %v4702, %v4899
        %v5155 = vadd.f32 %v4705, %v4899
        %v5156 = vadd.f32 %v4708, %v4899
        %v5157 = vadd.f32 %v4711, %v4899
        %v5158 = vadd.f32 %v4714, %v4899
        %v5159 = vadd.f32 %v4717, %v4899
        %v5160 = vadd.f32 %v4720, %v4899
        %v5161 = vadd.f32 %v4723, %v4899
        %v5162 = vadd.f32 %v4726, %v4899
        %v5163 = vadd.f32 %v4729, %v4899
        %v5164 = vadd.f32 %v4732, %v4899
        %v5165 = vadd.f32 %v4735, %v4899
        %v5166 = vadd.f32 %v4738, %v4899
        %v5167 = vadd.f32 %v4741, %v4899
        %v5168 = vadd.f32 %v4744, %v4899
        %v5169 = vadd.f32 %v4747, %v4899
        %v5170 = vadd.f32 %v4750, %v4899
        %v5171 = vadd.f32 %v4753, %v4899
        %v5172 = vadd.f32 %v4756, %v4899
        %v5173 = vadd.f32 %v4759, %v4899
        %v5174 = vadd.f32 %v4762, %v4899
        %v5175 = vadd.f32 %v4765, %v4899
        %v5176 = vadd.f32 %v4768, %v4899
        %v5177 = vadd.f32 %v4771, %v4899
        %v5178 = vadd.f32 %v4774, %v4899
        %v5179 = vadd.f32 %v4777, %v4899
        %v5180 = vadd.f32 %v4780, %v4899
        %v5181 = vadd.f32 %v4783, %v4899
        %v5182 = vadd.f32 %v4786, %v4899
        %v5183 = vadd.f32 %v4789, %v4899
        %v5184 = vadd.f32 %v4792, %v4899
        %v5185 = vadd.f32 %v4795, %v4899
        %v5186 = vadd.f32 %v4798, %v4899
        %v5187 = vadd.f32 %v4801, %v4899
        %v5188 = vadd.f32 %v4804, %v4899
        %v5189 = vadd.f32 %v4807, %v4899
        %v5190 = vadd.f32 %v4810, %v4899
        %v5191 = vadd.f32 %v4813, %v4899
        %v5192 = vadd.f32 %v4816, %v4899
        %v5193 = vadd.f32 %v4819, %v4899
        %v5194 = vadd.f32 %v4822, %v4899
        %v5195 = vadd.f32 %v4825, %v4899
        %v5196 = vadd.f32 %v4828, %v4899
        %v5197 = vadd.f32 %v4831, %v4899
        %v5198 = vadd.f32 %v4834, %v4899
        %v5199 = vadd.f32 %v4837, %v4899
        %v5200 = vadd.f32 %v4840, %v4899
        %v5201 = vadd.f32 %v4843, %v4899
        %v5202 = vadd.f32 %v4846, %v4899
        %v5203 = vadd.f32 %v4849, %v4899
        %v5204 = vadd.f32 %v4852, %v4899
        %v5205 = vadd.f32 %v4855, %v4899
        %v5206 = vadd.f32 %v4858, %v4899
        %v5207 = vadd.f32 %v4861, %v4899
        %v5208 = vadd.f32 %v4864, %v4899
        %v5209 = vadd.f32 %v4867, %v4899
        %v5210 = vadd.f32 %v4870, %v4899
        %v5211 = vadd.f32 %v4873, %v4899
        %v5212 = vadd.f32 %v4876, %v4899
        %v5213 = vadd.f32 %v4879, %v4899
        %v5214 = vadd.f32 %v4882, %v4899
        %v5215 = vadd.f32 %v4885, %v4899
        %v5216 = vadd.f32 %v4888, %v4899
        %v5217 = vadd.f32 %v4891, %v4899
        %v5218 = vadd.f32 %v4894, %v4899
        %v5219 = vadd.f32 %v4897, %v4899
        %v5220 = vmax.f32 %v4900, 0.0
        %v5221 = vmax.f32 %v4901, 0.0
        %v5222 = vmax.f32 %v4902, 0.0
        %v5223 = vmax.f32 %v4903, 0.0
        %v5224 = vmax.f32 %v4904, 0.0
        %v5225 = vmax.f32 %v4905, 0.0
        %v5226 = vmax.f32 %v4906, 0.0
        %v5227 = vmax.f32 %v4907, 0.0
        %v5228 = vmax.f32 %v4908, 0.0
        %v5229 = vmax.f32 %v4909, 0.0
        %v5230 = vmax.f32 %v4910, 0.0
        %v5231 = vmax.f32 %v4911, 0.0
        %v5232 = vmax.f32 %v4912, 0.0
        %v5233 = vmax.f32 %v4913, 0.0
        %v5234 = vmax.f32 %v4914, 0.0
        %v5235 = vmax.f32 %v4915, 0.0
        %v5236 = vmax.f32 %v4916, 0.0
        %v5237 = vmax.f32 %v4917, 0.0
        %v5238 = vmax.f32 %v4918, 0.0
        %v5239 = vmax.f32 %v4919, 0.0
        %v5240 = vmax.f32 %v4920, 0.0
        %v5241 = vmax.f32 %v4921, 0.0
        %v5242 = vmax.f32 %v4922, 0.0
        %v5243 = vmax.f32 %v4923, 0.0
        %v5244 = vmax.f32 %v4924, 0.0
        %v5245 = vmax.f32 %v4925, 0.0
        %v5246 = vmax.f32 %v4926, 0.0
        %v5247 = vmax.f32 %v4927, 0.0
        %v5248 = vmax.f32 %v4928, 0.0
        %v5249 = vmax.f32 %v4929, 0.0
        %v5250 = vmax.f32 %v4930, 0.0
        %v5251 = vmax.f32 %v4931, 0.0
        %v5252 = vmax.f32 %v4932, 0.0
        %v5253 = vmax.f32 %v4933, 0.0
        %v5254 = vmax.f32 %v4934, 0.0
        %v5255 = vmax.f32 %v4935, 0.0
        %v5256 = vmax.f32 %v4936, 0.0
        %v5257 = vmax.f32 %v4937, 0.0
        %v5258 = vmax.f32 %v4938, 0.0
        %v5259 = vmax.f32 %v4939, 0.0
        %v5260 = vmax.f32 %v4940, 0.0
        %v5261 = vmax.f32 %v4941, 0.0
        %v5262 = vmax.f32 %v4942, 0.0
        %v5263 = vmax.f32 %v4943, 0.0
        %v5264 = vmax.f32 %v4944, 0.0
        %v5265 = vmax.f32 %v4945, 0.0
        %v5266 = vmax.f32 %v4946, 0.0
        %v5267 = vmax.f32 %v4947, 0.0
        %v5268 = vmax.f32 %v4948, 0.0
        %v5269 = vmax.f32 %v4949, 0.0
        %v5270 = vmax.f32 %v4950, 0.0
        %v5271 = vmax.f32 %v4951, 0.0
        %v5272 = vmax.f32 %v4952, 0.0
        %v5273 = vmax.f32 %v4953, 0.0
        %v5274 = vmax.f32 %v4954, 0.0
        %v5275 = vmax.f32 %v4955, 0.0
        %v5276 = vmax.f32 %v4956, 0.0
        %v5277 = vmax.f32 %v4957, 0.0
        %v5278 = vmax.f32 %v4958, 0.0
        %v5279 = vmax.f32 %v4959, 0.0
        %v5280 = vmax.f32 %v4960, 0.0
        %v5281 = vmax.f32 %v4961, 0.0
        %v5282 = vmax.f32 %v4962, 0.0
        %v5283 = vmax.f32 %v4963, 0.0
        %v5284 = vmax.f32 %v4964, 0.0
        %v5285 = vmax.f32 %v4965, 0.0
        %v5286 = vmax.f32 %v4966, 0.0
        %v5287 = vmax.f32 %v4967, 0.0
        %v5288 = vmax.f32 %v4968, 0.0
        %v5289 = vmax.f32 %v4969, 0.0
        %v5290 = vmax.f32 %v4970, 0.0
        %v5291 = vmax.f32 %v4971, 0.0
        %v5292 = vmax.f32 %v4972, 0.0
        %v5293 = vmax.f32 %v4973, 0.0
        %v5294 = vmax.f32 %v4974, 0.0
        %v5295 = vmax.f32 %v4975, 0.0
        %v5296 = vmax.f32 %v4976, 0.0
        %v5297 = vmax.f32 %v4977, 0.0
        %v5298 = vmax.f32 %v4978, 0.0
        %v5299 = vmax.f32 %v4979, 0.0
        %v5300 = vmax.f32 %v4980, 0.0
        %v5301 = vmax.f32 %v4981, 0.0
        %v5302 = vmax.f32 %v4982, 0.0
        %v5303 = vmax.f32 %v4983, 0.0
        %v5304 = vmax.f32 %v4984, 0.0
        %v5305 = vmax.f32 %v4985, 0.0
        %v5306 = vmax.f32 %v4986, 0.0
        %v5307 = vmax.f32 %v4987, 0.0
        %v5308 = vmax.f32 %v4988, 0.0
        %v5309 = vmax.f32 %v4989, 0.0
        %v5310 = vmax.f32 %v4990, 0.0
        %v5311 = vmax.f32 %v4991, 0.0
        %v5312 = vmax.f32 %v4992, 0.0
        %v5313 = vmax.f32 %v4993, 0.0
        %v5314 = vmax.f32 %v4994, 0.0
        %v5315 = vmax.f32 %v4995, 0.0
        %v5316 = vmax.f32 %v4996, 0.0
        %v5317 = vmax.f32 %v4997, 0.0
        %v5318 = vmax.f32 %v4998, 0.0
        %v5319 = vmax.f32 %v4999, 0.0
        %v5320 = vmax.f32 %v5000, 0.0
        %v5321 = vmax.f32 %v5001, 0.0
        %v5322 = vmax.f32 %v5002, 0.0
        %v5323 = vmax.f32 %v5003, 0.0
        %v5324 = vmax.f32 %v5004, 0.0
        %v5325 = vmax.f32 %v5005, 0.0
        %v5326 = vmax.f32 %v5006, 0.0
        %v5327 = vmax.f32 %v5007, 0.0
        %v5328 = vmax.f32 %v5008, 0.0
        %v5329 = vmax.f32 %v5009, 0.0
        %v5330 = vmax.f32 %v5010, 0.0
        %v5331 = vmax.f32 %v5011, 0.0
        %v5332 = vmax.f32 %v5012, 0.0
        %v5333 = vmax.f32 %v5013, 0.0
        %v5334 = vmax.f32 %v5014, 0.0
        %v5335 = vmax.f32 %v5015, 0.0
        %v5336 = vmax.f32 %v5016, 0.0
        %v5337 = vmax.f32 %v5017, 0.0
        %v5338 = vmax.f32 %v5018, 0.0
        %v5339 = vmax.f32 %v5019, 0.0
        %v5340 = vmax.f32 %v5020, 0.0
        %v5341 = vmax.f32 %v5021, 0.0
        %v5342 = vmax.f32 %v5022, 0.0
        %v5343 = vmax.f32 %v5023, 0.0
        %v5344 = vmax.f32 %v5024, 0.0
        %v5345 = vmax.f32 %v5025, 0.0
        %v5346 = vmax.f32 %v5026, 0.0
        %v5347 = vmax.f32 %v5027, 0.0
        %v5348 = vmax.f32 %v5028, 0.0
        %v5349 = vmax.f32 %v5029, 0.0
        %v5350 = vmax.f32 %v5030, 0.0
        %v5351 = vmax.f32 %v5031, 0.0
        %v5352 = vmax.f32 %v5032, 0.0
        %v5353 = vmax.f32 %v5033, 0.0
        %v5354 = vmax.f32 %v5034, 0.0
        %v5355 = vmax.f32 %v5035, 0.0
        %v5356 = vmax.f32 %v5036, 0.0
        %v5357 = vmax.f32 %v5037, 0.0
        %v5358 = vmax.f32 %v5038, 0.0
        %v5359 = vmax.f32 %v5039, 0.0
        %v5360 = vmax.f32 %v5040, 0.0
        %v5361 = vmax.f32 %v5041, 0.0
        %v5362 = vmax.f32 %v5042, 0.0
        %v5363 = vmax.f32 %v5043, 0.0
        %v5364 = vmax.f32 %v5044, 0.0
        %v5365 = vmax.f32 %v5045, 0.0
        %v5366 = vmax.f32 %v5046, 0.0
        %v5367 = vmax.f32 %v5047, 0.0
        %v5368 = vmax.f32 %v5048, 0.0
        %v5369 = vmax.f32 %v5049, 0.0
        %v5370 = vmax.f32 %v5050, 0.0
        %v5371 = vmax.f32 %v5051, 0.0
        %v5372 = vmax.f32 %v5052, 0.0
        %v5373 = vmax.f32 %v5053, 0.0
        %v5374 = vmax.f32 %v5054, 0.0
        %v5375 = vmax.f32 %v5055, 0.0
        %v5376 = vmax.f32 %v5056, 0.0
        %v5377 = vmax.f32 %v5057, 0.0
        %v5378 = vmax.f32 %v5058, 0.0
        %v5379 = vmax.f32 %v5059, 0.0
        %v5380 = vmax.f32 %v5060, 0.0
        %v5381 = vmax.f32 %v5061, 0.0
        %v5382 = vmax.f32 %v5062, 0.0
        %v5383 = vmax.f32 %v5063, 0.0
        %v5384 = vmax.f32 %v5064, 0.0
        %v5385 = vmax.f32 %v5065, 0.0
        %v5386 = vmax.f32 %v5066, 0.0
        %v5387 = vmax.f32 %v5067, 0.0
        %v5388 = vmax.f32 %v5068, 0.0
        %v5389 = vmax.f32 %v5069, 0.0
        %v5390 = vmax.f32 %v5070, 0.0
        %v5391 = vmax.f32 %v5071, 0.0
        %v5392 = vmax.f32 %v5072, 0.0
        %v5393 = vmax.f32 %v5073, 0.0
        %v5394 = vmax.f32 %v5074, 0.0
        %v5395 = vmax.f32 %v5075, 0.0
        %v5396 = vmax.f32 %v5076, 0.0
        %v5397 = vmax.f32 %v5077, 0.0
        %v5398 = vmax.f32 %v5078, 0.0
        %v5399 = vmax.f32 %v5079, 0.0
        %v5400 = vmax.f32 %v5080, 0.0
        %v5401 = vmax.f32 %v5081, 0.0
        %v5402 = vmax.f32 %v5082, 0.0
        %v5403 = vmax.f32 %v5083, 0.0
        %v5404 = vmax.f32 %v5084, 0.0
        %v5405 = vmax.f32 %v5085, 0.0
        %v5406 = vmax.f32 %v5086, 0.0
        %v5407 = vmax.f32 %v5087, 0.0
        %v5408 = vmax.f32 %v5088, 0.0
        %v5409 = vmax.f32 %v5089, 0.0
        %v5410 = vmax.f32 %v5090, 0.0
        %v5411 = vmax.f32 %v5091, 0.0
        %v5412 = vmax.f32 %v5092, 0.0
        %v5413 = vmax.f32 %v5093, 0.0
        %v5414 = vmax.f32 %v5094, 0.0
        %v5415 = vmax.f32 %v5095, 0.0
        %v5416 = vmax.f32 %v5096, 0.0
        %v5417 = vmax.f32 %v5097, 0.0
        %v5418 = vmax.f32 %v5098, 0.0
        %v5419 = vmax.f32 %v5099, 0.0
        %v5420 = vmax.f32 %v5100, 0.0
        %v5421 = vmax.f32 %v5101, 0.0
        %v5422 = vmax.f32 %v5102, 0.0
        %v5423 = vmax.f32 %v5103, 0.0
        %v5424 = vmax.f32 %v5104, 0.0
        %v5425 = vmax.f32 %v5105, 0.0
        %v5426 = vmax.f32 %v5106, 0.0
        %v5427 = vmax.f32 %v5107, 0.0
        %v5428 = vmax.f32 %v5108, 0.0
        %v5429 = vmax.f32 %v5109, 0.0
        %v5430 = vmax.f32 %v5110, 0.0
        %v5431 = vmax.f32 %v5111, 0.0
        %v5432 = vmax.f32 %v5112, 0.0
        %v5433 = vmax.f32 %v5113, 0.0
        %v5434 = vmax.f32 %v5114, 0.0
        %v5435 = vmax.f32 %v5115, 0.0
        %v5436 = vmax.f32 %v5116, 0.0
        %v5437 = vmax.f32 %v5117, 0.0
        %v5438 = vmax.f32 %v5118, 0.0
        %v5439 = vmax.f32 %v5119, 0.0
        %v5440 = vmax.f32 %v5120, 0.0
        %v5441 = vmax.f32 %v5121, 0.0
        %v5442 = vmax.f32 %v5122, 0.0
        %v5443 = vmax.f32 %v5123, 0.0
        %v5444 = vmax.f32 %v5124, 0.0
        %v5445 = vmax.f32 %v5125, 0.0
        %v5446 = vmax.f32 %v5126, 0.0
        %v5447 = vmax.f32 %v5127, 0.0
        %v5448 = vmax.f32 %v5128, 0.0
        %v5449 = vmax.f32 %v5129, 0.0
        %v5450 = vmax.f32 %v5130, 0.0
        %v5451 = vmax.f32 %v5131, 0.0
        %v5452 = vmax.f32 %v5132, 0.0
        %v5453 = vmax.f32 %v5133, 0.0
        %v5454 = vmax.f32 %v5134, 0.0
        %v5455 = vmax.f32 %v5135, 0.0
        %v5456 = vmax.f32 %v5136, 0.0
        %v5457 = vmax.f32 %v5137, 0.0
        %v5458 = vmax.f32 %v5138, 0.0
        %v5459 = vmax.f32 %v5139, 0.0
        %v5460 = vmax.f32 %v5140, 0.0
        %v5461 = vmax.f32 %v5141, 0.0
        %v5462 = vmax.f32 %v5142, 0.0
        %v5463 = vmax.f32 %v5143, 0.0
        %v5464 = vmax.f32 %v5144, 0.0
        %v5465 = vmax.f32 %v5145, 0.0
        %v5466 = vmax.f32 %v5146, 0.0
        %v5467 = vmax.f32 %v5147, 0.0
        %v5468 = vmax.f32 %v5148, 0.0
        %v5469 = vmax.f32 %v5149, 0.0
        %v5470 = vmax.f32 %v5150, 0.0
        %v5471 = vmax.f32 %v5151, 0.0
        %v5472 = vmax.f32 %v5152, 0.0
        %v5473 = vmax.f32 %v5153, 0.0
        %v5474 = vmax.f32 %v5154, 0.0
        %v5475 = vmax.f32 %v5155, 0.0
        %v5476 = vmax.f32 %v5156, 0.0
        %v5477 = vmax.f32 %v5157, 0.0
        %v5478 = vmax.f32 %v5158, 0.0
        %v5479 = vmax.f32 %v5159, 0.0
        %v5480 = vmax.f32 %v5160, 0.0
        %v5481 = vmax.f32 %v5161, 0.0
        %v5482 = vmax.f32 %v5162, 0.0
        %v5483 = vmax.f32 %v5163, 0.0
        %v5484 = vmax.f32 %v5164, 0.0
        %v5485 = vmax.f32 %v5165, 0.0
        %v5486 = vmax.f32 %v5166, 0.0
        %v5487 = vmax.f32 %v5167, 0.0
        %v5488 = vmax.f32 %v5168, 0.0
        %v5489 = vmax.f32 %v5169, 0.0
        %v5490 = vmax.f32 %v5170, 0.0
        %v5491 = vmax.f32 %v5171, 0.0
        %v5492 = vmax.f32 %v5172, 0.0
        %v5493 = vmax.f32 %v5173, 0.0
        %v5494 = vmax.f32 %v5174, 0.0
        %v5495 = vmax.f32 %v5175, 0.0
        %v5496 = vmax.f32 %v5176, 0.0
        %v5497 = vmax.f32 %v5177, 0.0
        %v5498 = vmax.f32 %v5178, 0.0
        %v5499 = vmax.f32 %v5179, 0.0
        %v5500 = vmax.f32 %v5180, 0.0
        %v5501 = vmax.f32 %v5181, 0.0
        %v5502 = vmax.f32 %v5182, 0.0
        %v5503 = vmax.f32 %v5183, 0.0
        %v5504 = vmax.f32 %v5184, 0.0
        %v5505 = vmax.f32 %v5185, 0.0
        %v5506 = vmax.f32 %v5186, 0.0
        %v5507 = vmax.f32 %v5187, 0.0
        %v5508 = vmax.f32 %v5188, 0.0
        %v5509 = vmax.f32 %v5189, 0.0
        %v5510 = vmax.f32 %v5190, 0.0
        %v5511 = vmax.f32 %v5191, 0.0
        %v5512 = vmax.f32 %v5192, 0.0
        %v5513 = vmax.f32 %v5193, 0.0
        %v5514 = vmax.f32 %v5194, 0.0
        %v5515 = vmax.f32 %v5195, 0.0
        %v5516 = vmax.f32 %v5196, 0.0
        %v5517 = vmax.f32 %v5197, 0.0
        %v5518 = vmax.f32 %v5198, 0.0
        %v5519 = vmax.f32 %v5199, 0.0
        %v5520 = vmax.f32 %v5200, 0.0
        %v5521 = vmax.f32 %v5201, 0.0
        %v5522 = vmax.f32 %v5202, 0.0
        %v5523 = vmax.f32 %v5203, 0.0
        %v5524 = vmax.f32 %v5204, 0.0
        %v5525 = vmax.f32 %v5205, 0.0
        %v5526 = vmax.f32 %v5206, 0.0
        %v5527 = vmax.f32 %v5207, 0.0
        %v5528 = vmax.f32 %v5208, 0.0
        %v5529 = vmax.f32 %v5209, 0.0
        %v5530 = vmax.f32 %v5210, 0.0
        %v5531 = vmax.f32 %v5211, 0.0
        %v5532 = vmax.f32 %v5212, 0.0
        %v5533 = vmax.f32 %v5213, 0.0
        %v5534 = vmax.f32 %v5214, 0.0
        %v5535 = vmax.f32 %v5215, 0.0
        %v5536 = vmax.f32 %v5216, 0.0
        %v5537 = vmax.f32 %v5217, 0.0
        %v5538 = vmax.f32 %v5218, 0.0
        %v5539 = vmax.f32 %v5219, 0.0
        %v5540 = vld [vmem:[%s5] sm:$0xff]
        %v5541 = vld [vmem:[%s5 + $0x8] sm:$0xff]
        %v5542 = vld [vmem:[%s5 + $0x10] sm:$0xff]
        %v5543 = vld [vmem:[%s5 + $0x18] sm:$0xff]
        %v5544 = vld [vmem:[%s5 + $0x20] sm:$0xff]
        %v5545 = vld [vmem:[%s5 + $0x28] sm:$0xff]
        %v5546 = vld [vmem:[%s5 + $0x30] sm:$0xff]
        %v5547 = vld [vmem:[%s5 + $0x38] sm:$0xff]
        %v5548 = vld [vmem:[%s5 + $0x40] sm:$0xff]
        %v5549 = vld [vmem:[%s5 + $0x48] sm:$0xff]
        %v5550 = vld [vmem:[%s5 + $0x50] sm:$0xff]
        %v5551 = vld [vmem:[%s5 + $0x58] sm:$0xff]
        %v5552 = vld [vmem:[%s5 + $0x60] sm:$0xff]
        %v5553 = vld [vmem:[%s5 + $0x68] sm:$0xff]
        %v5554 = vld [vmem:[%s5 + $0x70] sm:$0xff]
        %v5555 = vld [vmem:[%s5 + $0x78] sm:$0xff]
        %v5556 = vld [vmem:[%s5 + $0x80] sm:$0xff]
        %v5557 = vld [vmem:[%s5 + $0x88] sm:$0xff]
        %v5558 = vld [vmem:[%s5 + $0x90] sm:$0xff]
        %v5559 = vld [vmem:[%s5 + $0x98] sm:$0xff]
        %v5560 = vld [vmem:[%s5 + $0xa0] sm:$0xff]
        %v5561 = vld [vmem:[%s5 + $0xa8] sm:$0xff]
        %v5562 = vld [vmem:[%s5 + $0xb0] sm:$0xff]
        %v5563 = vld [vmem:[%s5 + $0xb8] sm:$0xff]
        %v5564 = vld [vmem:[%s5 + $0xc0] sm:$0xff]
        %v5565 = vld [vmem:[%s5 + $0xc8] sm:$0xff]
        %v5566 = vld [vmem:[%s5 + $0xd0] sm:$0xff]
        %v5567 = vld [vmem:[%s5 + $0xd8] sm:$0xff]
        %v5568 = vld [vmem:[%s5 + $0xe0] sm:$0xff]
        %v5569 = vld [vmem:[%s5 + $0xe8] sm:$0xff]
        %v5570 = vld [vmem:[%s5 + $0xf0] sm:$0xff]
        %v5571 = vld [vmem:[%s5 + $0xf8] sm:$0xff]
        %v5572 = vld [vmem:[%s5 + $0x100] sm:$0xff]
        %v5573 = vld [vmem:[%s5 + $0x108] sm:$0xff]
        %v5574 = vld [vmem:[%s5 + $0x110] sm:$0xff]
        %v5575 = vld [vmem:[%s5 + $0x118] sm:$0xff]
        %v5576 = vld [vmem:[%s5 + $0x120] sm:$0xff]
        %v5577 = vld [vmem:[%s5 + $0x128] sm:$0xff]
        %v5578 = vld [vmem:[%s5 + $0x130] sm:$0xff]
        %v5579 = vld [vmem:[%s5 + $0x138] sm:$0xff]
        %v5580 = vld [vmem:[%s5 + $0x140] sm:$0xff]
        %v5581 = vld [vmem:[%s5 + $0x148] sm:$0xff]
        %v5582 = vld [vmem:[%s5 + $0x150] sm:$0xff]
        %v5583 = vld [vmem:[%s5 + $0x158] sm:$0xff]
        %v5584 = vld [vmem:[%s5 + $0x160] sm:$0xff]
        %v5585 = vld [vmem:[%s5 + $0x168] sm:$0xff]
        %v5586 = vld [vmem:[%s5 + $0x170] sm:$0xff]
        %v5587 = vld [vmem:[%s5 + $0x178] sm:$0xff]
        %v5588 = vld [vmem:[%s5 + $0x180] sm:$0xff]
        %v5589 = vld [vmem:[%s5 + $0x188] sm:$0xff]
        %v5590 = vld [vmem:[%s5 + $0x190] sm:$0xff]
        %v5591 = vld [vmem:[%s5 + $0x198] sm:$0xff]
        %v5592 = vld [vmem:[%s5 + $0x1a0] sm:$0xff]
        %v5593 = vld [vmem:[%s5 + $0x1a8] sm:$0xff]
        %v5594 = vld [vmem:[%s5 + $0x1b0] sm:$0xff]
        %v5595 = vld [vmem:[%s5 + $0x1b8] sm:$0xff]
        %v5596 = vld [vmem:[%s5 + $0x1c0] sm:$0xff]
        %v5597 = vld [vmem:[%s5 + $0x1c8] sm:$0xff]
        %v5598 = vld [vmem:[%s5 + $0x1d0] sm:$0xff]
        %v5599 = vld [vmem:[%s5 + $0x1d8] sm:$0xff]
        %v5600 = vld [vmem:[%s5 + $0x1e0] sm:$0xff]
        %v5601 = vld [vmem:[%s5 + $0x1e8] sm:$0xff]
        %v5602 = vld [vmem:[%s5 + $0x1f0] sm:$0xff]
        %v5603 = vld [vmem:[%s5 + $0x1f8] sm:$0xff]
        %v5604 = vld [vmem:[%s5 + $0x200] sm:$0xff]
        %v5605 = vld [vmem:[%s5 + $0x208] sm:$0xff]
        %v5606 = vld [vmem:[%s5 + $0x210] sm:$0xff]
        %v5607 = vld [vmem:[%s5 + $0x218] sm:$0xff]
        %v5608 = vld [vmem:[%s5 + $0x220] sm:$0xff]
        %v5609 = vld [vmem:[%s5 + $0x228] sm:$0xff]
        %v5610 = vld [vmem:[%s5 + $0x230] sm:$0xff]
        %v5611 = vld [vmem:[%s5 + $0x238] sm:$0xff]
        %v5612 = vld [vmem:[%s5 + $0x240] sm:$0xff]
        %v5613 = vld [vmem:[%s5 + $0x248] sm:$0xff]
        %v5614 = vld [vmem:[%s5 + $0x250] sm:$0xff]
        %v5615 = vld [vmem:[%s5 + $0x258] sm:$0xff]
        %v5616 = vld [vmem:[%s5 + $0x260] sm:$0xff]
        %v5617 = vld [vmem:[%s5 + $0x268] sm:$0xff]
        %v5618 = vld [vmem:[%s5 + $0x270] sm:$0xff]
        %v5619 = vld [vmem:[%s5 + $0x278] sm:$0xff]
        %v5620 = vld [vmem:[%s5 + $0x280] sm:$0xff]
        %v5621 = vld [vmem:[%s5 + $0x288] sm:$0xff]
        %v5622 = vld [vmem:[%s5 + $0x290] sm:$0xff]
        %v5623 = vld [vmem:[%s5 + $0x298] sm:$0xff]
        %v5624 = vld [vmem:[%s5 + $0x2a0] sm:$0xff]
        %v5625 = vld [vmem:[%s5 + $0x2a8] sm:$0xff]
        %v5626 = vld [vmem:[%s5 + $0x2b0] sm:$0xff]
        %v5627 = vld [vmem:[%s5 + $0x2b8] sm:$0xff]
        %v5628 = vld [vmem:[%s5 + $0x2c0] sm:$0xff]
        %v5629 = vld [vmem:[%s5 + $0x2c8] sm:$0xff]
        %v5630 = vld [vmem:[%s5 + $0x2d0] sm:$0xff]
        %v5631 = vld [vmem:[%s5 + $0x2d8] sm:$0xff]
        %v5632 = vld [vmem:[%s5 + $0x2e0] sm:$0xff]
        %v5633 = vld [vmem:[%s5 + $0x2e8] sm:$0xff]
        %v5634 = vld [vmem:[%s5 + $0x2f0] sm:$0xff]
        %v5635 = vld [vmem:[%s5 + $0x2f8] sm:$0xff]
        %v5636 = vld [vmem:[%s5 + $0x300] sm:$0xff]
        %v5637 = vld [vmem:[%s5 + $0x308] sm:$0xff]
        %v5638 = vld [vmem:[%s5 + $0x310] sm:$0xff]
        %v5639 = vld [vmem:[%s5 + $0x318] sm:$0xff]
        %v5640 = vld [vmem:[%s5 + $0x320] sm:$0xff]
        %v5641 = vld [vmem:[%s5 + $0x328] sm:$0xff]
        %v5642 = vld [vmem:[%s5 + $0x330] sm:$0xff]
        %v5643 = vld [vmem:[%s5 + $0x338] sm:$0xff]
        %v5644 = vld [vmem:[%s5 + $0x340] sm:$0xff]
        %v5645 = vld [vmem:[%s5 + $0x348] sm:$0xff]
        %v5646 = vld [vmem:[%s5 + $0x350] sm:$0xff]
        %v5647 = vld [vmem:[%s5 + $0x358] sm:$0xff]
        %v5648 = vld [vmem:[%s5 + $0x360] sm:$0xff]
        %v5649 = vld [vmem:[%s5 + $0x368] sm:$0xff]
        %v5650 = vld [vmem:[%s5 + $0x370] sm:$0xff]
        %v5651 = vld [vmem:[%s5 + $0x378] sm:$0xff]
        %v5652 = vld [vmem:[%s5 + $0x380] sm:$0xff]
        %v5653 = vld [vmem:[%s5 + $0x388] sm:$0xff]
        %v5654 = vld [vmem:[%s5 + $0x390] sm:$0xff]
        %v5655 = vld [vmem:[%s5 + $0x398] sm:$0xff]
        %v5656 = vld [vmem:[%s5 + $0x3a0] sm:$0xff]
        %v5657 = vld [vmem:[%s5 + $0x3a8] sm:$0xff]
        %v5658 = vld [vmem:[%s5 + $0x3b0] sm:$0xff]
        %v5659 = vld [vmem:[%s5 + $0x3b8] sm:$0xff]
        %v5660 = vld [vmem:[%s5 + $0x3c0] sm:$0xff]
        %v5661 = vld [vmem:[%s5 + $0x3c8] sm:$0xff]
        %v5662 = vld [vmem:[%s5 + $0x3d0] sm:$0xff]
        %v5663 = vld [vmem:[%s5 + $0x3d8] sm:$0xff]
        %v5664 = vld [vmem:[%s5 + $0x3e0] sm:$0xff]
        %v5665 = vld [vmem:[%s5 + $0x3e8] sm:$0xff]
        %v5666 = vld [vmem:[%s5 + $0x3f0] sm:$0xff]
        %v5667 = vld [vmem:[%s5 + $0x3f8] sm:$0xff]
        %v5668 = vld [vmem:[%s5 + $0x400] sm:$0xff]
        %v5669 = vld [vmem:[%s5 + $0x408] sm:$0xff]
        %v5670 = vld [vmem:[%s5 + $0x410] sm:$0xff]
        %v5671 = vld [vmem:[%s5 + $0x418] sm:$0xff]
        %v5672 = vld [vmem:[%s5 + $0x420] sm:$0xff]
        %v5673 = vld [vmem:[%s5 + $0x428] sm:$0xff]
        %v5674 = vld [vmem:[%s5 + $0x430] sm:$0xff]
        %v5675 = vld [vmem:[%s5 + $0x438] sm:$0xff]
        %v5676 = vld [vmem:[%s5 + $0x440] sm:$0xff]
        %v5677 = vld [vmem:[%s5 + $0x448] sm:$0xff]
        %v5678 = vld [vmem:[%s5 + $0x450] sm:$0xff]
        %v5679 = vld [vmem:[%s5 + $0x458] sm:$0xff]
        %v5680 = vld [vmem:[%s5 + $0x460] sm:$0xff]
        %v5681 = vld [vmem:[%s5 + $0x468] sm:$0xff]
        %v5682 = vld [vmem:[%s5 + $0x470] sm:$0xff]
        %v5683 = vld [vmem:[%s5 + $0x478] sm:$0xff]
        %v5684 = vld [vmem:[%s5 + $0x480] sm:$0xff]
        %v5685 = vld [vmem:[%s5 + $0x488] sm:$0xff]
        %v5686 = vld [vmem:[%s5 + $0x490] sm:$0xff]
        %v5687 = vld [vmem:[%s5 + $0x498] sm:$0xff]
        %v5688 = vld [vmem:[%s5 + $0x4a0] sm:$0xff]
        %v5689 = vld [vmem:[%s5 + $0x4a8] sm:$0xff]
        %v5690 = vld [vmem:[%s5 + $0x4b0] sm:$0xff]
        %v5691 = vld [vmem:[%s5 + $0x4b8] sm:$0xff]
        %v5692 = vld [vmem:[%s5 + $0x4c0] sm:$0xff]
        %v5693 = vld [vmem:[%s5 + $0x4c8] sm:$0xff]
        %v5694 = vld [vmem:[%s5 + $0x4d0] sm:$0xff]
        %v5695 = vld [vmem:[%s5 + $0x4d8] sm:$0xff]
        %v5696 = vld [vmem:[%s5 + $0x4e0] sm:$0xff]
        %v5697 = vld [vmem:[%s5 + $0x4e8] sm:$0xff]
        %v5698 = vld [vmem:[%s5 + $0x4f0] sm:$0xff]
        %v5699 = vld [vmem:[%s5 + $0x4f8] sm:$0xff]
        %v5700 = vld [vmem:[%s5 + $0x500] sm:$0xff]
        %v5701 = vld [vmem:[%s5 + $0x508] sm:$0xff]
        %v5702 = vld [vmem:[%s5 + $0x510] sm:$0xff]
        %v5703 = vld [vmem:[%s5 + $0x518] sm:$0xff]
        %v5704 = vld [vmem:[%s5 + $0x520] sm:$0xff]
        %v5705 = vld [vmem:[%s5 + $0x528] sm:$0xff]
        %v5706 = vld [vmem:[%s5 + $0x530] sm:$0xff]
        %v5707 = vld [vmem:[%s5 + $0x538] sm:$0xff]
        %v5708 = vld [vmem:[%s5 + $0x540] sm:$0xff]
        %v5709 = vld [vmem:[%s5 + $0x548] sm:$0xff]
        %v5710 = vld [vmem:[%s5 + $0x550] sm:$0xff]
        %v5711 = vld [vmem:[%s5 + $0x558] sm:$0xff]
        %v5712 = vld [vmem:[%s5 + $0x560] sm:$0xff]
        %v5713 = vld [vmem:[%s5 + $0x568] sm:$0xff]
        %v5714 = vld [vmem:[%s5 + $0x570] sm:$0xff]
        %v5715 = vld [vmem:[%s5 + $0x578] sm:$0xff]
        %v5716 = vld [vmem:[%s5 + $0x580] sm:$0xff]
        %v5717 = vld [vmem:[%s5 + $0x588] sm:$0xff]
        %v5718 = vld [vmem:[%s5 + $0x590] sm:$0xff]
        %v5719 = vld [vmem:[%s5 + $0x598] sm:$0xff]
        %v5720 = vld [vmem:[%s5 + $0x5a0] sm:$0xff]
        %v5721 = vld [vmem:[%s5 + $0x5a8] sm:$0xff]
        %v5722 = vld [vmem:[%s5 + $0x5b0] sm:$0xff]
        %v5723 = vld [vmem:[%s5 + $0x5b8] sm:$0xff]
        %v5724 = vld [vmem:[%s5 + $0x5c0] sm:$0xff]
        %v5725 = vld [vmem:[%s5 + $0x5c8] sm:$0xff]
        %v5726 = vld [vmem:[%s5 + $0x5d0] sm:$0xff]
        %v5727 = vld [vmem:[%s5 + $0x5d8] sm:$0xff]
        %v5728 = vld [vmem:[%s5 + $0x5e0] sm:$0xff]
        %v5729 = vld [vmem:[%s5 + $0x5e8] sm:$0xff]
        %v5730 = vld [vmem:[%s5 + $0x5f0] sm:$0xff]
        %v5731 = vld [vmem:[%s5 + $0x5f8] sm:$0xff]
        %v5732 = vld [vmem:[%s5 + $0x600] sm:$0xff]
        %v5733 = vld [vmem:[%s5 + $0x608] sm:$0xff]
        %v5734 = vld [vmem:[%s5 + $0x610] sm:$0xff]
        %v5735 = vld [vmem:[%s5 + $0x618] sm:$0xff]
        %v5736 = vld [vmem:[%s5 + $0x620] sm:$0xff]
        %v5737 = vld [vmem:[%s5 + $0x628] sm:$0xff]
        %v5738 = vld [vmem:[%s5 + $0x630] sm:$0xff]
        %v5739 = vld [vmem:[%s5 + $0x638] sm:$0xff]
        %v5740 = vld [vmem:[%s5 + $0x640] sm:$0xff]
        %v5741 = vld [vmem:[%s5 + $0x648] sm:$0xff]
        %v5742 = vld [vmem:[%s5 + $0x650] sm:$0xff]
        %v5743 = vld [vmem:[%s5 + $0x658] sm:$0xff]
        %v5744 = vld [vmem:[%s5 + $0x660] sm:$0xff]
        %v5745 = vld [vmem:[%s5 + $0x668] sm:$0xff]
        %v5746 = vld [vmem:[%s5 + $0x670] sm:$0xff]
        %v5747 = vld [vmem:[%s5 + $0x678] sm:$0xff]
        %v5748 = vld [vmem:[%s5 + $0x680] sm:$0xff]
        %v5749 = vld [vmem:[%s5 + $0x688] sm:$0xff]
        %v5750 = vld [vmem:[%s5 + $0x690] sm:$0xff]
        %v5751 = vld [vmem:[%s5 + $0x698] sm:$0xff]
        %v5752 = vld [vmem:[%s5 + $0x6a0] sm:$0xff]
        %v5753 = vld [vmem:[%s5 + $0x6a8] sm:$0xff]
        %v5754 = vld [vmem:[%s5 + $0x6b0] sm:$0xff]
        %v5755 = vld [vmem:[%s5 + $0x6b8] sm:$0xff]
        %v5756 = vld [vmem:[%s5 + $0x6c0] sm:$0xff]
        %v5757 = vld [vmem:[%s5 + $0x6c8] sm:$0xff]
        %v5758 = vld [vmem:[%s5 + $0x6d0] sm:$0xff]
        %v5759 = vld [vmem:[%s5 + $0x6d8] sm:$0xff]
        %v5760 = vld [vmem:[%s5 + $0x6e0] sm:$0xff]
        %v5761 = vld [vmem:[%s5 + $0x6e8] sm:$0xff]
        %v5762 = vld [vmem:[%s5 + $0x6f0] sm:$0xff]
        %v5763 = vld [vmem:[%s5 + $0x6f8] sm:$0xff]
        %v5764 = vld [vmem:[%s5 + $0x700] sm:$0xff]
        %v5765 = vld [vmem:[%s5 + $0x708] sm:$0xff]
        %v5766 = vld [vmem:[%s5 + $0x710] sm:$0xff]
        %v5767 = vld [vmem:[%s5 + $0x718] sm:$0xff]
        %v5768 = vld [vmem:[%s5 + $0x720] sm:$0xff]
        %v5769 = vld [vmem:[%s5 + $0x728] sm:$0xff]
        %v5770 = vld [vmem:[%s5 + $0x730] sm:$0xff]
        %v5771 = vld [vmem:[%s5 + $0x738] sm:$0xff]
        %v5772 = vld [vmem:[%s5 + $0x740] sm:$0xff]
        %v5773 = vld [vmem:[%s5 + $0x748] sm:$0xff]
        %v5774 = vld [vmem:[%s5 + $0x750] sm:$0xff]
        %v5775 = vld [vmem:[%s5 + $0x758] sm:$0xff]
        %v5776 = vld [vmem:[%s5 + $0x760] sm:$0xff]
        %v5777 = vld [vmem:[%s5 + $0x768] sm:$0xff]
        %v5778 = vld [vmem:[%s5 + $0x770] sm:$0xff]
        %v5779 = vld [vmem:[%s5 + $0x778] sm:$0xff]
        %v5780 = vld [vmem:[%s5 + $0x780] sm:$0xff]
        %v5781 = vld [vmem:[%s5 + $0x788] sm:$0xff]
        %v5782 = vld [vmem:[%s5 + $0x790] sm:$0xff]
        %v5783 = vld [vmem:[%s5 + $0x798] sm:$0xff]
        %v5784 = vld [vmem:[%s5 + $0x7a0] sm:$0xff]
        %v5785 = vld [vmem:[%s5 + $0x7a8] sm:$0xff]
        %v5786 = vld [vmem:[%s5 + $0x7b0] sm:$0xff]
        %v5787 = vld [vmem:[%s5 + $0x7b8] sm:$0xff]
        %v5788 = vld [vmem:[%s5 + $0x7c0] sm:$0xff]
        %v5789 = vld [vmem:[%s5 + $0x7c8] sm:$0xff]
        %v5790 = vld [vmem:[%s5 + $0x7d0] sm:$0xff]
        %v5791 = vld [vmem:[%s5 + $0x7d8] sm:$0xff]
        %v5792 = vld [vmem:[%s5 + $0x7e0] sm:$0xff]
        %v5793 = vld [vmem:[%s5 + $0x7e8] sm:$0xff]
        %v5794 = vld [vmem:[%s5 + $0x7f0] sm:$0xff]
        %v5795 = vld [vmem:[%s5 + $0x7f8] sm:$0xff]
        %v5796 = vld [vmem:[%s5 + $0x800] sm:$0xff]
        %v5797 = vld [vmem:[%s5 + $0x808] sm:$0xff]
        %v5798 = vld [vmem:[%s5 + $0x810] sm:$0xff]
        %v5799 = vld [vmem:[%s5 + $0x818] sm:$0xff]
        %v5800 = vld [vmem:[%s5 + $0x820] sm:$0xff]
        %v5801 = vld [vmem:[%s5 + $0x828] sm:$0xff]
        %v5802 = vld [vmem:[%s5 + $0x830] sm:$0xff]
        %v5803 = vld [vmem:[%s5 + $0x838] sm:$0xff]
        %v5804 = vld [vmem:[%s5 + $0x840] sm:$0xff]
        %v5805 = vld [vmem:[%s5 + $0x848] sm:$0xff]
        %v5806 = vld [vmem:[%s5 + $0x850] sm:$0xff]
        %v5807 = vld [vmem:[%s5 + $0x858] sm:$0xff]
        %v5808 = vld [vmem:[%s5 + $0x860] sm:$0xff]
        %v5809 = vld [vmem:[%s5 + $0x868] sm:$0xff]
        %v5810 = vld [vmem:[%s5 + $0x870] sm:$0xff]
        %v5811 = vld [vmem:[%s5 + $0x878] sm:$0xff]
        %v5812 = vld [vmem:[%s5 + $0x880] sm:$0xff]
        %v5813 = vld [vmem:[%s5 + $0x888] sm:$0xff]
        %v5814 = vld [vmem:[%s5 + $0x890] sm:$0xff]
        %v5815 = vld [vmem:[%s5 + $0x898] sm:$0xff]
        %v5816 = vld [vmem:[%s5 + $0x8a0] sm:$0xff]
        %v5817 = vld [vmem:[%s5 + $0x8a8] sm:$0xff]
        %v5818 = vld [vmem:[%s5 + $0x8b0] sm:$0xff]
        %v5819 = vld [vmem:[%s5 + $0x8b8] sm:$0xff]
        %v5820 = vld [vmem:[%s5 + $0x8c0] sm:$0xff]
        %v5821 = vld [vmem:[%s5 + $0x8c8] sm:$0xff]
        %v5822 = vld [vmem:[%s5 + $0x8d0] sm:$0xff]
        %v5823 = vld [vmem:[%s5 + $0x8d8] sm:$0xff]
        %v5824 = vld [vmem:[%s5 + $0x8e0] sm:$0xff]
        %v5825 = vld [vmem:[%s5 + $0x8e8] sm:$0xff]
        %v5826 = vld [vmem:[%s5 + $0x8f0] sm:$0xff]
        %v5827 = vld [vmem:[%s5 + $0x8f8] sm:$0xff]
        %v5828 = vld [vmem:[%s5 + $0x900] sm:$0xff]
        %v5829 = vld [vmem:[%s5 + $0x908] sm:$0xff]
        %v5830 = vld [vmem:[%s5 + $0x910] sm:$0xff]
        %v5831 = vld [vmem:[%s5 + $0x918] sm:$0xff]
        %v5832 = vld [vmem:[%s5 + $0x920] sm:$0xff]
        %v5833 = vld [vmem:[%s5 + $0x928] sm:$0xff]
        %v5834 = vld [vmem:[%s5 + $0x930] sm:$0xff]
        %v5835 = vld [vmem:[%s5 + $0x938] sm:$0xff]
        %v5836 = vld [vmem:[%s5 + $0x940] sm:$0xff]
        %v5837 = vld [vmem:[%s5 + $0x948] sm:$0xff]
        %v5838 = vld [vmem:[%s5 + $0x950] sm:$0xff]
        %v5839 = vld [vmem:[%s5 + $0x958] sm:$0xff]
        %v5840 = vld [vmem:[%s5 + $0x960] sm:$0xff]
        %v5841 = vld [vmem:[%s5 + $0x968] sm:$0xff]
        %v5842 = vld [vmem:[%s5 + $0x970] sm:$0xff]
        %v5843 = vld [vmem:[%s5 + $0x978] sm:$0xff]
        %v5844 = vld [vmem:[%s5 + $0x980] sm:$0xff]
        %v5845 = vld [vmem:[%s5 + $0x988] sm:$0xff]
        %v5846 = vld [vmem:[%s5 + $0x990] sm:$0xff]
        %v5847 = vld [vmem:[%s5 + $0x998] sm:$0xff]
        %v5848 = vld [vmem:[%s5 + $0x9a0] sm:$0xff]
        %v5849 = vld [vmem:[%s5 + $0x9a8] sm:$0xff]
        %v5850 = vld [vmem:[%s5 + $0x9b0] sm:$0xff]
        %v5851 = vld [vmem:[%s5 + $0x9b8] sm:$0xff]
        %v5852 = vld [vmem:[%s5 + $0x9c0] sm:$0xff]
        %v5853 = vld [vmem:[%s5 + $0x9c8] sm:$0xff]
        %v5854 = vld [vmem:[%s5 + $0x9d0] sm:$0xff]
        %v5855 = vld [vmem:[%s5 + $0x9d8] sm:$0xff]
        %v5856 = vld [vmem:[%s5 + $0x9e0] sm:$0xff]
        %v5857 = vld [vmem:[%s5 + $0x9e8] sm:$0xff]
        %v5858 = vld [vmem:[%s5 + $0x9f0] sm:$0xff]
        %v5859 = vld [vmem:[%s5 + $0x9f8] sm:$0xff]
        %v5860 = vmul.f32 %v5220, %v5540
        %v5861 = vmul.f32 %v5221, %v5541
        %v5862 = vmul.f32 %v5222, %v5542
        %v5863 = vmul.f32 %v5223, %v5543
        %v5864 = vmul.f32 %v5224, %v5544
        %v5865 = vmul.f32 %v5225, %v5545
        %v5866 = vmul.f32 %v5226, %v5546
        %v5867 = vmul.f32 %v5227, %v5547
        %v5868 = vmul.f32 %v5228, %v5548
        %v5869 = vmul.f32 %v5229, %v5549
        %v5870 = vmul.f32 %v5230, %v5550
        %v5871 = vmul.f32 %v5231, %v5551
        %v5872 = vmul.f32 %v5232, %v5552
        %v5873 = vmul.f32 %v5233, %v5553
        %v5874 = vmul.f32 %v5234, %v5554
        %v5875 = vmul.f32 %v5235, %v5555
        %v5876 = vmul.f32 %v5236, %v5556
        %v5877 = vmul.f32 %v5237, %v5557
        %v5878 = vmul.f32 %v5238, %v5558
        %v5879 = vmul.f32 %v5239, %v5559
        %v5880 = vmul.f32 %v5240, %v5560
        %v5881 = vmul.f32 %v5241, %v5561
        %v5882 = vmul.f32 %v5242, %v5562
        %v5883 = vmul.f32 %v5243, %v5563
        %v5884 = vmul.f32 %v5244, %v5564
        %v5885 = vmul.f32 %v5245, %v5565
        %v5886 = vmul.f32 %v5246, %v5566
        %v5887 = vmul.f32 %v5247, %v5567
        %v5888 = vmul.f32 %v5248, %v5568
        %v5889 = vmul.f32 %v5249, %v5569
        %v5890 = vmul.f32 %v5250, %v5570
        %v5891 = vmul.f32 %v5251, %v5571
        %v5892 = vmul.f32 %v5252, %v5572
        %v5893 = vmul.f32 %v5253, %v5573
        %v5894 = vmul.f32 %v5254, %v5574
        %v5895 = vmul.f32 %v5255, %v5575
        %v5896 = vmul.f32 %v5256, %v5576
        %v5897 = vmul.f32 %v5257, %v5577
        %v5898 = vmul.f32 %v5258, %v5578
        %v5899 = vmul.f32 %v5259, %v5579
        %v5900 = vmul.f32 %v5260, %v5580
        %v5901 = vmul.f32 %v5261, %v5581
        %v5902 = vmul.f32 %v5262, %v5582
        %v5903 = vmul.f32 %v5263, %v5583
        %v5904 = vmul.f32 %v5264, %v5584
        %v5905 = vmul.f32 %v5265, %v5585
        %v5906 = vmul.f32 %v5266, %v5586
        %v5907 = vmul.f32 %v5267, %v5587
        %v5908 = vmul.f32 %v5268, %v5588
        %v5909 = vmul.f32 %v5269, %v5589
        %v5910 = vmul.f32 %v5270, %v5590
        %v5911 = vmul.f32 %v5271, %v5591
        %v5912 = vmul.f32 %v5272, %v5592
        %v5913 = vmul.f32 %v5273, %v5593
        %v5914 = vmul.f32 %v5274, %v5594
        %v5915 = vmul.f32 %v5275, %v5595
        %v5916 = vmul.f32 %v5276, %v5596
        %v5917 = vmul.f32 %v5277, %v5597
        %v5918 = vmul.f32 %v5278, %v5598
        %v5919 = vmul.f32 %v5279, %v5599
        %v5920 = vmul.f32 %v5280, %v5600
        %v5921 = vmul.f32 %v5281, %v5601
        %v5922 = vmul.f32 %v5282, %v5602
        %v5923 = vmul.f32 %v5283, %v5603
        %v5924 = vmul.f32 %v5284, %v5604
        %v5925 = vmul.f32 %v5285, %v5605
        %v5926 = vmul.f32 %v5286, %v5606
        %v5927 = vmul.f32 %v5287, %v5607
        %v5928 = vmul.f32 %v5288, %v5608
        %v5929 = vmul.f32 %v5289, %v5609
        %v5930 = vmul.f32 %v5290, %v5610
        %v5931 = vmul.f32 %v5291, %v5611
        %v5932 = vmul.f32 %v5292, %v5612
        %v5933 = vmul.f32 %v5293, %v5613
        %v5934 = vmul.f32 %v5294, %v5614
        %v5935 = vmul.f32 %v5295, %v5615
        %v5936 = vmul.f32 %v5296, %v5616
        %v5937 = vmul.f32 %v5297, %v5617
        %v5938 = vmul.f32 %v5298, %v5618
        %v5939 = vmul.f32 %v5299, %v5619
        %v5940 = vmul.f32 %v5300, %v5620
        %v5941 = vmul.f32 %v5301, %v5621
        %v5942 = vmul.f32 %v5302, %v5622
        %v5943 = vmul.f32 %v5303, %v5623
        %v5944 = vmul.f32 %v5304, %v5624
        %v5945 = vmul.f32 %v5305, %v5625
        %v5946 = vmul.f32 %v5306, %v5626
        %v5947 = vmul.f32 %v5307, %v5627
        %v5948 = vmul.f32 %v5308, %v5628
        %v5949 = vmul.f32 %v5309, %v5629
        %v5950 = vmul.f32 %v5310, %v5630
        %v5951 = vmul.f32 %v5311, %v5631
        %v5952 = vmul.f32 %v5312, %v5632
        %v5953 = vmul.f32 %v5313, %v5633
        %v5954 = vmul.f32 %v5314, %v5634
        %v5955 = vmul.f32 %v5315, %v5635
        %v5956 = vmul.f32 %v5316, %v5636
        %v5957 = vmul.f32 %v5317, %v5637
        %v5958 = vmul.f32 %v5318, %v5638
        %v5959 = vmul.f32 %v5319, %v5639
        %v5960 = vmul.f32 %v5320, %v5640
        %v5961 = vmul.f32 %v5321, %v5641
        %v5962 = vmul.f32 %v5322, %v5642
        %v5963 = vmul.f32 %v5323, %v5643
        %v5964 = vmul.f32 %v5324, %v5644
        %v5965 = vmul.f32 %v5325, %v5645
        %v5966 = vmul.f32 %v5326, %v5646
        %v5967 = vmul.f32 %v5327, %v5647
        %v5968 = vmul.f32 %v5328, %v5648
        %v5969 = vmul.f32 %v5329, %v5649
        %v5970 = vmul.f32 %v5330, %v5650
        %v5971 = vmul.f32 %v5331, %v5651
        %v5972 = vmul.f32 %v5332, %v5652
        %v5973 = vmul.f32 %v5333, %v5653
        %v5974 = vmul.f32 %v5334, %v5654
        %v5975 = vmul.f32 %v5335, %v5655
        %v5976 = vmul.f32 %v5336, %v5656
        %v5977 = vmul.f32 %v5337, %v5657
        %v5978 = vmul.f32 %v5338, %v5658
        %v5979 = vmul.f32 %v5339, %v5659
        %v5980 = vmul.f32 %v5340, %v5660
        %v5981 = vmul.f32 %v5341, %v5661
        %v5982 = vmul.f32 %v5342, %v5662
        %v5983 = vmul.f32 %v5343, %v5663
        %v5984 = vmul.f32 %v5344, %v5664
        %v5985 = vmul.f32 %v5345, %v5665
        %v5986 = vmul.f32 %v5346, %v5666
        %v5987 = vmul.f32 %v5347, %v5667
        %v5988 = vmul.f32 %v5348, %v5668
        %v5989 = vmul.f32 %v5349, %v5669
        %v5990 = vmul.f32 %v5350, %v5670
        %v5991 = vmul.f32 %v5351, %v5671
        %v5992 = vmul.f32 %v5352, %v5672
        %v5993 = vmul.f32 %v5353, %v5673
        %v5994 = vmul.f32 %v5354, %v5674
        %v5995 = vmul.f32 %v5355, %v5675
        %v5996 = vmul.f32 %v5356, %v5676
        %v5997 = vmul.f32 %v5357, %v5677
        %v5998 = vmul.f32 %v5358, %v5678
        %v5999 = vmul.f32 %v5359, %v5679
        %v6000 = vmul.f32 %v5360, %v5680
        %v6001 = vmul.f32 %v5361, %v5681
        %v6002 = vmul.f32 %v5362, %v5682
        %v6003 = vmul.f32 %v5363, %v5683
        %v6004 = vmul.f32 %v5364, %v5684
        %v6005 = vmul.f32 %v5365, %v5685
        %v6006 = vmul.f32 %v5366, %v5686
        %v6007 = vmul.f32 %v5367, %v5687
        %v6008 = vmul.f32 %v5368, %v5688
        %v6009 = vmul.f32 %v5369, %v5689
        %v6010 = vmul.f32 %v5370, %v5690
        %v6011 = vmul.f32 %v5371, %v5691
        %v6012 = vmul.f32 %v5372, %v5692
        %v6013 = vmul.f32 %v5373, %v5693
        %v6014 = vmul.f32 %v5374, %v5694
        %v6015 = vmul.f32 %v5375, %v5695
        %v6016 = vmul.f32 %v5376, %v5696
        %v6017 = vmul.f32 %v5377, %v5697
        %v6018 = vmul.f32 %v5378, %v5698
        %v6019 = vmul.f32 %v5379, %v5699
        %v6020 = vmul.f32 %v5380, %v5700
        %v6021 = vmul.f32 %v5381, %v5701
        %v6022 = vmul.f32 %v5382, %v5702
        %v6023 = vmul.f32 %v5383, %v5703
        %v6024 = vmul.f32 %v5384, %v5704
        %v6025 = vmul.f32 %v5385, %v5705
        %v6026 = vmul.f32 %v5386, %v5706
        %v6027 = vmul.f32 %v5387, %v5707
        %v6028 = vmul.f32 %v5388, %v5708
        %v6029 = vmul.f32 %v5389, %v5709
        %v6030 = vmul.f32 %v5390, %v5710
        %v6031 = vmul.f32 %v5391, %v5711
        %v6032 = vmul.f32 %v5392, %v5712
        %v6033 = vmul.f32 %v5393, %v5713
        %v6034 = vmul.f32 %v5394, %v5714
        %v6035 = vmul.f32 %v5395, %v5715
        %v6036 = vmul.f32 %v5396, %v5716
        %v6037 = vmul.f32 %v5397, %v5717
        %v6038 = vmul.f32 %v5398, %v5718
        %v6039 = vmul.f32 %v5399, %v5719
        %v6040 = vmul.f32 %v5400, %v5720
        %v6041 = vmul.f32 %v5401, %v5721
        %v6042 = vmul.f32 %v5402, %v5722
        %v6043 = vmul.f32 %v5403, %v5723
        %v6044 = vmul.f32 %v5404, %v5724
        %v6045 = vmul.f32 %v5405, %v5725
        %v6046 = vmul.f32 %v5406, %v5726
        %v6047 = vmul.f32 %v5407, %v5727
        %v6048 = vmul.f32 %v5408, %v5728
        %v6049 = vmul.f32 %v5409, %v5729
        %v6050 = vmul.f32 %v5410, %v5730
        %v6051 = vmul.f32 %v5411, %v5731
        %v6052 = vmul.f32 %v5412, %v5732
        %v6053 = vmul.f32 %v5413, %v5733
        %v6054 = vmul.f32 %v5414, %v5734
        %v6055 = vmul.f32 %v5415, %v5735
        %v6056 = vmul.f32 %v5416, %v5736
        %v6057 = vmul.f32 %v5417, %v5737
        %v6058 = vmul.f32 %v5418, %v5738
        %v6059 = vmul.f32 %v5419, %v5739
        %v6060 = vmul.f32 %v5420, %v5740
        %v6061 = vmul.f32 %v5421, %v5741
        %v6062 = vmul.f32 %v5422, %v5742
        %v6063 = vmul.f32 %v5423, %v5743
        %v6064 = vmul.f32 %v5424, %v5744
        %v6065 = vmul.f32 %v5425, %v5745
        %v6066 = vmul.f32 %v5426, %v5746
        %v6067 = vmul.f32 %v5427, %v5747
        %v6068 = vmul.f32 %v5428, %v5748
        %v6069 = vmul.f32 %v5429, %v5749
        %v6070 = vmul.f32 %v5430, %v5750
        %v6071 = vmul.f32 %v5431, %v5751
        %v6072 = vmul.f32 %v5432, %v5752
        %v6073 = vmul.f32 %v5433, %v5753
        %v6074 = vmul.f32 %v5434, %v5754
        %v6075 = vmul.f32 %v5435, %v5755
        %v6076 = vmul.f32 %v5436, %v5756
        %v6077 = vmul.f32 %v5437, %v5757
        %v6078 = vmul.f32 %v5438, %v5758
        %v6079 = vmul.f32 %v5439, %v5759
        %v6080 = vmul.f32 %v5440, %v5760
        %v6081 = vmul.f32 %v5441, %v5761
        %v6082 = vmul.f32 %v5442, %v5762
        %v6083 = vmul.f32 %v5443, %v5763
        %v6084 = vmul.f32 %v5444, %v5764
        %v6085 = vmul.f32 %v5445, %v5765
        %v6086 = vmul.f32 %v5446, %v5766
        %v6087 = vmul.f32 %v5447, %v5767
        %v6088 = vmul.f32 %v5448, %v5768
        %v6089 = vmul.f32 %v5449, %v5769
        %v6090 = vmul.f32 %v5450, %v5770
        %v6091 = vmul.f32 %v5451, %v5771
        %v6092 = vmul.f32 %v5452, %v5772
        %v6093 = vmul.f32 %v5453, %v5773
        %v6094 = vmul.f32 %v5454, %v5774
        %v6095 = vmul.f32 %v5455, %v5775
        %v6096 = vmul.f32 %v5456, %v5776
        %v6097 = vmul.f32 %v5457, %v5777
        %v6098 = vmul.f32 %v5458, %v5778
        %v6099 = vmul.f32 %v5459, %v5779
        %v6100 = vmul.f32 %v5460, %v5780
        %v6101 = vmul.f32 %v5461, %v5781
        %v6102 = vmul.f32 %v5462, %v5782
        %v6103 = vmul.f32 %v5463, %v5783
        %v6104 = vmul.f32 %v5464, %v5784
        %v6105 = vmul.f32 %v5465, %v5785
        %v6106 = vmul.f32 %v5466, %v5786
        %v6107 = vmul.f32 %v5467, %v5787
        %v6108 = vmul.f32 %v5468, %v5788
        %v6109 = vmul.f32 %v5469, %v5789
        %v6110 = vmul.f32 %v5470, %v5790
        %v6111 = vmul.f32 %v5471, %v5791
        %v6112 = vmul.f32 %v5472, %v5792
        %v6113 = vmul.f32 %v5473, %v5793
        %v6114 = vmul.f32 %v5474, %v5794
        %v6115 = vmul.f32 %v5475, %v5795
        %v6116 = vmul.f32 %v5476, %v5796
        %v6117 = vmul.f32 %v5477, %v5797
        %v6118 = vmul.f32 %v5478, %v5798
        %v6119 = vmul.f32 %v5479, %v5799
        %v6120 = vmul.f32 %v5480, %v5800
        %v6121 = vmul.f32 %v5481, %v5801
        %v6122 = vmul.f32 %v5482, %v5802
        %v6123 = vmul.f32 %v5483, %v5803
        %v6124 = vmul.f32 %v5484, %v5804
        %v6125 = vmul.f32 %v5485, %v5805
        %v6126 = vmul.f32 %v5486, %v5806
        %v6127 = vmul.f32 %v5487, %v5807
        %v6128 = vmul.f32 %v5488, %v5808
        %v6129 = vmul.f32 %v5489, %v5809
        %v6130 = vmul.f32 %v5490, %v5810
        %v6131 = vmul.f32 %v5491, %v5811
        %v6132 = vmul.f32 %v5492, %v5812
        %v6133 = vmul.f32 %v5493, %v5813
        %v6134 = vmul.f32 %v5494, %v5814
        %v6135 = vmul.f32 %v5495, %v5815
        %v6136 = vmul.f32 %v5496, %v5816
        %v6137 = vmul.f32 %v5497, %v5817
        %v6138 = vmul.f32 %v5498, %v5818
        %v6139 = vmul.f32 %v5499, %v5819
        %v6140 = vmul.f32 %v5500, %v5820
        %v6141 = vmul.f32 %v5501, %v5821
        %v6142 = vmul.f32 %v5502, %v5822
        %v6143 = vmul.f32 %v5503, %v5823
        %v6144 = vmul.f32 %v5504, %v5824
        %v6145 = vmul.f32 %v5505, %v5825
        %v6146 = vmul.f32 %v5506, %v5826
        %v6147 = vmul.f32 %v5507, %v5827
        %v6148 = vmul.f32 %v5508, %v5828
        %v6149 = vmul.f32 %v5509, %v5829
        %v6150 = vmul.f32 %v5510, %v5830
        %v6151 = vmul.f32 %v5511, %v5831
        %v6152 = vmul.f32 %v5512, %v5832
        %v6153 = vmul.f32 %v5513, %v5833
        %v6154 = vmul.f32 %v5514, %v5834
        %v6155 = vmul.f32 %v5515, %v5835
        %v6156 = vmul.f32 %v5516, %v5836
        %v6157 = vmul.f32 %v5517, %v5837
        %v6158 = vmul.f32 %v5518, %v5838
        %v6159 = vmul.f32 %v5519, %v5839
        %v6160 = vmul.f32 %v5520, %v5840
        %v6161 = vmul.f32 %v5521, %v5841
        %v6162 = vmul.f32 %v5522, %v5842
        %v6163 = vmul.f32 %v5523, %v5843
        %v6164 = vmul.f32 %v5524, %v5844
        %v6165 = vmul.f32 %v5525, %v5845
        %v6166 = vmul.f32 %v5526, %v5846
        %v6167 = vmul.f32 %v5527, %v5847
        %v6168 = vmul.f32 %v5528, %v5848
        %v6169 = vmul.f32 %v5529, %v5849
        %v6170 = vmul.f32 %v5530, %v5850
        %v6171 = vmul.f32 %v5531, %v5851
        %v6172 = vmul.f32 %v5532, %v5852
        %v6173 = vmul.f32 %v5533, %v5853
        %v6174 = vmul.f32 %v5534, %v5854
        %v6175 = vmul.f32 %v5535, %v5855
        %v6176 = vmul.f32 %v5536, %v5856
        %v6177 = vmul.f32 %v5537, %v5857
        %v6178 = vmul.f32 %v5538, %v5858
        %v6179 = vmul.f32 %v5539, %v5859
        %v6180 = vadd.f32 %v5860, %v5861
        %v6181 = vadd.f32 %v6180, %v5862
        %v6182 = vadd.f32 %v6181, %v5863
        %v6183 = vadd.f32 %v6182, %v5864
        %v6184 = vadd.f32 %v6183, %v5865
        %v6185 = vadd.f32 %v6184, %v5866
        %v6186 = vadd.f32 %v6185, %v5867
        %v6187 = vadd.f32 %v6186, %v5868
        %v6188 = vadd.f32 %v6187, %v5869
        %v6189 = vadd.f32 %v6188, %v5870
        %v6190 = vadd.f32 %v6189, %v5871
        %v6191 = vadd.f32 %v6190, %v5872
        %v6192 = vadd.f32 %v6191, %v5873
        %v6193 = vadd.f32 %v6192, %v5874
        %v6194 = vadd.f32 %v6193, %v5875
        %v6195 = vadd.f32 %v6194, %v5876
        %v6196 = vadd.f32 %v6195, %v5877
        %v6197 = vadd.f32 %v6196, %v5878
        %v6198 = vadd.f32 %v6197, %v5879
        %v6199 = vadd.f32 %v6198, %v5880
        %v6200 = vadd.f32 %v6199, %v5881
        %v6201 = vadd.f32 %v6200, %v5882
        %v6202 = vadd.f32 %v6201, %v5883
        %v6203 = vadd.f32 %v6202, %v5884
        %v6204 = vadd.f32 %v6203, %v5885
        %v6205 = vadd.f32 %v6204, %v5886
        %v6206 = vadd.f32 %v6205, %v5887
        %v6207 = vadd.f32 %v6206, %v5888
        %v6208 = vadd.f32 %v6207, %v5889
        %v6209 = vadd.f32 %v6208, %v5890
        %v6210 = vadd.f32 %v6209, %v5891
        %v6211 = vadd.f32 %v6210, %v5892
        %v6212 = vadd.f32 %v6211, %v5893
        %v6213 = vadd.f32 %v6212, %v5894
        %v6214 = vadd.f32 %v6213, %v5895
        %v6215 = vadd.f32 %v6214, %v5896
        %v6216 = vadd.f32 %v6215, %v5897
        %v6217 = vadd.f32 %v6216, %v5898
        %v6218 = vadd.f32 %v6217, %v5899
        %v6219 = vadd.f32 %v6218, %v5900
        %v6220 = vadd.f32 %v6219, %v5901
        %v6221 = vadd.f32 %v6220, %v5902
        %v6222 = vadd.f32 %v6221, %v5903
        %v6223 = vadd.f32 %v6222, %v5904
        %v6224 = vadd.f32 %v6223, %v5905
        %v6225 = vadd.f32 %v6224, %v5906
        %v6226 = vadd.f32 %v6225, %v5907
        %v6227 = vadd.f32 %v6226, %v5908
        %v6228 = vadd.f32 %v6227, %v5909
        %v6229 = vadd.f32 %v6228, %v5910
        %v6230 = vadd.f32 %v6229, %v5911
        %v6231 = vadd.f32 %v6230, %v5912
        %v6232 = vadd.f32 %v6231, %v5913
        %v6233 = vadd.f32 %v6232, %v5914
        %v6234 = vadd.f32 %v6233, %v5915
        %v6235 = vadd.f32 %v6234, %v5916
        %v6236 = vadd.f32 %v6235, %v5917
        %v6237 = vadd.f32 %v6236, %v5918
        %v6238 = vadd.f32 %v6237, %v5919
        %v6239 = vadd.f32 %v6238, %v5920
        %v6240 = vadd.f32 %v6239, %v5921
        %v6241 = vadd.f32 %v6240, %v5922
        %v6242 = vadd.f32 %v6241, %v5923
        %v6243 = vadd.f32 %v6242, %v5924
        %v6244 = vadd.f32 %v6243, %v5925
        %v6245 = vadd.f32 %v6244, %v5926
        %v6246 = vadd.f32 %v6245, %v5927
        %v6247 = vadd.f32 %v6246, %v5928
        %v6248 = vadd.f32 %v6247, %v5929
        %v6249 = vadd.f32 %v6248, %v5930
        %v6250 = vadd.f32 %v6249, %v5931
        %v6251 = vadd.f32 %v6250, %v5932
        %v6252 = vadd.f32 %v6251, %v5933
        %v6253 = vadd.f32 %v6252, %v5934
        %v6254 = vadd.f32 %v6253, %v5935
        %v6255 = vadd.f32 %v6254, %v5936
        %v6256 = vadd.f32 %v6255, %v5937
        %v6257 = vadd.f32 %v6256, %v5938
        %v6258 = vadd.f32 %v6257, %v5939
        %v6259 = vadd.f32 %v6258, %v5940
        %v6260 = vadd.f32 %v6259, %v5941
        %v6261 = vadd.f32 %v6260, %v5942
        %v6262 = vadd.f32 %v6261, %v5943
        %v6263 = vadd.f32 %v6262, %v5944
        %v6264 = vadd.f32 %v6263, %v5945
        %v6265 = vadd.f32 %v6264, %v5946
        %v6266 = vadd.f32 %v6265, %v5947
        %v6267 = vadd.f32 %v6266, %v5948
        %v6268 = vadd.f32 %v6267, %v5949
        %v6269 = vadd.f32 %v6268, %v5950
        %v6270 = vadd.f32 %v6269, %v5951
        %v6271 = vadd.f32 %v6270, %v5952
        %v6272 = vadd.f32 %v6271, %v5953
        %v6273 = vadd.f32 %v6272, %v5954
        %v6274 = vadd.f32 %v6273, %v5955
        %v6275 = vadd.f32 %v6274, %v5956
        %v6276 = vadd.f32 %v6275, %v5957
        %v6277 = vadd.f32 %v6276, %v5958
        %v6278 = vadd.f32 %v6277, %v5959
        %v6279 = vadd.f32 %v6278, %v5960
        %v6280 = vadd.f32 %v6279, %v5961
        %v6281 = vadd.f32 %v6280, %v5962
        %v6282 = vadd.f32 %v6281, %v5963
        %v6283 = vadd.f32 %v6282, %v5964
        %v6284 = vadd.f32 %v6283, %v5965
        %v6285 = vadd.f32 %v6284, %v5966
        %v6286 = vadd.f32 %v6285, %v5967
        %v6287 = vadd.f32 %v6286, %v5968
        %v6288 = vadd.f32 %v6287, %v5969
        %v6289 = vadd.f32 %v6288, %v5970
        %v6290 = vadd.f32 %v6289, %v5971
        %v6291 = vadd.f32 %v6290, %v5972
        %v6292 = vadd.f32 %v6291, %v5973
        %v6293 = vadd.f32 %v6292, %v5974
        %v6294 = vadd.f32 %v6293, %v5975
        %v6295 = vadd.f32 %v6294, %v5976
        %v6296 = vadd.f32 %v6295, %v5977
        %v6297 = vadd.f32 %v6296, %v5978
        %v6298 = vadd.f32 %v6297, %v5979
        %v6299 = vadd.f32 %v6298, %v5980
        %v6300 = vadd.f32 %v6299, %v5981
        %v6301 = vadd.f32 %v6300, %v5982
        %v6302 = vadd.f32 %v6301, %v5983
        %v6303 = vadd.f32 %v6302, %v5984
        %v6304 = vadd.f32 %v6303, %v5985
        %v6305 = vadd.f32 %v6304, %v5986
        %v6306 = vadd.f32 %v6305, %v5987
        %v6307 = vadd.f32 %v6306, %v5988
        %v6308 = vadd.f32 %v6307, %v5989
        %v6309 = vadd.f32 %v6308, %v5990
        %v6310 = vadd.f32 %v6309, %v5991
        %v6311 = vadd.f32 %v6310, %v5992
        %v6312 = vadd.f32 %v6311, %v5993
        %v6313 = vadd.f32 %v6312, %v5994
        %v6314 = vadd.f32 %v6313, %v5995
        %v6315 = vadd.f32 %v6314, %v5996
        %v6316 = vadd.f32 %v6315, %v5997
        %v6317 = vadd.f32 %v6316, %v5998
        %v6318 = vadd.f32 %v6317, %v5999
        %v6319 = vadd.f32 %v6318, %v6000
        %v6320 = vadd.f32 %v6319, %v6001
        %v6321 = vadd.f32 %v6320, %v6002
        %v6322 = vadd.f32 %v6321, %v6003
        %v6323 = vadd.f32 %v6322, %v6004
        %v6324 = vadd.f32 %v6323, %v6005
        %v6325 = vadd.f32 %v6324, %v6006
        %v6326 = vadd.f32 %v6325, %v6007
        %v6327 = vadd.f32 %v6326, %v6008
        %v6328 = vadd.f32 %v6327, %v6009
        %v6329 = vadd.f32 %v6328, %v6010
        %v6330 = vadd.f32 %v6329, %v6011
        %v6331 = vadd.f32 %v6330, %v6012
        %v6332 = vadd.f32 %v6331, %v6013
        %v6333 = vadd.f32 %v6332, %v6014
        %v6334 = vadd.f32 %v6333, %v6015
        %v6335 = vadd.f32 %v6334, %v6016
        %v6336 = vadd.f32 %v6335, %v6017
        %v6337 = vadd.f32 %v6336, %v6018
        %v6338 = vadd.f32 %v6337, %v6019
        %v6339 = vadd.f32 %v6338, %v6020
        %v6340 = vadd.f32 %v6339, %v6021
        %v6341 = vadd.f32 %v6340, %v6022
        %v6342 = vadd.f32 %v6341, %v6023
        %v6343 = vadd.f32 %v6342, %v6024
        %v6344 = vadd.f32 %v6343, %v6025
        %v6345 = vadd.f32 %v6344, %v6026
        %v6346 = vadd.f32 %v6345, %v6027
        %v6347 = vadd.f32 %v6346, %v6028
        %v6348 = vadd.f32 %v6347, %v6029
        %v6349 = vadd.f32 %v6348, %v6030
        %v6350 = vadd.f32 %v6349, %v6031
        %v6351 = vadd.f32 %v6350, %v6032
        %v6352 = vadd.f32 %v6351, %v6033
        %v6353 = vadd.f32 %v6352, %v6034
        %v6354 = vadd.f32 %v6353, %v6035
        %v6355 = vadd.f32 %v6354, %v6036
        %v6356 = vadd.f32 %v6355, %v6037
        %v6357 = vadd.f32 %v6356, %v6038
        %v6358 = vadd.f32 %v6357, %v6039
        %v6359 = vadd.f32 %v6358, %v6040
        %v6360 = vadd.f32 %v6359, %v6041
        %v6361 = vadd.f32 %v6360, %v6042
        %v6362 = vadd.f32 %v6361, %v6043
        %v6363 = vadd.f32 %v6362, %v6044
        %v6364 = vadd.f32 %v6363, %v6045
        %v6365 = vadd.f32 %v6364, %v6046
        %v6366 = vadd.f32 %v6365, %v6047
        %v6367 = vadd.f32 %v6366, %v6048
        %v6368 = vadd.f32 %v6367, %v6049
        %v6369 = vadd.f32 %v6368, %v6050
        %v6370 = vadd.f32 %v6369, %v6051
        %v6371 = vadd.f32 %v6370, %v6052
        %v6372 = vadd.f32 %v6371, %v6053
        %v6373 = vadd.f32 %v6372, %v6054
        %v6374 = vadd.f32 %v6373, %v6055
        %v6375 = vadd.f32 %v6374, %v6056
        %v6376 = vadd.f32 %v6375, %v6057
        %v6377 = vadd.f32 %v6376, %v6058
        %v6378 = vadd.f32 %v6377, %v6059
        %v6379 = vadd.f32 %v6378, %v6060
        %v6380 = vadd.f32 %v6379, %v6061
        %v6381 = vadd.f32 %v6380, %v6062
        %v6382 = vadd.f32 %v6381, %v6063
        %v6383 = vadd.f32 %v6382, %v6064
        %v6384 = vadd.f32 %v6383, %v6065
        %v6385 = vadd.f32 %v6384, %v6066
        %v6386 = vadd.f32 %v6385, %v6067
        %v6387 = vadd.f32 %v6386, %v6068
        %v6388 = vadd.f32 %v6387, %v6069
        %v6389 = vadd.f32 %v6388, %v6070
        %v6390 = vadd.f32 %v6389, %v6071
        %v6391 = vadd.f32 %v6390, %v6072
        %v6392 = vadd.f32 %v6391, %v6073
        %v6393 = vadd.f32 %v6392, %v6074
        %v6394 = vadd.f32 %v6393, %v6075
        %v6395 = vadd.f32 %v6394, %v6076
        %v6396 = vadd.f32 %v6395, %v6077
        %v6397 = vadd.f32 %v6396, %v6078
        %v6398 = vadd.f32 %v6397, %v6079
        %v6399 = vadd.f32 %v6398, %v6080
        %v6400 = vadd.f32 %v6399, %v6081
        %v6401 = vadd.f32 %v6400, %v6082
        %v6402 = vadd.f32 %v6401, %v6083
        %v6403 = vadd.f32 %v6402, %v6084
        %v6404 = vadd.f32 %v6403, %v6085
        %v6405 = vadd.f32 %v6404, %v6086
        %v6406 = vadd.f32 %v6405, %v6087
        %v6407 = vadd.f32 %v6406, %v6088
        %v6408 = vadd.f32 %v6407, %v6089
        %v6409 = vadd.f32 %v6408, %v6090
        %v6410 = vadd.f32 %v6409, %v6091
        %v6411 = vadd.f32 %v6410, %v6092
        %v6412 = vadd.f32 %v6411, %v6093
        %v6413 = vadd.f32 %v6412, %v6094
        %v6414 = vadd.f32 %v6413, %v6095
        %v6415 = vadd.f32 %v6414, %v6096
        %v6416 = vadd.f32 %v6415, %v6097
        %v6417 = vadd.f32 %v6416, %v6098
        %v6418 = vadd.f32 %v6417, %v6099
        %v6419 = vadd.f32 %v6418, %v6100
        %v6420 = vadd.f32 %v6419, %v6101
        %v6421 = vadd.f32 %v6420, %v6102
        %v6422 = vadd.f32 %v6421, %v6103
        %v6423 = vadd.f32 %v6422, %v6104
        %v6424 = vadd.f32 %v6423, %v6105
        %v6425 = vadd.f32 %v6424, %v6106
        %v6426 = vadd.f32 %v6425, %v6107
        %v6427 = vadd.f32 %v6426, %v6108
        %v6428 = vadd.f32 %v6427, %v6109
        %v6429 = vadd.f32 %v6428, %v6110
        %v6430 = vadd.f32 %v6429, %v6111
        %v6431 = vadd.f32 %v6430, %v6112
        %v6432 = vadd.f32 %v6431, %v6113
        %v6433 = vadd.f32 %v6432, %v6114
        %v6434 = vadd.f32 %v6433, %v6115
        %v6435 = vadd.f32 %v6434, %v6116
        %v6436 = vadd.f32 %v6435, %v6117
        %v6437 = vadd.f32 %v6436, %v6118
        %v6438 = vadd.f32 %v6437, %v6119
        %v6439 = vadd.f32 %v6438, %v6120
        %v6440 = vadd.f32 %v6439, %v6121
        %v6441 = vadd.f32 %v6440, %v6122
        %v6442 = vadd.f32 %v6441, %v6123
        %v6443 = vadd.f32 %v6442, %v6124
        %v6444 = vadd.f32 %v6443, %v6125
        %v6445 = vadd.f32 %v6444, %v6126
        %v6446 = vadd.f32 %v6445, %v6127
        %v6447 = vadd.f32 %v6446, %v6128
        %v6448 = vadd.f32 %v6447, %v6129
        %v6449 = vadd.f32 %v6448, %v6130
        %v6450 = vadd.f32 %v6449, %v6131
        %v6451 = vadd.f32 %v6450, %v6132
        %v6452 = vadd.f32 %v6451, %v6133
        %v6453 = vadd.f32 %v6452, %v6134
        %v6454 = vadd.f32 %v6453, %v6135
        %v6455 = vadd.f32 %v6454, %v6136
        %v6456 = vadd.f32 %v6455, %v6137
        %v6457 = vadd.f32 %v6456, %v6138
        %v6458 = vadd.f32 %v6457, %v6139
        %v6459 = vadd.f32 %v6458, %v6140
        %v6460 = vadd.f32 %v6459, %v6141
        %v6461 = vadd.f32 %v6460, %v6142
        %v6462 = vadd.f32 %v6461, %v6143
        %v6463 = vadd.f32 %v6462, %v6144
        %v6464 = vadd.f32 %v6463, %v6145
        %v6465 = vadd.f32 %v6464, %v6146
        %v6466 = vadd.f32 %v6465, %v6147
        %v6467 = vadd.f32 %v6466, %v6148
        %v6468 = vadd.f32 %v6467, %v6149
        %v6469 = vadd.f32 %v6468, %v6150
        %v6470 = vadd.f32 %v6469, %v6151
        %v6471 = vadd.f32 %v6470, %v6152
        %v6472 = vadd.f32 %v6471, %v6153
        %v6473 = vadd.f32 %v6472, %v6154
        %v6474 = vadd.f32 %v6473, %v6155
        %v6475 = vadd.f32 %v6474, %v6156
        %v6476 = vadd.f32 %v6475, %v6157
        %v6477 = vadd.f32 %v6476, %v6158
        %v6478 = vadd.f32 %v6477, %v6159
        %v6479 = vadd.f32 %v6478, %v6160
        %v6480 = vadd.f32 %v6479, %v6161
        %v6481 = vadd.f32 %v6480, %v6162
        %v6482 = vadd.f32 %v6481, %v6163
        %v6483 = vadd.f32 %v6482, %v6164
        %v6484 = vadd.f32 %v6483, %v6165
        %v6485 = vadd.f32 %v6484, %v6166
        %v6486 = vadd.f32 %v6485, %v6167
        %v6487 = vadd.f32 %v6486, %v6168
        %v6488 = vadd.f32 %v6487, %v6169
        %v6489 = vadd.f32 %v6488, %v6170
        %v6490 = vadd.f32 %v6489, %v6171
        %v6491 = vadd.f32 %v6490, %v6172
        %v6492 = vadd.f32 %v6491, %v6173
        %v6493 = vadd.f32 %v6492, %v6174
        %v6494 = vadd.f32 %v6493, %v6175
        %v6495 = vadd.f32 %v6494, %v6176
        %v6496 = vadd.f32 %v6495, %v6177
        %v6497 = vadd.f32 %v6496, %v6178
        %v6498 = vadd.f32 %v6497, %v6179
        %v6499 = vrot.slane %v6498, 4
        %v6500 = vadd.f32 %v6498, %v6499
        %v6501 = vrot.slane %v6500, 2
        %v6502 = vadd.f32 %v6500, %v6501
        %v6503 = vrot.slane %v6502, 1
        %v6504 = vadd.f32 %v6502, %v6503
        %v6505 = vld [vmem:[%s6] sm:$0x1]
        %v6506 = vadd.f32 %v6504, %v6505
        %v6507 = vmax.f32 %v6506, 0.0
        %v6508 = vld [vmem:[%s7] sm:$0xff]
        %v6509 = vld [vmem:[%s7 + $0x8] sm:$0xff]
        %v6510 = vld [vmem:[%s7 + $0x10] sm:$0xff]
        %v6511 = vld [vmem:[%s7 + $0x18] sm:$0xff]
        %v6512 = vld [vmem:[%s7 + $0x20] sm:$0xff]
        %v6513 = vld [vmem:[%s7 + $0x28] sm:$0xff]
        %v6514 = vld [vmem:[%s7 + $0x30] sm:$0xff]
        %v6515 = vld [vmem:[%s7 + $0x38] sm:$0xff]
        %v6516 = vld [vmem:[%s7 + $0x40] sm:$0xff]
        %v6517 = vld [vmem:[%s7 + $0x48] sm:$0xff]
        %v6518 = vld [vmem:[%s7 + $0x50] sm:$0xff]
        %v6519 = vld [vmem:[%s7 + $0x58] sm:$0xff]
        %v6520 = vld [vmem:[%s7 + $0x60] sm:$0xff]
        %v6521 = vld [vmem:[%s7 + $0x68] sm:$0xff]
        %v6522 = vld [vmem:[%s7 + $0x70] sm:$0xff]
        %v6523 = vld [vmem:[%s7 + $0x78] sm:$0xff]
        %v6524 = vld [vmem:[%s8] sm:$0x1]
        %6525 = vmatprep.subr.mxu0 0.0
        %6526 = vmatpush1.msra.mxu0 %v6508
        %6527 = vmatprep.subr.mxu0 0.0
        %6528 = vmatpush1.msra.mxu0 %v6509
        %6529 = vmatprep.subr.mxu0 0.0
        %6530 = vmatpush1.msra.mxu0 %v6510
        %6531 = vmatprep.subr.mxu0 0.0
        %6532 = vmatpush1.msra.mxu0 %v6511
        %6533 = vmatprep.subr.mxu0 0.0
        %6534 = vmatpush1.msra.mxu0 %v6512
        %6535 = vmatprep.subr.mxu0 0.0
        %6536 = vmatpush1.msra.mxu0 %v6513
        %6537 = vmatprep.subr.mxu0 0.0
        %6538 = vmatpush1.msra.mxu0 %v6514
        %6539 = vmatprep.subr.mxu0 0.0
        %6540 = vmatpush1.msra.mxu0 %v6515
        %6541 = vmatprep.subr.mxu0 0.0
        %6542 = vmatpush1.msra.mxu0 %v6516
        %6543 = vmatprep.subr.mxu0 0.0
        %6544 = vmatpush1.msra.mxu0 %v6517
        %6545 = vmatprep.subr.mxu0 0.0
        %6546 = vmatpush1.msra.mxu0 %v6518
        %6547 = vmatprep.subr.mxu0 0.0
        %6548 = vmatpush1.msra.mxu0 %v6519
        %6549 = vmatprep.subr.mxu0 0.0
        %6550 = vmatpush1.msra.mxu0 %v6520
        %6551 = vmatprep.subr.mxu0 0.0
        %6552 = vmatpush1.msra.mxu0 %v6521
        %6553 = vmatprep.subr.mxu0 0.0
        %6554 = vmatpush1.msra.mxu0 %v6522
        %6555 = vmatprep.subr.mxu0 0.0
        %6556 = vmatpush1.msra.mxu0 %v6523
        %6557 = vmatprep.subr.mxu0 0.0
        %6558 = vmatpush1.msra.mxu0 0.0
        %6559 = vmatprep.subr.mxu0 0.0
        %6560 = vmatpush1.msra.mxu0 0.0
        %6561 = vmatprep.subr.mxu0 0.0
        %6562 = vmatpush1.msra.mxu0 0.0
        %6563 = vmatprep.subr.mxu0 0.0
        %6564 = vmatpush1.msra.mxu0 0.0
        %6565 = vmatprep.subr.mxu0 0.0
        %6566 = vmatpush1.msra.mxu0 0.0
        %6567 = vmatprep.subr.mxu0 0.0
        %6568 = vmatpush1.msra.mxu0 0.0
        %6569 = vmatprep.subr.mxu0 0.0
        %6570 = vmatpush1.msra.mxu0 0.0
        %6571 = vmatprep.subr.mxu0 0.0
        %6572 = vmatpush1.msra.mxu0 0.0
        %6573 = vmatprep.subr.mxu0 0.0
        %6574 = vmatpush1.msra.mxu0 0.0
        %6575 = vmatprep.subr.mxu0 0.0
        %6576 = vmatpush1.msra.mxu0 0.0
        %6577 = vmatprep.subr.mxu0 0.0
        %6578 = vmatpush1.msra.mxu0 0.0
        %6579 = vmatprep.subr.mxu0 0.0
        %6580 = vmatpush1.msra.mxu0 0.0
        %6581 = vmatprep.subr.mxu0 0.0
        %6582 = vmatpush1.msra.mxu0 0.0
        %6583 = vmatprep.subr.mxu0 0.0
        %6584 = vmatpush1.msra.mxu0 0.0
        %6585 = vmatprep.subr.mxu0 0.0
        %6586 = vmatpush1.msra.mxu0 0.0
        %6587 = vmatprep.subr.mxu0 0.0
        %6588 = vmatpush1.msra.mxu0 0.0
        %6589 = vmatprep.mubr.f32.mxu0 0.0
        %6590 = vmatmul.mubr.f32.gmra.mrb[0].mxu0 %v6507
        %v6591 = vpop.f32.mrb[0].mxu0
        %v6592 = vadd.f32 %v6524, %v6591
        %v6593 = vpop.f32.mrb[0].mxu0
        %6594 = vdwg.mxu0
        %vm6595 = vcmask 16384
        %6596 = vst.msk [vmem:[%s326] sm:$0x1] %vm6595, %v6592
        %s6597 = sand.u32 %s226, 1
        %s6598 = scalar_lea.sflag [#allocation4], %s6597
        %s6599 = sand.u32 %s226, 1
        %s6600 = scalar_lea.vmem [#allocation3], %s6599
        // Predicated region
        $region57: #{tpu_custom_call.1} parent=55 // pred_check
          %p6601 = pneg %p236
        $region58: #{tpu_custom_call.1} parent=55 // pred_check_branch
          %6603 = sbr.rel (%p6601) target = $region60
        $region59: #{tpu_custom_call.1} parent=55 // pred_region
          %s6605 = ssub.s32 16, 16
          %6606 = vsyncadd %s6598, %s6605
          %s6607 = smul.addr %s24, 16
          %s6608 = scalar_lea.hbm %s9, %s6607
          %s6610 = sshll.u32 %s6600, 4
          %s6611 = int_to_ptr.vmem [resolvable:$true] %s6610
          %6613 = dma.vmem_to_hbm [thread:$0]  %s6611, 16, %s6608, %s6598
        $region60: #{tpu_custom_call.1} parent=55 // pred_fallthru
          _
      $region56: #{tpu_custom_call.1} parent=5 // pred_fallthru
        _
      %p6614 = scmp.le.s32.totalorder 2, %s19
      // Predicated region
      $region61: #{tpu_custom_call.1} parent=5 // pred_check
        %p6615 = pneg %p6614
      $region62: #{tpu_custom_call.1} parent=5 // pred_check_branch
        %6617 = sbr.rel (%p6615) target = $region64
      $region63: #{tpu_custom_call.1} parent=5 // pred_region
        %s6618 = ssub.s32 %s19, 2
        // Predicated region
        $region65: #{tpu_custom_call.1} parent=63 // pred_check
          %p6619 = pneg %p242
        $region66: #{tpu_custom_call.1} parent=63 // pred_check_branch
          %6621 = sbr.rel (%p6619) target = $region68
        $region67: #{tpu_custom_call.1} parent=63 // pred_region
          %s6622 = sand.u32 %s227, 1
          %s6623 = scalar_lea.sflag [#allocation4], %s6622
          %s6624 = sand.u32 %s227, 1
          %s6625 = scalar_lea.vmem [#allocation3], %s6624
          %6626 = dma.done %s6623, 16
        $region68: #{tpu_custom_call.1} parent=63 // pred_fallthru
          _
      $region64: #{tpu_custom_call.1} parent=5 // pred_fallthru
        _
    $region6: #{tpu_custom_call.1} parent=1 // loop_footer
      %s23 = sadd.s32 1, %s19
    $region7: #{tpu_custom_call.1} parent=1 // loop_footer_branch
      %18 = sbr.rel target = $region3
    $region8: #{tpu_custom_call.1} parent=1 // loop_exit
      _
    %6627 = vsyncpa [#allocation4], 1
    %s6628 = scalar_lea.sflag [#allocation4], 1
    %6629 = vsyncpa %s6628, 1

</llo_original>
